<compile_context>
chip_gen: v7x
topology: tpu7x:2x2x1
jax: 0.10.0
libtpu: 0.0.40
codegen_flags: <defaults>
</compile_context>

<pallas_src>
import functools

import jax
import jax.numpy as jnp
from jax import lax
from jax.experimental import pallas as pl
from jax.experimental.pallas import tpu as pltpu

_HIGHEST = jax.lax.Precision.HIGHEST


# --------------------------------------------------------------------------- #
# Kernels
# --------------------------------------------------------------------------- #
def _qkv_proj_kernel(q_ref, k_ref, v_ref,
                     wq_ref, wk_ref, wv_ref,
                     bq_ref, bk_ref, bv_ref,
                     qo_ref, ko_ref, vo_ref):
    """linear_q / linear_k / linear_v for one batch element (weights stay resident)."""
    def proj(x_ref, w_ref, b_ref, o_ref):
        x = x_ref[0]                                                      # [T, D]
        y = jnp.dot(x, w_ref[...], preferred_element_type=jnp.float32,
                    precision=_HIGHEST) + b_ref[...]
        o_ref[0] = y.astype(o_ref.dtype)

    proj(q_ref, wq_ref, bq_ref, qo_ref)
    proj(k_ref, wk_ref, bk_ref, ko_ref)
    proj(v_ref, wv_ref, bv_ref, vo_ref)


def _sdpa_kernel(q_ref, k_ref, v_ref, ctx_ref, attn_ref, *, scale):
    """Scaled dot-product attention for one (batch*head) group."""
    q = q_ref[0]                                                          # [T, Dh]
    k = k_ref[0]
    v = v_ref[0]
    # Contract on the last dim of BOTH operands -> no k^T materialization.
    s = lax.dot_general(q, k, dimension_numbers=(((1,), (1,)), ((), ())),
                        preferred_element_type=jnp.float32,
                        precision=_HIGHEST) * scale                       # [T, T]
    p = jnp.exp(s - jnp.max(s, axis=-1, keepdims=True))
    attn = p / jnp.sum(p, axis=-1, keepdims=True)                         # exact softmax
    ctx = jnp.dot(attn, v, preferred_element_type=jnp.float32,
                  precision=_HIGHEST)                                     # [T, Dh]
    attn_ref[0] = attn.astype(attn_ref.dtype)
    ctx_ref[0] = ctx.astype(ctx_ref.dtype)


def _final_kernel(res_ref, ctx_ref, wf_ref, bf_ref, gamma_ref, beta_ref, out_ref, *, eps):
    """linear_final + residual add + LayerNorm for one batch element."""
    res = res_ref[0].astype(jnp.float32)                                  # [T, D]
    ctx = ctx_ref[0].astype(jnp.float32)
    y = jnp.dot(ctx, wf_ref[...], preferred_element_type=jnp.float32,
                precision=_HIGHEST) + bf_ref[...]
    x = res + y
    mean = jnp.mean(x, axis=-1, keepdims=True)
    xc = x - mean
    var = jnp.mean(xc * xc, axis=-1, keepdims=True)
    xn = xc * lax.rsqrt(var + eps)
    out_ref[0] = (gamma_ref[...] * xn + beta_ref[...]).astype(out_ref.dtype)


# --------------------------------------------------------------------------- #
# Wrapper
# --------------------------------------------------------------------------- #
@functools.partial(jax.jit, static_argnames=("num_heads",))
def multi_head_attention(query, key, value,
                         wq, bq, wk, bk, wv, bv, wf, bf, gamma, beta,
                         *, num_heads):
    """query/key/value: [B, T, D]; weights [D, D] (in->out layout); biases [1, D]."""
    B, T, D = query.shape
    H = num_heads
    Dh = D // H
    # Matches the module exactly: scale = (key.size(-1) // num_heads) ** (-0.5)
    scale = float(Dh // H) ** -0.5
    f32 = jnp.float32

    act_spec = pl.BlockSpec((1, T, D), lambda b: (b, 0, 0))   # per-batch activation tile
    w_spec = pl.BlockSpec((D, D), lambda b: (0, 0))           # resident weight
    vec_spec = pl.BlockSpec((1, D), lambda b: (0, 0))         # resident bias / LN params

    # ---- 1) QKV projections: grid over batch (parallel), weights resident ----
    proj_cost = pl.CostEstimate(
        flops=3 * 2 * B * T * D * D,
        transcendentals=0,
        bytes_accessed=4 * (6 * B * T * D + 3 * D * D + 3 * D),
    )
    qp, kp, vp = pl.pallas_call(
        _qkv_proj_kernel,
        out_shape=(jax.ShapeDtypeStruct((B, T, D), f32),) * 3,
        grid_spec=pltpu.PrefetchScalarGridSpec(
            num_scalar_prefetch=0,
            grid=(B,),
            in_specs=[act_spec, act_spec, act_spec,
                      w_spec, w_spec, w_spec,
                      vec_spec, vec_spec, vec_spec],
            out_specs=(act_spec, act_spec, act_spec),
        ),
        compiler_params=pltpu.CompilerParams(dimension_semantics=("parallel",)),
        cost_estimate=proj_cost,
    )(query, key, value, wq, wk, wv, bq, bk, bv)

    # ---- torch .view(B*H, T, Dh): free row-major reshape (metadata only) -----
    qh = qp.reshape(B * H, T, Dh)
    kh = kp.reshape(B * H, T, Dh)
    vh = vp.reshape(B * H, T, Dh)

    # ---- 2) scaled dot-product attention: grid over B*H groups (parallel) ----
    head_spec = pl.BlockSpec((1, T, Dh), lambda g: (g, 0, 0))
    attn_spec = pl.BlockSpec((1, T, T), lambda g: (g, 0, 0))
    attn_cost = pl.CostEstimate(
        flops=2 * 2 * B * H * T * T * Dh,
        transcendentals=B * H * T * T,
        bytes_accessed=4 * (4 * B * H * T * Dh + B * H * T * T),
    )
    ctx, attn = pl.pallas_call(
        functools.partial(_sdpa_kernel, scale=scale),
        out_shape=(jax.ShapeDtypeStruct((B * H, T, Dh), f32),
                   jax.ShapeDtypeStruct((B * H, T, T), f32)),
        grid_spec=pltpu.PrefetchScalarGridSpec(
            num_scalar_prefetch=0,
            grid=(B * H,),
            in_specs=[head_spec, head_spec, head_spec],
            out_specs=(head_spec, attn_spec),
        ),
        compiler_params=pltpu.CompilerParams(dimension_semantics=("parallel",)),
        cost_estimate=attn_cost,
    )(qh, kh, vh)

    # ---- torch context.view(B, T, D): free row-major reshape -----------------
    ctx_flat = ctx.reshape(B, T, D)

    # ---- 3) final linear + residual + LayerNorm: grid over batch (parallel) --
    out_cost = pl.CostEstimate(
        flops=2 * B * T * D * D + 10 * B * T * D,
        transcendentals=B * T,
        bytes_accessed=4 * (3 * B * T * D + D * D + 3 * D),
    )
    out = pl.pallas_call(
        functools.partial(_final_kernel, eps=1e-5),
        out_shape=jax.ShapeDtypeStruct((B, T, D), query.dtype),
        grid_spec=pltpu.PrefetchScalarGridSpec(
            num_scalar_prefetch=0,
            grid=(B,),
            in_specs=[act_spec, act_spec, w_spec, vec_spec, vec_spec, vec_spec],
            out_specs=act_spec,
        ),
        compiler_params=pltpu.CompilerParams(dimension_semantics=("parallel",)),
        cost_estimate=out_cost,
    )(query, ctx_flat, wf, bf, gamma, beta)

    return out, attn


# --------------------------------------------------------------------------- #
# Pure-JAX reference (mirrors the PyTorch module exactly)
# --------------------------------------------------------------------------- #
def _reference(query, key, value, wq, bq, wk, bk, wv, bv, wf, bf, gamma, beta, num_heads):
    hp = lax.Precision.HIGHEST
    B, T, D = query.shape
    H = num_heads
    Dh = D // H
    q = jnp.einsum("btd,de->bte", query, wq, precision=hp) + bq
    k = jnp.einsum("btd,de->bte", key, wk, precision=hp) + bk
    v = jnp.einsum("btd,de->bte", value, wv, precision=hp) + bv
    q = q.reshape(B * H, T, Dh)          # same row-major semantics as torch .view
    k = k.reshape(B * H, T, Dh)
    v = v.reshape(B * H, T, Dh)
    scale = float(Dh // H) ** -0.5
    attn = jnp.einsum("bqd,bkd->bqk", q, k, precision=hp) * scale
    attn = jax.nn.softmax(attn, axis=2)
    ctx = jnp.einsum("bqk,bkd->bqd", attn, v, precision=hp).reshape(B, T, D)
    y = jnp.einsum("btd,de->bte", ctx, wf, precision=hp) + bf
    x = query + y
    mean = x.mean(axis=-1, keepdims=True)
    var = ((x - mean) ** 2).mean(axis=-1, keepdims=True)
    out = gamma * (x - mean) / jnp.sqrt(var + 1e-5) + beta
    return out, attn


if __name__ == "__main__":
    # Small shapes, but model_dim lane-dense (multiple of 128).
    B, T, D, H = 2, 8, 128, 8            # dim_per_head = 16, scale = (16//8)**-0.5
    root = jax.random.PRNGKey(0)
    ks = jax.random.split(root, 11)

    query = jax.random.normal(ks[0], (B, T, D), dtype=jnp.float32)
    key_in = jax.random.normal(ks[1], (B, T, D), dtype=jnp.float32)
    value = jax.random.normal(ks[2], (B, T, D), dtype=jnp.float32)

    wscale = D ** -0.5
    wq = jax.random.normal(ks[3], (D, D), jnp.float32) * wscale
    wk = jax.random.normal(ks[4], (D, D), jnp.float32) * wscale
    wv = jax.random.normal(ks[5], (D, D), jnp.float32) * wscale
    wf = jax.random.normal(ks[6], (D, D), jnp.float32) * wscale
    bq = jax.random.normal(ks[7], (1, D), jnp.float32) * 0.02
    bk = jax.random.normal(ks[8], (1, D), jnp.float32) * 0.02
    bv = jax.random.normal(ks[9], (1, D), jnp.float32) * 0.02
    bf = jax.random.normal(ks[10], (1, D), jnp.float32) * 0.02
    gamma = jnp.ones((1, D), jnp.float32)     # LayerNorm init (weight=1, bias=0)
    beta = jnp.zeros((1, D), jnp.float32)

    out, attn = multi_head_attention(query, key_in, value,
                                     wq, bq, wk, bk, wv, bv, wf, bf, gamma, beta,
                                     num_heads=H)
    out = jax.block_until_ready(out)
    attn = jax.block_until_ready(attn)

    ref_out, ref_attn = _reference(query, key_in, value,
                                   wq, bq, wk, bk, wv, bv, wf, bf, gamma, beta, H)

    assert out.shape == (B, T, D) and attn.shape == (B * H, T, T)
    assert bool(jnp.allclose(attn, ref_attn, atol=2e-3, rtol=2e-3)), "attn mismatch"
    assert bool(jnp.allclose(out, ref_out, atol=2e-3, rtol=2e-3)), "output mismatch"
    print("KERNEL_OK")
</pallas_src>

<mosaic_0001>
module attributes {stable_mosaic.version = 11 : i64} {
  func.func @_qkv_proj_kernel(%arg0: i32, %arg1: memref<1x8x128xf32, #tpu.memory_space<vmem>>, %arg2: memref<1x8x128xf32, #tpu.memory_space<vmem>>, %arg3: memref<1x8x128xf32, #tpu.memory_space<vmem>>, %arg4: memref<128x128xf32, #tpu.memory_space<vmem>>, %arg5: memref<128x128xf32, #tpu.memory_space<vmem>>, %arg6: memref<128x128xf32, #tpu.memory_space<vmem>>, %arg7: memref<1x128xf32, #tpu.memory_space<vmem>>, %arg8: memref<1x128xf32, #tpu.memory_space<vmem>>, %arg9: memref<1x128xf32, #tpu.memory_space<vmem>>, %arg10: memref<1x8x128xf32, #tpu.memory_space<vmem>>, %arg11: memref<1x8x128xf32, #tpu.memory_space<vmem>>, %arg12: memref<1x8x128xf32, #tpu.memory_space<vmem>>) attributes {dimension_semantics = [#tpu.dimension_semantics<parallel>], iteration_bounds = array<i64: 2>, scalar_prefetch = 0 : i64, scratch_operands = 0 : i64, tpu.core_type = #tpu.core_type<tc>, window_params = [{transform_indices = @transform_0, window_bounds = array<i64: 1, 8, 128>}, {transform_indices = @transform_1, window_bounds = array<i64: 1, 8, 128>}, {transform_indices = @transform_2, window_bounds = array<i64: 1, 8, 128>}, {pipeline_mode = #tpu.pipeline_mode<synchronous>, transform_indices = @transform_3, window_bounds = array<i64: 128, 128>}, {pipeline_mode = #tpu.pipeline_mode<synchronous>, transform_indices = @transform_4, window_bounds = array<i64: 128, 128>}, {pipeline_mode = #tpu.pipeline_mode<synchronous>, transform_indices = @transform_5, window_bounds = array<i64: 128, 128>}, {pipeline_mode = #tpu.pipeline_mode<synchronous>, transform_indices = @transform_6, window_bounds = array<i64: 1, 128>}, {pipeline_mode = #tpu.pipeline_mode<synchronous>, transform_indices = @transform_7, window_bounds = array<i64: 1, 128>}, {pipeline_mode = #tpu.pipeline_mode<synchronous>, transform_indices = @transform_8, window_bounds = array<i64: 1, 128>}, {transform_indices = @transform_9, window_bounds = array<i64: 1, 8, 128>}, {transform_indices = @transform_10, window_bounds = array<i64: 1, 8, 128>}, {transform_indices = @transform_11, window_bounds = array<i64: 1, 8, 128>}]} {
    %c0 = arith.constant 0 : index
    %c0_0 = arith.constant 0 : index
    %c0_1 = arith.constant 0 : index
    %0 = vector.load %arg1[%c0, %c0_0, %c0_1] : memref<1x8x128xf32, #tpu.memory_space<vmem>>, vector<1x8x128xf32>
    %1 = vector.shape_cast %0 : vector<1x8x128xf32> to vector<8x128xf32>
    %c0_2 = arith.constant 0 : index
    %c0_3 = arith.constant 0 : index
    %2 = vector.load %arg4[%c0_2, %c0_3] : memref<128x128xf32, #tpu.memory_space<vmem>>, vector<128x128xf32>
    %cst = arith.constant dense<0.000000e+00> : vector<8x128xf32>
    %3 = tpu.matmul %1, %2, %cst {dimension_numbers = #tpu.dot_dimension_numbers<[1], [0], [0], [1], [0, 0, 1, 1], [], []>, precision = #tpu.contract_precision<fp32>} : vector<8x128xf32>, vector<128x128xf32>, vector<8x128xf32> -> vector<8x128xf32>
    %c0_4 = arith.constant 0 : index
    %c0_5 = arith.constant 0 : index
    %4 = vector.load %arg7[%c0_4, %c0_5] : memref<1x128xf32, #tpu.memory_space<vmem>>, vector<1x128xf32>
    %5 = vector.broadcast %4 : vector<1x128xf32> to vector<8x128xf32>
    %6 = arith.addf %3, %5 : vector<8x128xf32>
    %c0_6 = arith.constant 0 : index
    %c0_7 = arith.constant 0 : index
    %c0_8 = arith.constant 0 : index
    %7 = vector.load %arg10[%c0_6, %c0_7, %c0_8] : memref<1x8x128xf32, #tpu.memory_space<vmem>>, vector<1x8x128xf32>
    %8 = vector.shape_cast %7 : vector<1x8x128xf32> to vector<8x128xf32>
    %9 = vector.shape_cast %6 : vector<8x128xf32> to vector<1x8x128xf32>
    tpu.vector_store %arg10[%c0_6, %c0_7, %c0_8], %9 {strides = array<i32>} : memref<1x8x128xf32, #tpu.memory_space<vmem>>, vector<1x8x128xf32>,
    %c0_9 = arith.constant 0 : index
    %c0_10 = arith.constant 0 : index
    %c0_11 = arith.constant 0 : index
    %10 = vector.load %arg2[%c0_9, %c0_10, %c0_11] : memref<1x8x128xf32, #tpu.memory_space<vmem>>, vector<1x8x128xf32>
    %11 = vector.shape_cast %10 : vector<1x8x128xf32> to vector<8x128xf32>
    %c0_12 = arith.constant 0 : index
    %c0_13 = arith.constant 0 : index
    %12 = vector.load %arg5[%c0_12, %c0_13] : memref<128x128xf32, #tpu.memory_space<vmem>>, vector<128x128xf32>
    %cst_14 = arith.constant dense<0.000000e+00> : vector<8x128xf32>
    %13 = tpu.matmul %11, %12, %cst_14 {dimension_numbers = #tpu.dot_dimension_numbers<[1], [0], [0], [1], [0, 0, 1, 1], [], []>, precision = #tpu.contract_precision<fp32>} : vector<8x128xf32>, vector<128x128xf32>, vector<8x128xf32> -> vector<8x128xf32>
    %c0_15 = arith.constant 0 : index
    %c0_16 = arith.constant 0 : index
    %14 = vector.load %arg8[%c0_15, %c0_16] : memref<1x128xf32, #tpu.memory_space<vmem>>, vector<1x128xf32>
    %15 = vector.broadcast %14 : vector<1x128xf32> to vector<8x128xf32>
    %16 = arith.addf %13, %15 : vector<8x128xf32>
    %c0_17 = arith.constant 0 : index
    %c0_18 = arith.constant 0 : index
    %c0_19 = arith.constant 0 : index
    %17 = vector.load %arg11[%c0_17, %c0_18, %c0_19] : memref<1x8x128xf32, #tpu.memory_space<vmem>>, vector<1x8x128xf32>
    %18 = vector.shape_cast %17 : vector<1x8x128xf32> to vector<8x128xf32>
    %19 = vector.shape_cast %16 : vector<8x128xf32> to vector<1x8x128xf32>
    tpu.vector_store %arg11[%c0_17, %c0_18, %c0_19], %19 {strides = array<i32>} : memref<1x8x128xf32, #tpu.memory_space<vmem>>, vector<1x8x128xf32>,
    %c0_20 = arith.constant 0 : index
    %c0_21 = arith.constant 0 : index
    %c0_22 = arith.constant 0 : index
    %20 = vector.load %arg3[%c0_20, %c0_21, %c0_22] : memref<1x8x128xf32, #tpu.memory_space<vmem>>, vector<1x8x128xf32>
    %21 = vector.shape_cast %20 : vector<1x8x128xf32> to vector<8x128xf32>
    %c0_23 = arith.constant 0 : index
    %c0_24 = arith.constant 0 : index
    %22 = vector.load %arg6[%c0_23, %c0_24] : memref<128x128xf32, #tpu.memory_space<vmem>>, vector<128x128xf32>
    %cst_25 = arith.constant dense<0.000000e+00> : vector<8x128xf32>
    %23 = tpu.matmul %21, %22, %cst_25 {dimension_numbers = #tpu.dot_dimension_numbers<[1], [0], [0], [1], [0, 0, 1, 1], [], []>, precision = #tpu.contract_precision<fp32>} : vector<8x128xf32>, vector<128x128xf32>, vector<8x128xf32> -> vector<8x128xf32>
    %c0_26 = arith.constant 0 : index
    %c0_27 = arith.constant 0 : index
    %24 = vector.load %arg9[%c0_26, %c0_27] : memref<1x128xf32, #tpu.memory_space<vmem>>, vector<1x128xf32>
    %25 = vector.broadcast %24 : vector<1x128xf32> to vector<8x128xf32>
    %26 = arith.addf %23, %25 : vector<8x128xf32>
    %c0_28 = arith.constant 0 : index
    %c0_29 = arith.constant 0 : index
    %c0_30 = arith.constant 0 : index
    %27 = vector.load %arg12[%c0_28, %c0_29, %c0_30] : memref<1x8x128xf32, #tpu.memory_space<vmem>>, vector<1x8x128xf32>
    %28 = vector.shape_cast %27 : vector<1x8x128xf32> to vector<8x128xf32>
    %29 = vector.shape_cast %26 : vector<8x128xf32> to vector<1x8x128xf32>
    tpu.vector_store %arg12[%c0_28, %c0_29, %c0_30], %29 {strides = array<i32>} : memref<1x8x128xf32, #tpu.memory_space<vmem>>, vector<1x8x128xf32>,
    return
  }
  func.func @transform_0(%arg0: i32) -> (i32, i32, i32) {
    %c0_i32 = arith.constant 0 : i32
    %c0_i32_0 = arith.constant 0 : i32
    %c0_i32_1 = arith.constant 0 : i32
    return %arg0, %c0_i32, %c0_i32_0 : i32, i32, i32
  }
  func.func @transform_1(%arg0: i32) -> (i32, i32, i32) {
    %c0_i32 = arith.constant 0 : i32
    %c0_i32_0 = arith.constant 0 : i32
    %c0_i32_1 = arith.constant 0 : i32
    return %arg0, %c0_i32, %c0_i32_0 : i32, i32, i32
  }
  func.func @transform_2(%arg0: i32) -> (i32, i32, i32) {
    %c0_i32 = arith.constant 0 : i32
    %c0_i32_0 = arith.constant 0 : i32
    %c0_i32_1 = arith.constant 0 : i32
    return %arg0, %c0_i32, %c0_i32_0 : i32, i32, i32
  }
  func.func @transform_3(%arg0: i32) -> (i32, i32) {
    %c0_i32 = arith.constant 0 : i32
    %c0_i32_0 = arith.constant 0 : i32
    %c0_i32_1 = arith.constant 0 : i32
    return %c0_i32, %c0_i32_0 : i32, i32
  }
  func.func @transform_4(%arg0: i32) -> (i32, i32) {
    %c0_i32 = arith.constant 0 : i32
    %c0_i32_0 = arith.constant 0 : i32
    %c0_i32_1 = arith.constant 0 : i32
    return %c0_i32, %c0_i32_0 : i32, i32
  }
  func.func @transform_5(%arg0: i32) -> (i32, i32) {
    %c0_i32 = arith.constant 0 : i32
    %c0_i32_0 = arith.constant 0 : i32
    %c0_i32_1 = arith.constant 0 : i32
    return %c0_i32, %c0_i32_0 : i32, i32
  }
  func.func @transform_6(%arg0: i32) -> (i32, i32) {
    %c0_i32 = arith.constant 0 : i32
    %c0_i32_0 = arith.constant 0 : i32
    %c0_i32_1 = arith.constant 0 : i32
    return %c0_i32, %c0_i32_0 : i32, i32
  }
  func.func @transform_7(%arg0: i32) -> (i32, i32) {
    %c0_i32 = arith.constant 0 : i32
    %c0_i32_0 = arith.constant 0 : i32
    %c0_i32_1 = arith.constant 0 : i32
    return %c0_i32, %c0_i32_0 : i32, i32
  }
  func.func @transform_8(%arg0: i32) -> (i32, i32) {
    %c0_i32 = arith.constant 0 : i32
    %c0_i32_0 = arith.constant 0 : i32
    %c0_i32_1 = arith.constant 0 : i32
    return %c0_i32, %c0_i32_0 : i32, i32
  }
  func.func @transform_9(%arg0: i32) -> (i32, i32, i32) {
    %c0_i32 = arith.constant 0 : i32
    %c0_i32_0 = arith.constant 0 : i32
    %c0_i32_1 = arith.constant 0 : i32
    return %arg0, %c0_i32, %c0_i32_0 : i32, i32, i32
  }
  func.func @transform_10(%arg0: i32) -> (i32, i32, i32) {
    %c0_i32 = arith.constant 0 : i32
    %c0_i32_0 = arith.constant 0 : i32
    %c0_i32_1 = arith.constant 0 : i32
    return %arg0, %c0_i32, %c0_i32_0 : i32, i32, i32
  }
  func.func @transform_11(%arg0: i32) -> (i32, i32, i32) {
    %c0_i32 = arith.constant 0 : i32
    %c0_i32_0 = arith.constant 0 : i32
    %c0_i32_1 = arith.constant 0 : i32
    return %arg0, %c0_i32, %c0_i32_0 : i32, i32, i32
  }
}

module attributes {stable_mosaic.version = 11 : i64} {
  func.func @_sdpa_kernel(%arg0: i32, %arg1: memref<1x8x16xf32, #tpu.memory_space<vmem>>, %arg2: memref<1x8x16xf32, #tpu.memory_space<vmem>>, %arg3: memref<1x8x16xf32, #tpu.memory_space<vmem>>, %arg4: memref<1x8x16xf32, #tpu.memory_space<vmem>>, %arg5: memref<1x8x8xf32, #tpu.memory_space<vmem>>) attributes {dimension_semantics = [#tpu.dimension_semantics<parallel>], iteration_bounds = array<i64: 16>, scalar_prefetch = 0 : i64, scratch_operands = 0 : i64, tpu.core_type = #tpu.core_type<tc>, window_params = [{transform_indices = @transform_0, window_bounds = array<i64: 1, 8, 16>}, {transform_indices = @transform_1, window_bounds = array<i64: 1, 8, 16>}, {transform_indices = @transform_2, window_bounds = array<i64: 1, 8, 16>}, {transform_indices = @transform_3, window_bounds = array<i64: 1, 8, 16>}, {transform_indices = @transform_4, window_bounds = array<i64: 1, 8, 8>}]} {
    %c0 = arith.constant 0 : index
    %c0_0 = arith.constant 0 : index
    %c0_1 = arith.constant 0 : index
    %0 = vector.load %arg1[%c0, %c0_0, %c0_1] : memref<1x8x16xf32, #tpu.memory_space<vmem>>, vector<1x8x16xf32>
    %1 = vector.shape_cast %0 : vector<1x8x16xf32> to vector<8x16xf32>
    %c0_2 = arith.constant 0 : index
    %c0_3 = arith.constant 0 : index
    %c0_4 = arith.constant 0 : index
    %2 = vector.load %arg2[%c0_2, %c0_3, %c0_4] : memref<1x8x16xf32, #tpu.memory_space<vmem>>, vector<1x8x16xf32>
    %3 = vector.shape_cast %2 : vector<1x8x16xf32> to vector<8x16xf32>
    %c0_5 = arith.constant 0 : index
    %c0_6 = arith.constant 0 : index
    %c0_7 = arith.constant 0 : index
    %4 = vector.load %arg3[%c0_5, %c0_6, %c0_7] : memref<1x8x16xf32, #tpu.memory_space<vmem>>, vector<1x8x16xf32>
    %5 = vector.shape_cast %4 : vector<1x8x16xf32> to vector<8x16xf32>
    %cst = arith.constant dense<0.000000e+00> : vector<8x8xf32>
    %6 = tpu.matmul %1, %3, %cst {dimension_numbers = #tpu.dot_dimension_numbers<[1], [1], [0], [0], [0, 0, 1, 0], [], []>, precision = #tpu.contract_precision<fp32>} : vector<8x16xf32>, vector<8x16xf32>, vector<8x8xf32> -> vector<8x8xf32>
    %cst_8 = arith.constant 0.707106769 : f32
    %7 = vector.broadcast %cst_8 : f32 to vector<8x8xf32>
    %8 = arith.mulf %6, %7 : vector<8x8xf32>
    %cst_9 = arith.constant dense<0xFF800000> : vector<8xf32>
    %9 = vector.multi_reduction <maximumf>, %8, %cst_9 [1] : vector<8x8xf32> to vector<8xf32>
    %10 = vector.shape_cast %9 : vector<8xf32> to vector<8x1xf32>
    %11 = vector.broadcast %10 : vector<8x1xf32> to vector<8x8xf32>
    %12 = arith.subf %8, %11 : vector<8x8xf32>
    %13 = math.exp %12 : vector<8x8xf32>
    %cst_10 = arith.constant dense<0.000000e+00> : vector<8xf32>
    %14 = vector.multi_reduction <add>, %13, %cst_10 [1] : vector<8x8xf32> to vector<8xf32>
    %15 = vector.shape_cast %14 : vector<8xf32> to vector<8x1xf32>
    %16 = vector.broadcast %15 : vector<8x1xf32> to vector<8x8xf32>
    %17 = arith.divf %13, %16 : vector<8x8xf32>
    %cst_11 = arith.constant dense<0.000000e+00> : vector<8x16xf32>
    %18 = tpu.matmul %17, %5, %cst_11 {dimension_numbers = #tpu.dot_dimension_numbers<[1], [0], [0], [1], [0, 0, 1, 1], [], []>, precision = #tpu.contract_precision<fp32>} : vector<8x8xf32>, vector<8x16xf32>, vector<8x16xf32> -> vector<8x16xf32>
    %c0_12 = arith.constant 0 : index
    %c0_13 = arith.constant 0 : index
    %c0_14 = arith.constant 0 : index
    %19 = vector.load %arg5[%c0_12, %c0_13, %c0_14] : memref<1x8x8xf32, #tpu.memory_space<vmem>>, vector<1x8x8xf32>
    %20 = vector.shape_cast %19 : vector<1x8x8xf32> to vector<8x8xf32>
    %21 = vector.shape_cast %17 : vector<8x8xf32> to vector<1x8x8xf32>
    tpu.vector_store %arg5[%c0_12, %c0_13, %c0_14], %21 {strides = array<i32>} : memref<1x8x8xf32, #tpu.memory_space<vmem>>, vector<1x8x8xf32>,
    %c0_15 = arith.constant 0 : index
    %c0_16 = arith.constant 0 : index
    %c0_17 = arith.constant 0 : index
    %22 = vector.load %arg4[%c0_15, %c0_16, %c0_17] : memref<1x8x16xf32, #tpu.memory_space<vmem>>, vector<1x8x16xf32>
    %23 = vector.shape_cast %22 : vector<1x8x16xf32> to vector<8x16xf32>
    %24 = vector.shape_cast %18 : vector<8x16xf32> to vector<1x8x16xf32>
    tpu.vector_store %arg4[%c0_15, %c0_16, %c0_17], %24 {strides = array<i32>} : memref<1x8x16xf32, #tpu.memory_space<vmem>>, vector<1x8x16xf32>,
    return
  }
  func.func @transform_0(%arg0: i32) -> (i32, i32, i32) {
    %c0_i32 = arith.constant 0 : i32
    %c0_i32_0 = arith.constant 0 : i32
    %c0_i32_1 = arith.constant 0 : i32
    return %arg0, %c0_i32, %c0_i32_0 : i32, i32, i32
  }
  func.func @transform_1(%arg0: i32) -> (i32, i32, i32) {
    %c0_i32 = arith.constant 0 : i32
    %c0_i32_0 = arith.constant 0 : i32
    %c0_i32_1 = arith.constant 0 : i32
    return %arg0, %c0_i32, %c0_i32_0 : i32, i32, i32
  }
  func.func @transform_2(%arg0: i32) -> (i32, i32, i32) {
    %c0_i32 = arith.constant 0 : i32
    %c0_i32_0 = arith.constant 0 : i32
    %c0_i32_1 = arith.constant 0 : i32
    return %arg0, %c0_i32, %c0_i32_0 : i32, i32, i32
  }
  func.func @transform_3(%arg0: i32) -> (i32, i32, i32) {
    %c0_i32 = arith.constant 0 : i32
    %c0_i32_0 = arith.constant 0 : i32
    %c0_i32_1 = arith.constant 0 : i32
    return %arg0, %c0_i32, %c0_i32_0 : i32, i32, i32
  }
  func.func @transform_4(%arg0: i32) -> (i32, i32, i32) {
    %c0_i32 = arith.constant 0 : i32
    %c0_i32_0 = arith.constant 0 : i32
    %c0_i32_1 = arith.constant 0 : i32
    return %arg0, %c0_i32, %c0_i32_0 : i32, i32, i32
  }
}

module attributes {stable_mosaic.version = 11 : i64} {
  func.func @_final_kernel(%arg0: i32, %arg1: memref<1x8x128xf32, #tpu.memory_space<vmem>>, %arg2: memref<1x8x128xf32, #tpu.memory_space<vmem>>, %arg3: memref<128x128xf32, #tpu.memory_space<vmem>>, %arg4: memref<1x128xf32, #tpu.memory_space<vmem>>, %arg5: memref<1x128xf32, #tpu.memory_space<vmem>>, %arg6: memref<1x128xf32, #tpu.memory_space<vmem>>, %arg7: memref<1x8x128xf32, #tpu.memory_space<vmem>>) attributes {dimension_semantics = [#tpu.dimension_semantics<parallel>], iteration_bounds = array<i64: 2>, scalar_prefetch = 0 : i64, scratch_operands = 0 : i64, tpu.core_type = #tpu.core_type<tc>, window_params = [{transform_indices = @transform_0, window_bounds = array<i64: 1, 8, 128>}, {transform_indices = @transform_1, window_bounds = array<i64: 1, 8, 128>}, {pipeline_mode = #tpu.pipeline_mode<synchronous>, transform_indices = @transform_2, window_bounds = array<i64: 128, 128>}, {pipeline_mode = #tpu.pipeline_mode<synchronous>, transform_indices = @transform_3, window_bounds = array<i64: 1, 128>}, {pipeline_mode = #tpu.pipeline_mode<synchronous>, transform_indices = @transform_4, window_bounds = array<i64: 1, 128>}, {pipeline_mode = #tpu.pipeline_mode<synchronous>, transform_indices = @transform_5, window_bounds = array<i64: 1, 128>}, {transform_indices = @transform_6, window_bounds = array<i64: 1, 8, 128>}]} {
    %c0 = arith.constant 0 : index
    %c0_0 = arith.constant 0 : index
    %c0_1 = arith.constant 0 : index
    %0 = vector.load %arg1[%c0, %c0_0, %c0_1] : memref<1x8x128xf32, #tpu.memory_space<vmem>>, vector<1x8x128xf32>
    %1 = vector.shape_cast %0 : vector<1x8x128xf32> to vector<8x128xf32>
    %c0_2 = arith.constant 0 : index
    %c0_3 = arith.constant 0 : index
    %c0_4 = arith.constant 0 : index
    %2 = vector.load %arg2[%c0_2, %c0_3, %c0_4] : memref<1x8x128xf32, #tpu.memory_space<vmem>>, vector<1x8x128xf32>
    %3 = vector.shape_cast %2 : vector<1x8x128xf32> to vector<8x128xf32>
    %c0_5 = arith.constant 0 : index
    %c0_6 = arith.constant 0 : index
    %4 = vector.load %arg3[%c0_5, %c0_6] : memref<128x128xf32, #tpu.memory_space<vmem>>, vector<128x128xf32>
    %cst = arith.constant dense<0.000000e+00> : vector<8x128xf32>
    %5 = tpu.matmul %3, %4, %cst {dimension_numbers = #tpu.dot_dimension_numbers<[1], [0], [0], [1], [0, 0, 1, 1], [], []>, precision = #tpu.contract_precision<fp32>} : vector<8x128xf32>, vector<128x128xf32>, vector<8x128xf32> -> vector<8x128xf32>
    %c0_7 = arith.constant 0 : index
    %c0_8 = arith.constant 0 : index
    %6 = vector.load %arg4[%c0_7, %c0_8] : memref<1x128xf32, #tpu.memory_space<vmem>>, vector<1x128xf32>
    %7 = vector.broadcast %6 : vector<1x128xf32> to vector<8x128xf32>
    %8 = arith.addf %5, %7 : vector<8x128xf32>
    %9 = arith.addf %1, %8 : vector<8x128xf32>
    %cst_9 = arith.constant dense<0.000000e+00> : vector<8xf32>
    %10 = vector.multi_reduction <add>, %9, %cst_9 [1] : vector<8x128xf32> to vector<8xf32>
    %11 = vector.shape_cast %10 : vector<8xf32> to vector<8x1xf32>
    %cst_10 = arith.constant 1.280000e+02 : f32
    %12 = vector.broadcast %cst_10 : f32 to vector<8x1xf32>
    %13 = arith.divf %11, %12 : vector<8x1xf32>
    %14 = vector.broadcast %13 : vector<8x1xf32> to vector<8x128xf32>
    %15 = arith.subf %9, %14 : vector<8x128xf32>
    %16 = arith.mulf %15, %15 : vector<8x128xf32>
    %cst_11 = arith.constant dense<0.000000e+00> : vector<8xf32>
    %17 = vector.multi_reduction <add>, %16, %cst_11 [1] : vector<8x128xf32> to vector<8xf32>
    %18 = vector.shape_cast %17 : vector<8xf32> to vector<8x1xf32>
    %cst_12 = arith.constant 1.280000e+02 : f32
    %19 = vector.broadcast %cst_12 : f32 to vector<8x1xf32>
    %20 = arith.divf %18, %19 : vector<8x1xf32>
    %cst_13 = arith.constant 9.99999974E-6 : f32
    %21 = vector.broadcast %cst_13 : f32 to vector<8x1xf32>
    %22 = arith.addf %20, %21 : vector<8x1xf32>
    %23 = math.rsqrt %22 : vector<8x1xf32>
    %24 = vector.broadcast %23 : vector<8x1xf32> to vector<8x128xf32>
    %25 = arith.mulf %15, %24 : vector<8x128xf32>
    %c0_14 = arith.constant 0 : index
    %c0_15 = arith.constant 0 : index
    %26 = vector.load %arg5[%c0_14, %c0_15] : memref<1x128xf32, #tpu.memory_space<vmem>>, vector<1x128xf32>
    %27 = vector.broadcast %26 : vector<1x128xf32> to vector<8x128xf32>
    %28 = arith.mulf %27, %25 : vector<8x128xf32>
    %c0_16 = arith.constant 0 : index
    %c0_17 = arith.constant 0 : index
    %29 = vector.load %arg6[%c0_16, %c0_17] : memref<1x128xf32, #tpu.memory_space<vmem>>, vector<1x128xf32>
    %30 = vector.broadcast %29 : vector<1x128xf32> to vector<8x128xf32>
    %31 = arith.addf %28, %30 : vector<8x128xf32>
    %c0_18 = arith.constant 0 : index
    %c0_19 = arith.constant 0 : index
    %c0_20 = arith.constant 0 : index
    %32 = vector.load %arg7[%c0_18, %c0_19, %c0_20] : memref<1x8x128xf32, #tpu.memory_space<vmem>>, vector<1x8x128xf32>
    %33 = vector.shape_cast %32 : vector<1x8x128xf32> to vector<8x128xf32>
    %34 = vector.shape_cast %31 : vector<8x128xf32> to vector<1x8x128xf32>
    tpu.vector_store %arg7[%c0_18, %c0_19, %c0_20], %34 {strides = array<i32>} : memref<1x8x128xf32, #tpu.memory_space<vmem>>, vector<1x8x128xf32>,
    return
  }
  func.func @transform_0(%arg0: i32) -> (i32, i32, i32) {
    %c0_i32 = arith.constant 0 : i32
    %c0_i32_0 = arith.constant 0 : i32
    %c0_i32_1 = arith.constant 0 : i32
    return %arg0, %c0_i32, %c0_i32_0 : i32, i32, i32
  }
  func.func @transform_1(%arg0: i32) -> (i32, i32, i32) {
    %c0_i32 = arith.constant 0 : i32
    %c0_i32_0 = arith.constant 0 : i32
    %c0_i32_1 = arith.constant 0 : i32
    return %arg0, %c0_i32, %c0_i32_0 : i32, i32, i32
  }
  func.func @transform_2(%arg0: i32) -> (i32, i32) {
    %c0_i32 = arith.constant 0 : i32
    %c0_i32_0 = arith.constant 0 : i32
    %c0_i32_1 = arith.constant 0 : i32
    return %c0_i32, %c0_i32_0 : i32, i32
  }
  func.func @transform_3(%arg0: i32) -> (i32, i32) {
    %c0_i32 = arith.constant 0 : i32
    %c0_i32_0 = arith.constant 0 : i32
    %c0_i32_1 = arith.constant 0 : i32
    return %c0_i32, %c0_i32_0 : i32, i32
  }
  func.func @transform_4(%arg0: i32) -> (i32, i32) {
    %c0_i32 = arith.constant 0 : i32
    %c0_i32_0 = arith.constant 0 : i32
    %c0_i32_1 = arith.constant 0 : i32
    return %c0_i32, %c0_i32_0 : i32, i32
  }
  func.func @transform_5(%arg0: i32) -> (i32, i32) {
    %c0_i32 = arith.constant 0 : i32
    %c0_i32_0 = arith.constant 0 : i32
    %c0_i32_1 = arith.constant 0 : i32
    return %c0_i32, %c0_i32_0 : i32, i32
  }
  func.func @transform_6(%arg0: i32) -> (i32, i32, i32) {
    %c0_i32 = arith.constant 0 : i32
    %c0_i32_0 = arith.constant 0 : i32
    %c0_i32_1 = arith.constant 0 : i32
    return %arg0, %c0_i32, %c0_i32_0 : i32, i32, i32
  }
}

</mosaic_0001>

<llo_original>
// kernel: multi_head_attention.5
$region0: #{multi_head_attention.5}
  #allocation0 [shape = 'u32[]', space=smem, size = 0x4, offset = 0x4, fixed_abs, tag = 'smem constant byte address 0x4 - core index']
  #allocation1 [shape = 'u32[144,128]{1,0:T(1,128)}', space=vmem, size = 0x12000, scoped, tag = 'internal scratch']
  %s0 = inlined_call_operand.vmem [shape: f32[2,8,128], index: 0, kind: input, shape index: {}]
  %s1 = inlined_call_operand.vmem [shape: f32[2,8,128], index: 1, kind: input, shape index: {}]
  %s2 = inlined_call_operand.vmem [shape: f32[128,128], index: 2, kind: input, shape index: {}]
  %s3 = inlined_call_operand.vmem [shape: f32[1,128], index: 3, kind: input, shape index: {}]
  %s4 = inlined_call_operand.vmem [shape: f32[1,128], index: 4, kind: input, shape index: {}]
  %s5 = inlined_call_operand.vmem [shape: f32[1,128], index: 5, kind: input, shape index: {}]
  %s6 = inlined_call_operand.hbm [shape: f32[2,8,128], index: 6, kind: output, shape index: {}]
  %s7 = sld [smem:[#allocation0]]
  $region57: #{multi_head_attention.5} parent=0
    _
  %s9 = ssub.s32 1, %s7
  %s10 = scalar_select 0, %s9, %s7
  $region1: #{multi_head_attention.5} parent=0
    #allocation2 [shape = 'u8[8192]{0}', space=vmem, size = 0x2000, scoped, tag = 'output window, operand 0']
    #allocation3 [shape = 's32[2]{0}', space=sflag, size = 0x8, scoped, tag = 'scoped memory for multi_head_attention.5']
    %11 = vsyncpa [#allocation3], 0
    %s12 = scalar_lea.sflag [#allocation3], 1
    %13 = vsyncpa %s12, 0
    loop: start=0, step=1, limit=4
    $region2: #{multi_head_attention.5} parent=1 // loop_pre_header
      _
    $region3: #{multi_head_attention.5} parent=1 // loop_header
      %s15 = sphi 0, %s19
      %p16 = scmp.ge.s32.totalorder %s15, 4
      %s25 = sphi 0, %s27
      %s28 = sphi 0, %s25
      %s29 = sphi 0, %s28
      %s45 = sphi 0, %s29
      %s51 = sphi 0, %s53
      %s54 = sphi 0, %s51
      %s55 = sphi 0, %s54
      %s71 = sphi 0, %s55
      %s75 = sphi 0, %s75
      %s77 = sphi 0, %s75
      %s78 = sphi 0, %s77
      %s92 = sphi 0, %s78
      %s96 = sphi 0, %s96
      %s98 = sphi 0, %s96
      %s99 = sphi 0, %s98
      %s113 = sphi 0, %s99
      %s117 = sphi 0, %s117
      %s119 = sphi 0, %s117
      %s120 = sphi 0, %s119
      %s134 = sphi 0, %s120
      %s138 = sphi 0, %s138
      %s140 = sphi 0, %s138
      %s141 = sphi 0, %s140
      %s155 = sphi 0, %s141
      %s161 = sphi 0, %s163
      %s164 = sphi 0, %s161
      %s165 = sphi 0, %s164
      %s181 = sphi 0, %s165
    $region4: #{multi_head_attention.5} parent=1 // loop_header_branch
      %18 = sbr.rel (%p16) target = $region8
    $region5: #{multi_head_attention.5} parent=1 // loop_body
      %s20 = ssub.s32 %s15, 1
      %s21 = ssub.s32 %s15, 2
      %s22 = sadd.s32 %s15, 1
      %s23 = ssub.s32 %s15, %s22
      %p24 = scmp.eq.s32.totalorder %s23, 0
      %s26 = sadd.s32 %s25, 1
      %s27 = scalar_select %p24, %s25, %s26
      %p30 = pneg %p24
      %p31 = scmp.eq.s32.totalorder %s15, 1
      %p32 = por %p30, %p31
      %p33 = scmp.ne.s32.totalorder %s25, %s28
      %p34 = scmp.eq.s32.totalorder %s15, 0
      %p35 = por %p33, %p34
      %p36 = scmp.ne.s32.totalorder %s25, %s28
      %p37 = scmp.eq.s32.totalorder %s20, 1
      %p38 = por %p36, %p37
      %p39 = scmp.ne.s32.totalorder %s28, %s29
      %p40 = scmp.eq.s32.totalorder %s20, 0
      %p41 = por %p39, %p40
      %p42 = scmp.ne.s32.totalorder %s28, %s29
      %p43 = scmp.eq.s32.totalorder %s21, 1
      %p44 = por %p42, %p43
      %p46 = scmp.ne.s32.totalorder %s29, %s45
      %p47 = scmp.eq.s32.totalorder %s21, 0
      %p48 = por %p46, %p47
      %s49 = ssub.s32 %s15, %s22
      %p50 = scmp.eq.s32.totalorder %s49, 0
      %s52 = sadd.s32 %s51, 1
      %s53 = scalar_select %p50, %s51, %s52
      %p56 = pneg %p50
      %p57 = scmp.eq.s32.totalorder %s15, 1
      %p58 = por %p56, %p57
      %p59 = scmp.ne.s32.totalorder %s51, %s54
      %p60 = scmp.eq.s32.totalorder %s15, 0
      %p61 = por %p59, %p60
      %p62 = scmp.ne.s32.totalorder %s51, %s54
      %p63 = scmp.eq.s32.totalorder %s20, 1
      %p64 = por %p62, %p63
      %p65 = scmp.ne.s32.totalorder %s54, %s55
      %p66 = scmp.eq.s32.totalorder %s20, 0
      %p67 = por %p65, %p66
      %p68 = scmp.ne.s32.totalorder %s54, %s55
      %p69 = scmp.eq.s32.totalorder %s21, 1
      %p70 = por %p68, %p69
      %p72 = scmp.ne.s32.totalorder %s55, %s71
      %p73 = scmp.eq.s32.totalorder %s21, 0
      %p74 = por %p72, %p73
      %s76 = sadd.s32 %s75, 1
      %p79 = scmp.eq.s32.totalorder %s15, 1
      %p80 = scmp.ne.s32.totalorder %s75, %s77
      %p81 = scmp.eq.s32.totalorder %s15, 0
      %p82 = por %p80, %p81
      %p83 = scmp.ne.s32.totalorder %s75, %s77
      %p84 = scmp.eq.s32.totalorder %s20, 1
      %p85 = por %p83, %p84
      %p86 = scmp.ne.s32.totalorder %s77, %s78
      %p87 = scmp.eq.s32.totalorder %s20, 0
      %p88 = por %p86, %p87
      %p89 = scmp.ne.s32.totalorder %s77, %s78
      %p90 = scmp.eq.s32.totalorder %s21, 1
      %p91 = por %p89, %p90
      %p93 = scmp.ne.s32.totalorder %s78, %s92
      %p94 = scmp.eq.s32.totalorder %s21, 0
      %p95 = por %p93, %p94
      %s97 = sadd.s32 %s96, 1
      %p100 = scmp.eq.s32.totalorder %s15, 1
      %p101 = scmp.ne.s32.totalorder %s96, %s98
      %p102 = scmp.eq.s32.totalorder %s15, 0
      %p103 = por %p101, %p102
      %p104 = scmp.ne.s32.totalorder %s96, %s98
      %p105 = scmp.eq.s32.totalorder %s20, 1
      %p106 = por %p104, %p105
      %p107 = scmp.ne.s32.totalorder %s98, %s99
      %p108 = scmp.eq.s32.totalorder %s20, 0
      %p109 = por %p107, %p108
      %p110 = scmp.ne.s32.totalorder %s98, %s99
      %p111 = scmp.eq.s32.totalorder %s21, 1
      %p112 = por %p110, %p111
      %p114 = scmp.ne.s32.totalorder %s99, %s113
      %p115 = scmp.eq.s32.totalorder %s21, 0
      %p116 = por %p114, %p115
      %s118 = sadd.s32 %s117, 1
      %p121 = scmp.eq.s32.totalorder %s15, 1
      %p122 = scmp.ne.s32.totalorder %s117, %s119
      %p123 = scmp.eq.s32.totalorder %s15, 0
      %p124 = por %p122, %p123
      %p125 = scmp.ne.s32.totalorder %s117, %s119
      %p126 = scmp.eq.s32.totalorder %s20, 1
      %p127 = por %p125, %p126
      %p128 = scmp.ne.s32.totalorder %s119, %s120
      %p129 = scmp.eq.s32.totalorder %s20, 0
      %p130 = por %p128, %p129
      %p131 = scmp.ne.s32.totalorder %s119, %s120
      %p132 = scmp.eq.s32.totalorder %s21, 1
      %p133 = por %p131, %p132
      %p135 = scmp.ne.s32.totalorder %s120, %s134
      %p136 = scmp.eq.s32.totalorder %s21, 0
      %p137 = por %p135, %p136
      %s139 = sadd.s32 %s138, 1
      %p142 = scmp.eq.s32.totalorder %s15, 1
      %p143 = scmp.ne.s32.totalorder %s138, %s140
      %p144 = scmp.eq.s32.totalorder %s15, 0
      %p145 = por %p143, %p144
      %p146 = scmp.ne.s32.totalorder %s138, %s140
      %p147 = scmp.eq.s32.totalorder %s20, 1
      %p148 = por %p146, %p147
      %p149 = scmp.ne.s32.totalorder %s140, %s141
      %p150 = scmp.eq.s32.totalorder %s20, 0
      %p151 = por %p149, %p150
      %p152 = scmp.ne.s32.totalorder %s140, %s141
      %p153 = scmp.eq.s32.totalorder %s21, 1
      %p154 = por %p152, %p153
      %p156 = scmp.ne.s32.totalorder %s141, %s155
      %p157 = scmp.eq.s32.totalorder %s21, 0
      %p158 = por %p156, %p157
      %s159 = ssub.s32 %s15, %s22
      %p160 = scmp.eq.s32.totalorder %s159, 0
      %s162 = sadd.s32 %s161, 1
      %s163 = scalar_select %p160, %s161, %s162
      %p166 = pneg %p160
      %p167 = scmp.eq.s32.totalorder %s15, 1
      %p168 = por %p166, %p167
      %p169 = scmp.ne.s32.totalorder %s161, %s164
      %p170 = scmp.eq.s32.totalorder %s15, 0
      %p171 = por %p169, %p170
      %p172 = scmp.ne.s32.totalorder %s161, %s164
      %p173 = scmp.eq.s32.totalorder %s20, 1
      %p174 = por %p172, %p173
      %p175 = scmp.ne.s32.totalorder %s164, %s165
      %p176 = scmp.eq.s32.totalorder %s20, 0
      %p177 = por %p175, %p176
      %p178 = scmp.ne.s32.totalorder %s164, %s165
      %p179 = scmp.eq.s32.totalorder %s21, 1
      %p180 = por %p178, %p179
      %p182 = scmp.ne.s32.totalorder %s165, %s181
      %p183 = scmp.eq.s32.totalorder %s21, 0
      %p184 = por %p182, %p183
      %p185 = scmp.le.s32.totalorder 1, %s15
      %p186 = scmp.lt.s32.totalorder %s15, 3
      %p187 = pnand %p185, %p186
      %p188 = pneg %p187
      // Predicated region
      $region9: #{multi_head_attention.5} parent=5 // pred_check
        _
      $region10: #{multi_head_attention.5} parent=5 // pred_check_branch
        %190 = sbr.rel (%p187) target = $region12
      $region11: #{multi_head_attention.5} parent=5 // pred_region
        %s191 = ssub.s32 %s15, 1
        // Predicated region
        $region13: #{multi_head_attention.5} parent=11 // pred_check
          %p192 = pneg %p88
        $region14: #{multi_head_attention.5} parent=11 // pred_check_branch
          %194 = sbr.rel (%p192) target = $region16
        $region15: #{multi_head_attention.5} parent=11 // pred_region
          _
        $region16: #{multi_head_attention.5} parent=11 // pred_fallthru
          _
        // Predicated region
        $region17: #{multi_head_attention.5} parent=11 // pred_check
          %p195 = pneg %p109
        $region18: #{multi_head_attention.5} parent=11 // pred_check_branch
          %197 = sbr.rel (%p195) target = $region20
        $region19: #{multi_head_attention.5} parent=11 // pred_region
          _
        $region20: #{multi_head_attention.5} parent=11 // pred_fallthru
          _
        // Predicated region
        $region21: #{multi_head_attention.5} parent=11 // pred_check
          %p198 = pneg %p130
        $region22: #{multi_head_attention.5} parent=11 // pred_check_branch
          %200 = sbr.rel (%p198) target = $region24
        $region23: #{multi_head_attention.5} parent=11 // pred_region
          _
        $region24: #{multi_head_attention.5} parent=11 // pred_fallthru
          _
        // Predicated region
        $region25: #{multi_head_attention.5} parent=11 // pred_check
          %p201 = pneg %p151
        $region26: #{multi_head_attention.5} parent=11 // pred_check_branch
          %203 = sbr.rel (%p201) target = $region28
        $region27: #{multi_head_attention.5} parent=11 // pred_region
          _
        $region28: #{multi_head_attention.5} parent=11 // pred_fallthru
          _
      $region12: #{multi_head_attention.5} parent=5 // pred_fallthru
        _
      %p204 = scmp.lt.s32.totalorder %s15, 2
      // Predicated region
      $region29: #{multi_head_attention.5} parent=5 // pred_check
        %p205 = pneg %p204
      $region30: #{multi_head_attention.5} parent=5 // pred_check_branch
        %207 = sbr.rel (%p205) target = $region32
      $region31: #{multi_head_attention.5} parent=5 // pred_region
        // Predicated region
        $region33: #{multi_head_attention.5} parent=31 // pred_check
          %p208 = pneg %p35
        $region34: #{multi_head_attention.5} parent=31 // pred_check_branch
          %210 = sbr.rel (%p208) target = $region36
        $region35: #{multi_head_attention.5} parent=31 // pred_region
          %p211 = scmp.lt.s32.totalorder %s15, 1
          %s212 = scalar_select %p211, %s15, 1
          %s213 = smul.addr %s212, 8
          %s214 = scalar_lea.vmem %s0, %s213
        $region36: #{multi_head_attention.5} parent=31 // pred_fallthru
          _
        // Predicated region
        $region37: #{multi_head_attention.5} parent=31 // pred_check
          %p215 = pneg %p61
        $region38: #{multi_head_attention.5} parent=31 // pred_check_branch
          %217 = sbr.rel (%p215) target = $region40
        $region39: #{multi_head_attention.5} parent=31 // pred_region
          %p218 = scmp.lt.s32.totalorder %s15, 1
          %s219 = scalar_select %p218, %s15, 1
          %s220 = smul.addr %s219, 8
          %s221 = scalar_lea.vmem %s1, %s220
        $region40: #{multi_head_attention.5} parent=31 // pred_fallthru
          _
      $region32: #{multi_head_attention.5} parent=5 // pred_fallthru
        _
      %p222 = scmp.le.s32.totalorder 1, %s15
      %p223 = scmp.lt.s32.totalorder %s15, 3
      %p224 = pnand %p222, %p223
      %p225 = pneg %p224
      // Predicated region
      $region41: #{multi_head_attention.5} parent=5 // pred_check
        _
      $region42: #{multi_head_attention.5} parent=5 // pred_check_branch
        %227 = sbr.rel (%p224) target = $region44
      $region43: #{multi_head_attention.5} parent=5 // pred_region
        %s228 = ssub.s32 %s15, 1
        %p229 = scmp.lt.s32.totalorder %s20, 1
        %s230 = scalar_select %p229, %s20, 1
        %s231 = smul.addr %s230, 8
        %s232 = scalar_lea.vmem %s0, %s231
        %p233 = pneg %p41
        %p234 = pneg %p38
        %p235 = scmp.lt.s32.totalorder %s20, 1
        %s236 = scalar_select %p235, %s20, 1
        %s237 = smul.addr %s236, 8
        %s238 = scalar_lea.vmem %s1, %s237
        %p239 = pneg %p67
        %p240 = pneg %p64
        %p241 = pneg %p88
        %p242 = pneg %p85
        %p243 = pneg %p109
        %p244 = pneg %p106
        %p245 = pneg %p130
        %p246 = pneg %p127
        %p247 = pneg %p151
        %p248 = pneg %p148
        %p249 = pneg %p177
        %p250 = pneg %p174
        %s251 = sand.u32 %s164, 1
        %s252 = scalar_lea.sflag [#allocation3], %s251
        %s253 = sand.u32 %s164, 1
        %s254 = smul.addr %s253, 8
        %s255 = scalar_lea.vmem [#allocation2], %s254
        %p256 = scmp.lt.s32.totalorder %s20, 1
        %s257 = scalar_select %p256, %s20, 1
        %s258 = smul.addr %s257, 8
        %s259 = scalar_lea.vmem %s0, %s258
        %p260 = scmp.lt.s32.totalorder %s20, 1
        %s261 = scalar_select %p260, %s20, 1
        %s262 = smul.addr %s261, 8
        %s263 = scalar_lea.vmem %s1, %s262
        %v264 = vld [vmem:[%s259] sm:$0xff]
        %v265 = vld [vmem:[%s263] sm:$0xff]
        %v266 = vld [vmem:[%s2] sm:$0xff]
        %v267 = vld [vmem:[%s2 + $0x8] sm:$0xff]
        %v268 = vld [vmem:[%s2 + $0x10] sm:$0xff]
        %v269 = vld [vmem:[%s2 + $0x18] sm:$0xff]
        %v270 = vld [vmem:[%s2 + $0x20] sm:$0xff]
        %v271 = vld [vmem:[%s2 + $0x28] sm:$0xff]
        %v272 = vld [vmem:[%s2 + $0x30] sm:$0xff]
        %v273 = vld [vmem:[%s2 + $0x38] sm:$0xff]
        %v274 = vld [vmem:[%s2 + $0x40] sm:$0xff]
        %v275 = vld [vmem:[%s2 + $0x48] sm:$0xff]
        %v276 = vld [vmem:[%s2 + $0x50] sm:$0xff]
        %v277 = vld [vmem:[%s2 + $0x58] sm:$0xff]
        %v278 = vld [vmem:[%s2 + $0x60] sm:$0xff]
        %v279 = vld [vmem:[%s2 + $0x68] sm:$0xff]
        %v280 = vld [vmem:[%s2 + $0x70] sm:$0xff]
        %v281 = vld [vmem:[%s2 + $0x78] sm:$0xff]
        %v282 = vld [vmem:[%s3] sm:$0x1]
        %v284 = vlaneseq
        %v285 = vshrl.u32 %v284, 7
        %v286 = vsub.s32 0, %v285
        %v287 = vrot.slane %v282, %v286
        %289 = vmatprep.subr.mxu0 0.0
        %v290 = vand.u32 %v266, 4294901760
        %291 = vmatpush1.msra.mxu0 %v290
        %292 = vmatprep.subr.mxu0 0.0
        %v293 = vand.u32 %v267, 4294901760
        %294 = vmatpush1.msra.mxu0 %v293
        %295 = vmatprep.subr.mxu0 0.0
        %v296 = vand.u32 %v268, 4294901760
        %297 = vmatpush1.msra.mxu0 %v296
        %298 = vmatprep.subr.mxu0 0.0
        %v299 = vand.u32 %v269, 4294901760
        %300 = vmatpush1.msra.mxu0 %v299
        %301 = vmatprep.subr.mxu0 0.0
        %v302 = vand.u32 %v270, 4294901760
        %303 = vmatpush1.msra.mxu0 %v302
        %304 = vmatprep.subr.mxu0 0.0
        %v305 = vand.u32 %v271, 4294901760
        %306 = vmatpush1.msra.mxu0 %v305
        %307 = vmatprep.subr.mxu0 0.0
        %v308 = vand.u32 %v272, 4294901760
        %309 = vmatpush1.msra.mxu0 %v308
        %310 = vmatprep.subr.mxu0 0.0
        %v311 = vand.u32 %v273, 4294901760
        %312 = vmatpush1.msra.mxu0 %v311
        %313 = vmatprep.subr.mxu0 0.0
        %v314 = vand.u32 %v274, 4294901760
        %315 = vmatpush1.msra.mxu0 %v314
        %316 = vmatprep.subr.mxu0 0.0
        %v317 = vand.u32 %v275, 4294901760
        %318 = vmatpush1.msra.mxu0 %v317
        %319 = vmatprep.subr.mxu0 0.0
        %v320 = vand.u32 %v276, 4294901760
        %321 = vmatpush1.msra.mxu0 %v320
        %322 = vmatprep.subr.mxu0 0.0
        %v323 = vand.u32 %v277, 4294901760
        %324 = vmatpush1.msra.mxu0 %v323
        %325 = vmatprep.subr.mxu0 0.0
        %v326 = vand.u32 %v278, 4294901760
        %327 = vmatpush1.msra.mxu0 %v326
        %328 = vmatprep.subr.mxu0 0.0
        %v329 = vand.u32 %v279, 4294901760
        %330 = vmatpush1.msra.mxu0 %v329
        %331 = vmatprep.subr.mxu0 0.0
        %v332 = vand.u32 %v280, 4294901760
        %333 = vmatpush1.msra.mxu0 %v332
        %334 = vmatprep.subr.mxu0 0.0
        %v335 = vand.u32 %v281, 4294901760
        %336 = vmatpush1.msra.mxu0 %v335
        %337 = vmatprep.subr.mxu0 0.0
        %338 = vmatpush1.msra.mxu0 0.0
        %339 = vmatprep.subr.mxu0 0.0
        %340 = vmatpush1.msra.mxu0 0.0
        %341 = vmatprep.subr.mxu0 0.0
        %342 = vmatpush1.msra.mxu0 0.0
        %343 = vmatprep.subr.mxu0 0.0
        %344 = vmatpush1.msra.mxu0 0.0
        %345 = vmatprep.subr.mxu0 0.0
        %346 = vmatpush1.msra.mxu0 0.0
        %347 = vmatprep.subr.mxu0 0.0
        %348 = vmatpush1.msra.mxu0 0.0
        %349 = vmatprep.subr.mxu0 0.0
        %350 = vmatpush1.msra.mxu0 0.0
        %351 = vmatprep.subr.mxu0 0.0
        %352 = vmatpush1.msra.mxu0 0.0
        %353 = vmatprep.subr.mxu0 0.0
        %354 = vmatpush1.msra.mxu0 0.0
        %355 = vmatprep.subr.mxu0 0.0
        %356 = vmatpush1.msra.mxu0 0.0
        %357 = vmatprep.subr.mxu0 0.0
        %358 = vmatpush1.msra.mxu0 0.0
        %359 = vmatprep.subr.mxu0 0.0
        %360 = vmatpush1.msra.mxu0 0.0
        %361 = vmatprep.subr.mxu0 0.0
        %362 = vmatpush1.msra.mxu0 0.0
        %363 = vmatprep.subr.mxu0 0.0
        %364 = vmatpush1.msra.mxu0 0.0
        %365 = vmatprep.subr.mxu0 0.0
        %366 = vmatpush1.msra.mxu0 0.0
        %367 = vmatprep.subr.mxu0 0.0
        %368 = vmatpush1.msra.mxu0 0.0
        %369 = vmatprep.mubr.f32.mxu0 0.0
        %v370 = vand.u32 %v265, 4294901760
        %v371 = vsub.f32 %v265, %v370
        %v372 = vand.u32 %v371, 4294901760
        %v373 = vsub.f32 %v371, %v372
        %v374 = vand.u32 %v373, 4294901760
        %375 = vmatmul.mubr.f32.gmra.mrb[0].mxu0 %v374
        %v376 = vpop.f32.mrb[0].mxu0
        %v377 = vadd.f32 %v287, %v376
        %v378 = vpop.f32.mrb[0].mxu0
        %379 = vdwg.mxu0
        %380 = vmatprep.subr.mxu0 0.0
        %v381 = vand.u32 %v266, 4294901760
        %v382 = vsub.f32 %v266, %v381
        %v383 = vand.u32 %v382, 4294901760
        %v384 = vsub.f32 %v382, %v383
        %v385 = vand.u32 %v384, 4294901760
        %386 = vmatpush1.msra.mxu0 %v385
        %387 = vmatprep.subr.mxu0 0.0
        %v388 = vand.u32 %v267, 4294901760
        %v389 = vsub.f32 %v267, %v388
        %v390 = vand.u32 %v389, 4294901760
        %v391 = vsub.f32 %v389, %v390
        %v392 = vand.u32 %v391, 4294901760
        %393 = vmatpush1.msra.mxu0 %v392
        %394 = vmatprep.subr.mxu0 0.0
        %v395 = vand.u32 %v268, 4294901760
        %v396 = vsub.f32 %v268, %v395
        %v397 = vand.u32 %v396, 4294901760
        %v398 = vsub.f32 %v396, %v397
        %v399 = vand.u32 %v398, 4294901760
        %400 = vmatpush1.msra.mxu0 %v399
        %401 = vmatprep.subr.mxu0 0.0
        %v402 = vand.u32 %v269, 4294901760
        %v403 = vsub.f32 %v269, %v402
        %v404 = vand.u32 %v403, 4294901760
        %v405 = vsub.f32 %v403, %v404
        %v406 = vand.u32 %v405, 4294901760
        %407 = vmatpush1.msra.mxu0 %v406
        %408 = vmatprep.subr.mxu0 0.0
        %v409 = vand.u32 %v270, 4294901760
        %v410 = vsub.f32 %v270, %v409
        %v411 = vand.u32 %v410, 4294901760
        %v412 = vsub.f32 %v410, %v411
        %v413 = vand.u32 %v412, 4294901760
        %414 = vmatpush1.msra.mxu0 %v413
        %415 = vmatprep.subr.mxu0 0.0
        %v416 = vand.u32 %v271, 4294901760
        %v417 = vsub.f32 %v271, %v416
        %v418 = vand.u32 %v417, 4294901760
        %v419 = vsub.f32 %v417, %v418
        %v420 = vand.u32 %v419, 4294901760
        %421 = vmatpush1.msra.mxu0 %v420
        %422 = vmatprep.subr.mxu0 0.0
        %v423 = vand.u32 %v272, 4294901760
        %v424 = vsub.f32 %v272, %v423
        %v425 = vand.u32 %v424, 4294901760
        %v426 = vsub.f32 %v424, %v425
        %v427 = vand.u32 %v426, 4294901760
        %428 = vmatpush1.msra.mxu0 %v427
        %429 = vmatprep.subr.mxu0 0.0
        %v430 = vand.u32 %v273, 4294901760
        %v431 = vsub.f32 %v273, %v430
        %v432 = vand.u32 %v431, 4294901760
        %v433 = vsub.f32 %v431, %v432
        %v434 = vand.u32 %v433, 4294901760
        %435 = vmatpush1.msra.mxu0 %v434
        %436 = vmatprep.subr.mxu0 0.0
        %v437 = vand.u32 %v274, 4294901760
        %v438 = vsub.f32 %v274, %v437
        %v439 = vand.u32 %v438, 4294901760
        %v440 = vsub.f32 %v438, %v439
        %v441 = vand.u32 %v440, 4294901760
        %442 = vmatpush1.msra.mxu0 %v441
        %443 = vmatprep.subr.mxu0 0.0
        %v444 = vand.u32 %v275, 4294901760
        %v445 = vsub.f32 %v275, %v444
        %v446 = vand.u32 %v445, 4294901760
        %v447 = vsub.f32 %v445, %v446
        %v448 = vand.u32 %v447, 4294901760
        %449 = vmatpush1.msra.mxu0 %v448
        %450 = vmatprep.subr.mxu0 0.0
        %v451 = vand.u32 %v276, 4294901760
        %v452 = vsub.f32 %v276, %v451
        %v453 = vand.u32 %v452, 4294901760
        %v454 = vsub.f32 %v452, %v453
        %v455 = vand.u32 %v454, 4294901760
        %456 = vmatpush1.msra.mxu0 %v455
        %457 = vmatprep.subr.mxu0 0.0
        %v458 = vand.u32 %v277, 4294901760
        %v459 = vsub.f32 %v277, %v458
        %v460 = vand.u32 %v459, 4294901760
        %v461 = vsub.f32 %v459, %v460
        %v462 = vand.u32 %v461, 4294901760
        %463 = vmatpush1.msra.mxu0 %v462
        %464 = vmatprep.subr.mxu0 0.0
        %v465 = vand.u32 %v278, 4294901760
        %v466 = vsub.f32 %v278, %v465
        %v467 = vand.u32 %v466, 4294901760
        %v468 = vsub.f32 %v466, %v467
        %v469 = vand.u32 %v468, 4294901760
        %470 = vmatpush1.msra.mxu0 %v469
        %471 = vmatprep.subr.mxu0 0.0
        %v472 = vand.u32 %v279, 4294901760
        %v473 = vsub.f32 %v279, %v472
        %v474 = vand.u32 %v473, 4294901760
        %v475 = vsub.f32 %v473, %v474
        %v476 = vand.u32 %v475, 4294901760
        %477 = vmatpush1.msra.mxu0 %v476
        %478 = vmatprep.subr.mxu0 0.0
        %v479 = vand.u32 %v280, 4294901760
        %v480 = vsub.f32 %v280, %v479
        %v481 = vand.u32 %v480, 4294901760
        %v482 = vsub.f32 %v480, %v481
        %v483 = vand.u32 %v482, 4294901760
        %484 = vmatpush1.msra.mxu0 %v483
        %485 = vmatprep.subr.mxu0 0.0
        %v486 = vand.u32 %v281, 4294901760
        %v487 = vsub.f32 %v281, %v486
        %v488 = vand.u32 %v487, 4294901760
        %v489 = vsub.f32 %v487, %v488
        %v490 = vand.u32 %v489, 4294901760
        %491 = vmatpush1.msra.mxu0 %v490
        %492 = vmatprep.subr.mxu0 0.0
        %493 = vmatpush1.msra.mxu0 0.0
        %494 = vmatprep.subr.mxu0 0.0
        %495 = vmatpush1.msra.mxu0 0.0
        %496 = vmatprep.subr.mxu0 0.0
        %497 = vmatpush1.msra.mxu0 0.0
        %498 = vmatprep.subr.mxu0 0.0
        %499 = vmatpush1.msra.mxu0 0.0
        %500 = vmatprep.subr.mxu0 0.0
        %501 = vmatpush1.msra.mxu0 0.0
        %502 = vmatprep.subr.mxu0 0.0
        %503 = vmatpush1.msra.mxu0 0.0
        %504 = vmatprep.subr.mxu0 0.0
        %505 = vmatpush1.msra.mxu0 0.0
        %506 = vmatprep.subr.mxu0 0.0
        %507 = vmatpush1.msra.mxu0 0.0
        %508 = vmatprep.subr.mxu0 0.0
        %509 = vmatpush1.msra.mxu0 0.0
        %510 = vmatprep.subr.mxu0 0.0
        %511 = vmatpush1.msra.mxu0 0.0
        %512 = vmatprep.subr.mxu0 0.0
        %513 = vmatpush1.msra.mxu0 0.0
        %514 = vmatprep.subr.mxu0 0.0
        %515 = vmatpush1.msra.mxu0 0.0
        %516 = vmatprep.subr.mxu0 0.0
        %517 = vmatpush1.msra.mxu0 0.0
        %518 = vmatprep.subr.mxu0 0.0
        %519 = vmatpush1.msra.mxu0 0.0
        %520 = vmatprep.subr.mxu0 0.0
        %521 = vmatpush1.msra.mxu0 0.0
        %522 = vmatprep.subr.mxu0 0.0
        %523 = vmatpush1.msra.mxu0 0.0
        %524 = vmatprep.mubr.f32.mxu0 0.0
        %v525 = vand.u32 %v265, 4294901760
        %526 = vmatmul.mubr.f32.gmra.mrb[0].mxu0 %v525
        %v527 = vpop.f32.mrb[0].mxu0
        %v528 = vadd.f32 %v377, %v527
        %v529 = vpop.f32.mrb[0].mxu0
        %530 = vdwg.mxu0
        %531 = vmatprep.subr.mxu0 0.0
        %v532 = vand.u32 %v266, 4294901760
        %v533 = vsub.f32 %v266, %v532
        %534 = vmatpush1.msra.mxu0 %v533
        %535 = vmatprep.subr.mxu0 0.0
        %v536 = vand.u32 %v267, 4294901760
        %v537 = vsub.f32 %v267, %v536
        %538 = vmatpush1.msra.mxu0 %v537
        %539 = vmatprep.subr.mxu0 0.0
        %v540 = vand.u32 %v268, 4294901760
        %v541 = vsub.f32 %v268, %v540
        %542 = vmatpush1.msra.mxu0 %v541
        %543 = vmatprep.subr.mxu0 0.0
        %v544 = vand.u32 %v269, 4294901760
        %v545 = vsub.f32 %v269, %v544
        %546 = vmatpush1.msra.mxu0 %v545
        %547 = vmatprep.subr.mxu0 0.0
        %v548 = vand.u32 %v270, 4294901760
        %v549 = vsub.f32 %v270, %v548
        %550 = vmatpush1.msra.mxu0 %v549
        %551 = vmatprep.subr.mxu0 0.0
        %v552 = vand.u32 %v271, 4294901760
        %v553 = vsub.f32 %v271, %v552
        %554 = vmatpush1.msra.mxu0 %v553
        %555 = vmatprep.subr.mxu0 0.0
        %v556 = vand.u32 %v272, 4294901760
        %v557 = vsub.f32 %v272, %v556
        %558 = vmatpush1.msra.mxu0 %v557
        %559 = vmatprep.subr.mxu0 0.0
        %v560 = vand.u32 %v273, 4294901760
        %v561 = vsub.f32 %v273, %v560
        %562 = vmatpush1.msra.mxu0 %v561
        %563 = vmatprep.subr.mxu0 0.0
        %v564 = vand.u32 %v274, 4294901760
        %v565 = vsub.f32 %v274, %v564
        %566 = vmatpush1.msra.mxu0 %v565
        %567 = vmatprep.subr.mxu0 0.0
        %v568 = vand.u32 %v275, 4294901760
        %v569 = vsub.f32 %v275, %v568
        %570 = vmatpush1.msra.mxu0 %v569
        %571 = vmatprep.subr.mxu0 0.0
        %v572 = vand.u32 %v276, 4294901760
        %v573 = vsub.f32 %v276, %v572
        %574 = vmatpush1.msra.mxu0 %v573
        %575 = vmatprep.subr.mxu0 0.0
        %v576 = vand.u32 %v277, 4294901760
        %v577 = vsub.f32 %v277, %v576
        %578 = vmatpush1.msra.mxu0 %v577
        %579 = vmatprep.subr.mxu0 0.0
        %v580 = vand.u32 %v278, 4294901760
        %v581 = vsub.f32 %v278, %v580
        %582 = vmatpush1.msra.mxu0 %v581
        %583 = vmatprep.subr.mxu0 0.0
        %v584 = vand.u32 %v279, 4294901760
        %v585 = vsub.f32 %v279, %v584
        %586 = vmatpush1.msra.mxu0 %v585
        %587 = vmatprep.subr.mxu0 0.0
        %v588 = vand.u32 %v280, 4294901760
        %v589 = vsub.f32 %v280, %v588
        %590 = vmatpush1.msra.mxu0 %v589
        %591 = vmatprep.subr.mxu0 0.0
        %v592 = vand.u32 %v281, 4294901760
        %v593 = vsub.f32 %v281, %v592
        %594 = vmatpush1.msra.mxu0 %v593
        %595 = vmatprep.subr.mxu0 0.0
        %596 = vmatpush1.msra.mxu0 0.0
        %597 = vmatprep.subr.mxu0 0.0
        %598 = vmatpush1.msra.mxu0 0.0
        %599 = vmatprep.subr.mxu0 0.0
        %600 = vmatpush1.msra.mxu0 0.0
        %601 = vmatprep.subr.mxu0 0.0
        %602 = vmatpush1.msra.mxu0 0.0
        %603 = vmatprep.subr.mxu0 0.0
        %604 = vmatpush1.msra.mxu0 0.0
        %605 = vmatprep.subr.mxu0 0.0
        %606 = vmatpush1.msra.mxu0 0.0
        %607 = vmatprep.subr.mxu0 0.0
        %608 = vmatpush1.msra.mxu0 0.0
        %609 = vmatprep.subr.mxu0 0.0
        %610 = vmatpush1.msra.mxu0 0.0
        %611 = vmatprep.subr.mxu0 0.0
        %612 = vmatpush1.msra.mxu0 0.0
        %613 = vmatprep.subr.mxu0 0.0
        %614 = vmatpush1.msra.mxu0 0.0
        %615 = vmatprep.subr.mxu0 0.0
        %616 = vmatpush1.msra.mxu0 0.0
        %617 = vmatprep.subr.mxu0 0.0
        %618 = vmatpush1.msra.mxu0 0.0
        %619 = vmatprep.subr.mxu0 0.0
        %620 = vmatpush1.msra.mxu0 0.0
        %621 = vmatprep.subr.mxu0 0.0
        %622 = vmatpush1.msra.mxu0 0.0
        %623 = vmatprep.subr.mxu0 0.0
        %624 = vmatpush1.msra.mxu0 0.0
        %625 = vmatprep.subr.mxu0 0.0
        %626 = vmatpush1.msra.mxu0 0.0
        %627 = vmatprep.mubr.f32.mxu0 0.0
        %v628 = vand.u32 %v265, 4294901760
        %v629 = vsub.f32 %v265, %v628
        %630 = vmatmul.mubr.f32.gmra.mrb[0].mxu0 %v629
        %v631 = vpop.f32.mrb[0].mxu0
        %v632 = vadd.f32 %v528, %v631
        %v633 = vpop.f32.mrb[0].mxu0
        %634 = vdwg.mxu0
        %635 = vmatprep.subr.mxu0 0.0
        %v636 = vand.u32 %v266, 4294901760
        %637 = vmatpush1.msra.mxu0 %v636
        %638 = vmatprep.subr.mxu0 0.0
        %v639 = vand.u32 %v267, 4294901760
        %640 = vmatpush1.msra.mxu0 %v639
        %641 = vmatprep.subr.mxu0 0.0
        %v642 = vand.u32 %v268, 4294901760
        %643 = vmatpush1.msra.mxu0 %v642
        %644 = vmatprep.subr.mxu0 0.0
        %v645 = vand.u32 %v269, 4294901760
        %646 = vmatpush1.msra.mxu0 %v645
        %647 = vmatprep.subr.mxu0 0.0
        %v648 = vand.u32 %v270, 4294901760
        %649 = vmatpush1.msra.mxu0 %v648
        %650 = vmatprep.subr.mxu0 0.0
        %v651 = vand.u32 %v271, 4294901760
        %652 = vmatpush1.msra.mxu0 %v651
        %653 = vmatprep.subr.mxu0 0.0
        %v654 = vand.u32 %v272, 4294901760
        %655 = vmatpush1.msra.mxu0 %v654
        %656 = vmatprep.subr.mxu0 0.0
        %v657 = vand.u32 %v273, 4294901760
        %658 = vmatpush1.msra.mxu0 %v657
        %659 = vmatprep.subr.mxu0 0.0
        %v660 = vand.u32 %v274, 4294901760
        %661 = vmatpush1.msra.mxu0 %v660
        %662 = vmatprep.subr.mxu0 0.0
        %v663 = vand.u32 %v275, 4294901760
        %664 = vmatpush1.msra.mxu0 %v663
        %665 = vmatprep.subr.mxu0 0.0
        %v666 = vand.u32 %v276, 4294901760
        %667 = vmatpush1.msra.mxu0 %v666
        %668 = vmatprep.subr.mxu0 0.0
        %v669 = vand.u32 %v277, 4294901760
        %670 = vmatpush1.msra.mxu0 %v669
        %671 = vmatprep.subr.mxu0 0.0
        %v672 = vand.u32 %v278, 4294901760
        %673 = vmatpush1.msra.mxu0 %v672
        %674 = vmatprep.subr.mxu0 0.0
        %v675 = vand.u32 %v279, 4294901760
        %676 = vmatpush1.msra.mxu0 %v675
        %677 = vmatprep.subr.mxu0 0.0
        %v678 = vand.u32 %v280, 4294901760
        %679 = vmatpush1.msra.mxu0 %v678
        %680 = vmatprep.subr.mxu0 0.0
        %v681 = vand.u32 %v281, 4294901760
        %682 = vmatpush1.msra.mxu0 %v681
        %683 = vmatprep.subr.mxu0 0.0
        %684 = vmatpush1.msra.mxu0 0.0
        %685 = vmatprep.subr.mxu0 0.0
        %686 = vmatpush1.msra.mxu0 0.0
        %687 = vmatprep.subr.mxu0 0.0
        %688 = vmatpush1.msra.mxu0 0.0
        %689 = vmatprep.subr.mxu0 0.0
        %690 = vmatpush1.msra.mxu0 0.0
        %691 = vmatprep.subr.mxu0 0.0
        %692 = vmatpush1.msra.mxu0 0.0
        %693 = vmatprep.subr.mxu0 0.0
        %694 = vmatpush1.msra.mxu0 0.0
        %695 = vmatprep.subr.mxu0 0.0
        %696 = vmatpush1.msra.mxu0 0.0
        %697 = vmatprep.subr.mxu0 0.0
        %698 = vmatpush1.msra.mxu0 0.0
        %699 = vmatprep.subr.mxu0 0.0
        %700 = vmatpush1.msra.mxu0 0.0
        %701 = vmatprep.subr.mxu0 0.0
        %702 = vmatpush1.msra.mxu0 0.0
        %703 = vmatprep.subr.mxu0 0.0
        %704 = vmatpush1.msra.mxu0 0.0
        %705 = vmatprep.subr.mxu0 0.0
        %706 = vmatpush1.msra.mxu0 0.0
        %707 = vmatprep.subr.mxu0 0.0
        %708 = vmatpush1.msra.mxu0 0.0
        %709 = vmatprep.subr.mxu0 0.0
        %710 = vmatpush1.msra.mxu0 0.0
        %711 = vmatprep.subr.mxu0 0.0
        %712 = vmatpush1.msra.mxu0 0.0
        %713 = vmatprep.subr.mxu0 0.0
        %714 = vmatpush1.msra.mxu0 0.0
        %715 = vmatprep.mubr.f32.mxu0 0.0
        %v716 = vand.u32 %v265, 4294901760
        %v717 = vsub.f32 %v265, %v716
        %v718 = vand.u32 %v717, 4294901760
        %719 = vmatmul.mubr.f32.gmra.mrb[0].mxu0 %v718
        %v720 = vpop.f32.mrb[0].mxu0
        %v721 = vadd.f32 %v632, %v720
        %v722 = vpop.f32.mrb[0].mxu0
        %723 = vdwg.mxu0
        %724 = vmatprep.subr.mxu0 0.0
        %v725 = vand.u32 %v266, 4294901760
        %v726 = vsub.f32 %v266, %v725
        %v727 = vand.u32 %v726, 4294901760
        %728 = vmatpush1.msra.mxu0 %v727
        %729 = vmatprep.subr.mxu0 0.0
        %v730 = vand.u32 %v267, 4294901760
        %v731 = vsub.f32 %v267, %v730
        %v732 = vand.u32 %v731, 4294901760
        %733 = vmatpush1.msra.mxu0 %v732
        %734 = vmatprep.subr.mxu0 0.0
        %v735 = vand.u32 %v268, 4294901760
        %v736 = vsub.f32 %v268, %v735
        %v737 = vand.u32 %v736, 4294901760
        %738 = vmatpush1.msra.mxu0 %v737
        %739 = vmatprep.subr.mxu0 0.0
        %v740 = vand.u32 %v269, 4294901760
        %v741 = vsub.f32 %v269, %v740
        %v742 = vand.u32 %v741, 4294901760
        %743 = vmatpush1.msra.mxu0 %v742
        %744 = vmatprep.subr.mxu0 0.0
        %v745 = vand.u32 %v270, 4294901760
        %v746 = vsub.f32 %v270, %v745
        %v747 = vand.u32 %v746, 4294901760
        %748 = vmatpush1.msra.mxu0 %v747
        %749 = vmatprep.subr.mxu0 0.0
        %v750 = vand.u32 %v271, 4294901760
        %v751 = vsub.f32 %v271, %v750
        %v752 = vand.u32 %v751, 4294901760
        %753 = vmatpush1.msra.mxu0 %v752
        %754 = vmatprep.subr.mxu0 0.0
        %v755 = vand.u32 %v272, 4294901760
        %v756 = vsub.f32 %v272, %v755
        %v757 = vand.u32 %v756, 4294901760
        %758 = vmatpush1.msra.mxu0 %v757
        %759 = vmatprep.subr.mxu0 0.0
        %v760 = vand.u32 %v273, 4294901760
        %v761 = vsub.f32 %v273, %v760
        %v762 = vand.u32 %v761, 4294901760
        %763 = vmatpush1.msra.mxu0 %v762
        %764 = vmatprep.subr.mxu0 0.0
        %v765 = vand.u32 %v274, 4294901760
        %v766 = vsub.f32 %v274, %v765
        %v767 = vand.u32 %v766, 4294901760
        %768 = vmatpush1.msra.mxu0 %v767
        %769 = vmatprep.subr.mxu0 0.0
        %v770 = vand.u32 %v275, 4294901760
        %v771 = vsub.f32 %v275, %v770
        %v772 = vand.u32 %v771, 4294901760
        %773 = vmatpush1.msra.mxu0 %v772
        %774 = vmatprep.subr.mxu0 0.0
        %v775 = vand.u32 %v276, 4294901760
        %v776 = vsub.f32 %v276, %v775
        %v777 = vand.u32 %v776, 4294901760
        %778 = vmatpush1.msra.mxu0 %v777
        %779 = vmatprep.subr.mxu0 0.0
        %v780 = vand.u32 %v277, 4294901760
        %v781 = vsub.f32 %v277, %v780
        %v782 = vand.u32 %v781, 4294901760
        %783 = vmatpush1.msra.mxu0 %v782
        %784 = vmatprep.subr.mxu0 0.0
        %v785 = vand.u32 %v278, 4294901760
        %v786 = vsub.f32 %v278, %v785
        %v787 = vand.u32 %v786, 4294901760
        %788 = vmatpush1.msra.mxu0 %v787
        %789 = vmatprep.subr.mxu0 0.0
        %v790 = vand.u32 %v279, 4294901760
        %v791 = vsub.f32 %v279, %v790
        %v792 = vand.u32 %v791, 4294901760
        %793 = vmatpush1.msra.mxu0 %v792
        %794 = vmatprep.subr.mxu0 0.0
        %v795 = vand.u32 %v280, 4294901760
        %v796 = vsub.f32 %v280, %v795
        %v797 = vand.u32 %v796, 4294901760
        %798 = vmatpush1.msra.mxu0 %v797
        %799 = vmatprep.subr.mxu0 0.0
        %v800 = vand.u32 %v281, 4294901760
        %v801 = vsub.f32 %v281, %v800
        %v802 = vand.u32 %v801, 4294901760
        %803 = vmatpush1.msra.mxu0 %v802
        %804 = vmatprep.subr.mxu0 0.0
        %805 = vmatpush1.msra.mxu0 0.0
        %806 = vmatprep.subr.mxu0 0.0
        %807 = vmatpush1.msra.mxu0 0.0
        %808 = vmatprep.subr.mxu0 0.0
        %809 = vmatpush1.msra.mxu0 0.0
        %810 = vmatprep.subr.mxu0 0.0
        %811 = vmatpush1.msra.mxu0 0.0
        %812 = vmatprep.subr.mxu0 0.0
        %813 = vmatpush1.msra.mxu0 0.0
        %814 = vmatprep.subr.mxu0 0.0
        %815 = vmatpush1.msra.mxu0 0.0
        %816 = vmatprep.subr.mxu0 0.0
        %817 = vmatpush1.msra.mxu0 0.0
        %818 = vmatprep.subr.mxu0 0.0
        %819 = vmatpush1.msra.mxu0 0.0
        %820 = vmatprep.subr.mxu0 0.0
        %821 = vmatpush1.msra.mxu0 0.0
        %822 = vmatprep.subr.mxu0 0.0
        %823 = vmatpush1.msra.mxu0 0.0
        %824 = vmatprep.subr.mxu0 0.0
        %825 = vmatpush1.msra.mxu0 0.0
        %826 = vmatprep.subr.mxu0 0.0
        %827 = vmatpush1.msra.mxu0 0.0
        %828 = vmatprep.subr.mxu0 0.0
        %829 = vmatpush1.msra.mxu0 0.0
        %830 = vmatprep.subr.mxu0 0.0
        %831 = vmatpush1.msra.mxu0 0.0
        %832 = vmatprep.subr.mxu0 0.0
        %833 = vmatpush1.msra.mxu0 0.0
        %834 = vmatprep.subr.mxu0 0.0
        %835 = vmatpush1.msra.mxu0 0.0
        %836 = vmatprep.mubr.f32.mxu0 0.0
        %v837 = vand.u32 %v265, 4294901760
        %838 = vmatmul.mubr.f32.gmra.mrb[0].mxu0 %v837
        %v839 = vpop.f32.mrb[0].mxu0
        %v840 = vadd.f32 %v721, %v839
        %v841 = vpop.f32.mrb[0].mxu0
        %842 = vdwg.mxu0
        %843 = vmatprep.subr.mxu0 0.0
        %v844 = vand.u32 %v266, 4294901760
        %845 = vmatpush1.msra.mxu0 %v844
        %846 = vmatprep.subr.mxu0 0.0
        %v847 = vand.u32 %v267, 4294901760
        %848 = vmatpush1.msra.mxu0 %v847
        %849 = vmatprep.subr.mxu0 0.0
        %v850 = vand.u32 %v268, 4294901760
        %851 = vmatpush1.msra.mxu0 %v850
        %852 = vmatprep.subr.mxu0 0.0
        %v853 = vand.u32 %v269, 4294901760
        %854 = vmatpush1.msra.mxu0 %v853
        %855 = vmatprep.subr.mxu0 0.0
        %v856 = vand.u32 %v270, 4294901760
        %857 = vmatpush1.msra.mxu0 %v856
        %858 = vmatprep.subr.mxu0 0.0
        %v859 = vand.u32 %v271, 4294901760
        %860 = vmatpush1.msra.mxu0 %v859
        %861 = vmatprep.subr.mxu0 0.0
        %v862 = vand.u32 %v272, 4294901760
        %863 = vmatpush1.msra.mxu0 %v862
        %864 = vmatprep.subr.mxu0 0.0
        %v865 = vand.u32 %v273, 4294901760
        %866 = vmatpush1.msra.mxu0 %v865
        %867 = vmatprep.subr.mxu0 0.0
        %v868 = vand.u32 %v274, 4294901760
        %869 = vmatpush1.msra.mxu0 %v868
        %870 = vmatprep.subr.mxu0 0.0
        %v871 = vand.u32 %v275, 4294901760
        %872 = vmatpush1.msra.mxu0 %v871
        %873 = vmatprep.subr.mxu0 0.0
        %v874 = vand.u32 %v276, 4294901760
        %875 = vmatpush1.msra.mxu0 %v874
        %876 = vmatprep.subr.mxu0 0.0
        %v877 = vand.u32 %v277, 4294901760
        %878 = vmatpush1.msra.mxu0 %v877
        %879 = vmatprep.subr.mxu0 0.0
        %v880 = vand.u32 %v278, 4294901760
        %881 = vmatpush1.msra.mxu0 %v880
        %882 = vmatprep.subr.mxu0 0.0
        %v883 = vand.u32 %v279, 4294901760
        %884 = vmatpush1.msra.mxu0 %v883
        %885 = vmatprep.subr.mxu0 0.0
        %v886 = vand.u32 %v280, 4294901760
        %887 = vmatpush1.msra.mxu0 %v886
        %888 = vmatprep.subr.mxu0 0.0
        %v889 = vand.u32 %v281, 4294901760
        %890 = vmatpush1.msra.mxu0 %v889
        %891 = vmatprep.subr.mxu0 0.0
        %892 = vmatpush1.msra.mxu0 0.0
        %893 = vmatprep.subr.mxu0 0.0
        %894 = vmatpush1.msra.mxu0 0.0
        %895 = vmatprep.subr.mxu0 0.0
        %896 = vmatpush1.msra.mxu0 0.0
        %897 = vmatprep.subr.mxu0 0.0
        %898 = vmatpush1.msra.mxu0 0.0
        %899 = vmatprep.subr.mxu0 0.0
        %900 = vmatpush1.msra.mxu0 0.0
        %901 = vmatprep.subr.mxu0 0.0
        %902 = vmatpush1.msra.mxu0 0.0
        %903 = vmatprep.subr.mxu0 0.0
        %904 = vmatpush1.msra.mxu0 0.0
        %905 = vmatprep.subr.mxu0 0.0
        %906 = vmatpush1.msra.mxu0 0.0
        %907 = vmatprep.subr.mxu0 0.0
        %908 = vmatpush1.msra.mxu0 0.0
        %909 = vmatprep.subr.mxu0 0.0
        %910 = vmatpush1.msra.mxu0 0.0
        %911 = vmatprep.subr.mxu0 0.0
        %912 = vmatpush1.msra.mxu0 0.0
        %913 = vmatprep.subr.mxu0 0.0
        %914 = vmatpush1.msra.mxu0 0.0
        %915 = vmatprep.subr.mxu0 0.0
        %916 = vmatpush1.msra.mxu0 0.0
        %917 = vmatprep.subr.mxu0 0.0
        %918 = vmatpush1.msra.mxu0 0.0
        %919 = vmatprep.subr.mxu0 0.0
        %920 = vmatpush1.msra.mxu0 0.0
        %921 = vmatprep.subr.mxu0 0.0
        %922 = vmatpush1.msra.mxu0 0.0
        %923 = vmatprep.mubr.f32.mxu0 0.0
        %v924 = vand.u32 %v265, 4294901760
        %925 = vmatmul.mubr.f32.gmra.mrb[0].mxu0 %v924
        %v926 = vpop.f32.mrb[0].mxu0
        %v927 = vadd.f32 %v840, %v926
        %v928 = vpop.f32.mrb[0].mxu0
        %929 = vdwg.mxu0
        %v930 = vadd.f32 %v264, %v927
        %931 = vadd.xlane.f32.xlu0 %v930
        %v932 = vpop.xlane.xlu0 %931
        %v933 = vrcp.pop 128.0
        %v934 = vmul.f32 %v932, %v933
        %v935 = vsub.f32 %v930, %v934
        %v936 = vmul.f32 %v935, %v935
        %937 = vadd.xlane.f32.xlu0 %v936
        %v938 = vpop.xlane.xlu0 %937
        %v939 = vmul.f32 %v938, %v933
        %v940 = vadd.f32 %v939, 1e-05
        %v941 = vrsqrt.pop %v940
        %v942 = vmul.f32 %v935, %v941
        %v943 = vld [vmem:[%s4] sm:$0x1]
        %v945 = vlaneseq
        %v946 = vshrl.u32 %v945, 7
        %v947 = vsub.s32 0, %v946
        %v948 = vrot.slane %v943, %v947
        %v950 = vmul.f32 %v948, %v942
        %v951 = vld [vmem:[%s5] sm:$0x1]
        %v953 = vlaneseq
        %v954 = vshrl.u32 %v953, 7
        %v955 = vsub.s32 0, %v954
        %v956 = vrot.slane %v951, %v955
        %v958 = vadd.f32 %v950, %v956
        %959 = vst [vmem:[%s255] sm:$0xff] %v958
        %s960 = sand.u32 %s164, 1
        %s961 = scalar_lea.sflag [#allocation3], %s960
        %s962 = sand.u32 %s164, 1
        %s963 = smul.addr %s962, 8
        %s964 = scalar_lea.vmem [#allocation2], %s963
        // Predicated region
        $region45: #{multi_head_attention.5} parent=43 // pred_check
          %p965 = pneg %p174
        $region46: #{multi_head_attention.5} parent=43 // pred_check_branch
          %967 = sbr.rel (%p965) target = $region48
        $region47: #{multi_head_attention.5} parent=43 // pred_region
          %s969 = ssub.s32 128, 128
          %970 = vsyncadd %s961, %s969
          %s971 = smul.addr %s20, 128
          %s972 = scalar_lea.hbm %s6, %s971
          %s974 = sshll.u32 %s964, 4
          %s975 = int_to_ptr.vmem [resolvable:$true] %s974
          %977 = dma.vmem_to_hbm [thread:$0]  %s975, 128, %s972, %s961
        $region48: #{multi_head_attention.5} parent=43 // pred_fallthru
          _
      $region44: #{multi_head_attention.5} parent=5 // pred_fallthru
        _
      %p978 = scmp.le.s32.totalorder 2, %s15
      // Predicated region
      $region49: #{multi_head_attention.5} parent=5 // pred_check
        %p979 = pneg %p978
      $region50: #{multi_head_attention.5} parent=5 // pred_check_branch
        %981 = sbr.rel (%p979) target = $region52
      $region51: #{multi_head_attention.5} parent=5 // pred_region
        %s982 = ssub.s32 %s15, 2
        // Predicated region
        $region53: #{multi_head_attention.5} parent=51 // pred_check
          %p983 = pneg %p180
        $region54: #{multi_head_attention.5} parent=51 // pred_check_branch
          %985 = sbr.rel (%p983) target = $region56
        $region55: #{multi_head_attention.5} parent=51 // pred_region
          %s986 = sand.u32 %s165, 1
          %s987 = scalar_lea.sflag [#allocation3], %s986
          %s988 = sand.u32 %s165, 1
          %s989 = smul.addr %s988, 8
          %s990 = scalar_lea.vmem [#allocation2], %s989
          %991 = dma.done %s987, 128
        $region56: #{multi_head_attention.5} parent=51 // pred_fallthru
          _
      $region52: #{multi_head_attention.5} parent=5 // pred_fallthru
        _
    $region6: #{multi_head_attention.5} parent=1 // loop_footer
      %s19 = sadd.s32 1, %s15
    $region7: #{multi_head_attention.5} parent=1 // loop_footer_branch
      %14 = sbr.rel target = $region3
    $region8: #{multi_head_attention.5} parent=1 // loop_exit
      _
    %992 = vsyncpa [#allocation3], 1
    %s993 = scalar_lea.sflag [#allocation3], 1
    %994 = vsyncpa %s993, 1

// kernel: multi_head_attention.4
$region0: #{multi_head_attention.4}
  #allocation0 [shape = 'u32[]', space=smem, size = 0x4, offset = 0x4, fixed_abs, tag = 'smem constant byte address 0x4 - core index']
  #allocation1 [shape = 'u32[144,128]{1,0:T(1,128)}', space=vmem, size = 0x12000, scoped, tag = 'internal scratch']
  %s0 = inlined_call_operand.vmem [shape: f32[16,8,16], index: 0, kind: input, shape index: {}]
  %s1 = inlined_call_operand.vmem [shape: f32[16,8,16], index: 1, kind: input, shape index: {}]
  %s2 = inlined_call_operand.vmem [shape: f32[16,8,16], index: 2, kind: input, shape index: {}]
  %s3 = inlined_call_operand.vmem [shape: f32[16,8,16], index: 3, kind: output, shape index: {0}]
  %s4 = inlined_call_operand.vmem [shape: f32[16,8,8], index: 4, kind: output, shape index: {1}]
  %5 = xla_tuple %s3, %s4
  %s6 = sld [smem:[#allocation0]]
  $region53: #{multi_head_attention.4} parent=0
    _
  %s8 = ssub.s32 1, %s6
  %s9 = scalar_select 0, %s8, %s6
  loop: start=0, step=1, limit=18
  $region2: #{multi_head_attention.4} parent=0 // loop_pre_header
    _
  $region3: #{multi_head_attention.4} parent=0 // loop_header
    %s11 = sphi 0, %s15
    %p12 = scmp.ge.s32.totalorder %s11, 18
    %s21 = sphi 0, %s23
    %s24 = sphi 0, %s21
    %s25 = sphi 0, %s24
    %s41 = sphi 0, %s25
    %s47 = sphi 0, %s49
    %s50 = sphi 0, %s47
    %s51 = sphi 0, %s50
    %s67 = sphi 0, %s51
    %s73 = sphi 0, %s75
    %s76 = sphi 0, %s73
    %s77 = sphi 0, %s76
    %s93 = sphi 0, %s77
    %s99 = sphi 0, %s101
    %s102 = sphi 0, %s99
    %s103 = sphi 0, %s102
    %s119 = sphi 0, %s103
    %s125 = sphi 0, %s127
    %s128 = sphi 0, %s125
    %s129 = sphi 0, %s128
    %s145 = sphi 0, %s129
  $region4: #{multi_head_attention.4} parent=0 // loop_header_branch
    %14 = sbr.rel (%p12) target = $region8
  $region5: #{multi_head_attention.4} parent=0 // loop_body
    %s16 = ssub.s32 %s11, 1
    %s17 = ssub.s32 %s11, 2
    %s18 = sadd.s32 %s11, 1
    %s19 = ssub.s32 %s11, %s18
    %p20 = scmp.eq.s32.totalorder %s19, 0
    %s22 = sadd.s32 %s21, 1
    %s23 = scalar_select %p20, %s21, %s22
    %p26 = pneg %p20
    %p27 = scmp.eq.s32.totalorder %s11, 15
    %p28 = por %p26, %p27
    %p29 = scmp.ne.s32.totalorder %s21, %s24
    %p30 = scmp.eq.s32.totalorder %s11, 0
    %p31 = por %p29, %p30
    %p32 = scmp.ne.s32.totalorder %s21, %s24
    %p33 = scmp.eq.s32.totalorder %s16, 15
    %p34 = por %p32, %p33
    %p35 = scmp.ne.s32.totalorder %s24, %s25
    %p36 = scmp.eq.s32.totalorder %s16, 0
    %p37 = por %p35, %p36
    %p38 = scmp.ne.s32.totalorder %s24, %s25
    %p39 = scmp.eq.s32.totalorder %s17, 15
    %p40 = por %p38, %p39
    %p42 = scmp.ne.s32.totalorder %s25, %s41
    %p43 = scmp.eq.s32.totalorder %s17, 0
    %p44 = por %p42, %p43
    %s45 = ssub.s32 %s11, %s18
    %p46 = scmp.eq.s32.totalorder %s45, 0
    %s48 = sadd.s32 %s47, 1
    %s49 = scalar_select %p46, %s47, %s48
    %p52 = pneg %p46
    %p53 = scmp.eq.s32.totalorder %s11, 15
    %p54 = por %p52, %p53
    %p55 = scmp.ne.s32.totalorder %s47, %s50
    %p56 = scmp.eq.s32.totalorder %s11, 0
    %p57 = por %p55, %p56
    %p58 = scmp.ne.s32.totalorder %s47, %s50
    %p59 = scmp.eq.s32.totalorder %s16, 15
    %p60 = por %p58, %p59
    %p61 = scmp.ne.s32.totalorder %s50, %s51
    %p62 = scmp.eq.s32.totalorder %s16, 0
    %p63 = por %p61, %p62
    %p64 = scmp.ne.s32.totalorder %s50, %s51
    %p65 = scmp.eq.s32.totalorder %s17, 15
    %p66 = por %p64, %p65
    %p68 = scmp.ne.s32.totalorder %s51, %s67
    %p69 = scmp.eq.s32.totalorder %s17, 0
    %p70 = por %p68, %p69
    %s71 = ssub.s32 %s11, %s18
    %p72 = scmp.eq.s32.totalorder %s71, 0
    %s74 = sadd.s32 %s73, 1
    %s75 = scalar_select %p72, %s73, %s74
    %p78 = pneg %p72
    %p79 = scmp.eq.s32.totalorder %s11, 15
    %p80 = por %p78, %p79
    %p81 = scmp.ne.s32.totalorder %s73, %s76
    %p82 = scmp.eq.s32.totalorder %s11, 0
    %p83 = por %p81, %p82
    %p84 = scmp.ne.s32.totalorder %s73, %s76
    %p85 = scmp.eq.s32.totalorder %s16, 15
    %p86 = por %p84, %p85
    %p87 = scmp.ne.s32.totalorder %s76, %s77
    %p88 = scmp.eq.s32.totalorder %s16, 0
    %p89 = por %p87, %p88
    %p90 = scmp.ne.s32.totalorder %s76, %s77
    %p91 = scmp.eq.s32.totalorder %s17, 15
    %p92 = por %p90, %p91
    %p94 = scmp.ne.s32.totalorder %s77, %s93
    %p95 = scmp.eq.s32.totalorder %s17, 0
    %p96 = por %p94, %p95
    %s97 = ssub.s32 %s11, %s18
    %p98 = scmp.eq.s32.totalorder %s97, 0
    %s100 = sadd.s32 %s99, 1
    %s101 = scalar_select %p98, %s99, %s100
    %p104 = pneg %p98
    %p105 = scmp.eq.s32.totalorder %s11, 15
    %p106 = por %p104, %p105
    %p107 = scmp.ne.s32.totalorder %s99, %s102
    %p108 = scmp.eq.s32.totalorder %s11, 0
    %p109 = por %p107, %p108
    %p110 = scmp.ne.s32.totalorder %s99, %s102
    %p111 = scmp.eq.s32.totalorder %s16, 15
    %p112 = por %p110, %p111
    %p113 = scmp.ne.s32.totalorder %s102, %s103
    %p114 = scmp.eq.s32.totalorder %s16, 0
    %p115 = por %p113, %p114
    %p116 = scmp.ne.s32.totalorder %s102, %s103
    %p117 = scmp.eq.s32.totalorder %s17, 15
    %p118 = por %p116, %p117
    %p120 = scmp.ne.s32.totalorder %s103, %s119
    %p121 = scmp.eq.s32.totalorder %s17, 0
    %p122 = por %p120, %p121
    %s123 = ssub.s32 %s11, %s18
    %p124 = scmp.eq.s32.totalorder %s123, 0
    %s126 = sadd.s32 %s125, 1
    %s127 = scalar_select %p124, %s125, %s126
    %p130 = pneg %p124
    %p131 = scmp.eq.s32.totalorder %s11, 15
    %p132 = por %p130, %p131
    %p133 = scmp.ne.s32.totalorder %s125, %s128
    %p134 = scmp.eq.s32.totalorder %s11, 0
    %p135 = por %p133, %p134
    %p136 = scmp.ne.s32.totalorder %s125, %s128
    %p137 = scmp.eq.s32.totalorder %s16, 15
    %p138 = por %p136, %p137
    %p139 = scmp.ne.s32.totalorder %s128, %s129
    %p140 = scmp.eq.s32.totalorder %s16, 0
    %p141 = por %p139, %p140
    %p142 = scmp.ne.s32.totalorder %s128, %s129
    %p143 = scmp.eq.s32.totalorder %s17, 15
    %p144 = por %p142, %p143
    %p146 = scmp.ne.s32.totalorder %s129, %s145
    %p147 = scmp.eq.s32.totalorder %s17, 0
    %p148 = por %p146, %p147
    %p149 = scmp.le.s32.totalorder 1, %s11
    %p150 = scmp.lt.s32.totalorder %s11, 17
    %p151 = pnand %p149, %p150
    %p152 = pneg %p151
    // Predicated region
    $region9: #{multi_head_attention.4} parent=5 // pred_check
      _
    $region10: #{multi_head_attention.4} parent=5 // pred_check_branch
      %154 = sbr.rel (%p151) target = $region12
    $region11: #{multi_head_attention.4} parent=5 // pred_region
      %s155 = ssub.s32 %s11, 1
    $region12: #{multi_head_attention.4} parent=5 // pred_fallthru
      _
    %p156 = scmp.lt.s32.totalorder %s11, 16
    // Predicated region
    $region13: #{multi_head_attention.4} parent=5 // pred_check
      %p157 = pneg %p156
    $region14: #{multi_head_attention.4} parent=5 // pred_check_branch
      %159 = sbr.rel (%p157) target = $region16
    $region15: #{multi_head_attention.4} parent=5 // pred_region
      // Predicated region
      $region17: #{multi_head_attention.4} parent=15 // pred_check
        %p160 = pneg %p31
      $region18: #{multi_head_attention.4} parent=15 // pred_check_branch
        %162 = sbr.rel (%p160) target = $region20
      $region19: #{multi_head_attention.4} parent=15 // pred_region
        %p163 = scmp.lt.s32.totalorder %s11, 15
        %s164 = scalar_select %p163, %s11, 15
        %s165 = smul.addr %s164, 8
        %s166 = scalar_lea.vmem %s0, %s165
      $region20: #{multi_head_attention.4} parent=15 // pred_fallthru
        _
      // Predicated region
      $region21: #{multi_head_attention.4} parent=15 // pred_check
        %p167 = pneg %p57
      $region22: #{multi_head_attention.4} parent=15 // pred_check_branch
        %169 = sbr.rel (%p167) target = $region24
      $region23: #{multi_head_attention.4} parent=15 // pred_region
        %p170 = scmp.lt.s32.totalorder %s11, 15
        %s171 = scalar_select %p170, %s11, 15
        %s172 = smul.addr %s171, 8
        %s173 = scalar_lea.vmem %s1, %s172
      $region24: #{multi_head_attention.4} parent=15 // pred_fallthru
        _
      // Predicated region
      $region25: #{multi_head_attention.4} parent=15 // pred_check
        %p174 = pneg %p83
      $region26: #{multi_head_attention.4} parent=15 // pred_check_branch
        %176 = sbr.rel (%p174) target = $region28
      $region27: #{multi_head_attention.4} parent=15 // pred_region
        %p177 = scmp.lt.s32.totalorder %s11, 15
        %s178 = scalar_select %p177, %s11, 15
        %s179 = smul.addr %s178, 8
        %s180 = scalar_lea.vmem %s2, %s179
      $region28: #{multi_head_attention.4} parent=15 // pred_fallthru
        _
    $region16: #{multi_head_attention.4} parent=5 // pred_fallthru
      _
    %p181 = scmp.le.s32.totalorder 1, %s11
    %p182 = scmp.lt.s32.totalorder %s11, 17
    %p183 = pnand %p181, %p182
    %p184 = pneg %p183
    // Predicated region
    $region29: #{multi_head_attention.4} parent=5 // pred_check
      _
    $region30: #{multi_head_attention.4} parent=5 // pred_check_branch
      %186 = sbr.rel (%p183) target = $region32
    $region31: #{multi_head_attention.4} parent=5 // pred_region
      %s187 = ssub.s32 %s11, 1
      %p188 = scmp.lt.s32.totalorder %s16, 15
      %s189 = scalar_select %p188, %s16, 15
      %s190 = smul.addr %s189, 8
      %s191 = scalar_lea.vmem %s0, %s190
      %p192 = pneg %p37
      %p193 = pneg %p34
      %p194 = scmp.lt.s32.totalorder %s16, 15
      %s195 = scalar_select %p194, %s16, 15
      %s196 = smul.addr %s195, 8
      %s197 = scalar_lea.vmem %s1, %s196
      %p198 = pneg %p63
      %p199 = pneg %p60
      %p200 = scmp.lt.s32.totalorder %s16, 15
      %s201 = scalar_select %p200, %s16, 15
      %s202 = smul.addr %s201, 8
      %s203 = scalar_lea.vmem %s2, %s202
      %p204 = pneg %p89
      %p205 = pneg %p86
      %p206 = pneg %p115
      %p207 = pneg %p112
      %p208 = scmp.lt.s32.totalorder %s16, 15
      %s209 = scalar_select %p208, %s16, 15
      %s210 = smul.addr %s209, 8
      %s211 = scalar_lea.vmem %s3, %s210
      %p212 = pneg %p141
      %p213 = pneg %p138
      %p214 = scmp.lt.s32.totalorder %s16, 15
      %s215 = scalar_select %p214, %s16, 15
      %s216 = smul.addr %s215, 8
      %s217 = scalar_lea.vmem %s4, %s216
      %p218 = scmp.lt.s32.totalorder %s16, 15
      %s219 = scalar_select %p218, %s16, 15
      %s220 = smul.addr %s219, 8
      %s221 = scalar_lea.vmem %s0, %s220
      %p222 = scmp.lt.s32.totalorder %s16, 15
      %s223 = scalar_select %p222, %s16, 15
      %s224 = smul.addr %s223, 8
      %s225 = scalar_lea.vmem %s1, %s224
      %p226 = scmp.lt.s32.totalorder %s16, 15
      %s227 = scalar_select %p226, %s16, 15
      %s228 = smul.addr %s227, 8
      %s229 = scalar_lea.vmem %s2, %s228
      %p230 = scmp.lt.s32.totalorder %s16, 15
      %s231 = scalar_select %p230, %s16, 15
      %s232 = smul.addr %s231, 8
      %s233 = scalar_lea.vmem %s3, %s232
      %p234 = scmp.lt.s32.totalorder %s16, 15
      %s235 = scalar_select %p234, %s16, 15
      %s236 = smul.addr %s235, 8
      %s237 = scalar_lea.vmem %s4, %s236
      %v238 = vld [vmem:[%s221] sm:$0xff]
      %v239 = vld [vmem:[%s225] sm:$0xff]
      %v240 = vld [vmem:[%s229] sm:$0xff]
      %vm241 = vcmask 130048
      %v243 = vsel %vm241, %v238, 0
      %v246 = vsel %vm241, %v239, 0
      %248 = vmatprep.subr.mxu0 0.0
      %v249 = vand.u32 %v246, 4294901760
      %250 = vmatpush1.xpose.msra.mxu0 %v249
      %251 = vmatprep.subr.mxu0 0.0
      %252 = vmatpush1.xpose.msra.mxu0 0.0
      %253 = vmatprep.subr.mxu0 0.0
      %254 = vmatpush1.xpose.msra.mxu0 0.0
      %255 = vmatprep.subr.mxu0 0.0
      %256 = vmatpush1.xpose.msra.mxu0 0.0
      %257 = vmatprep.subr.mxu0 0.0
      %258 = vmatpush1.xpose.msra.mxu0 0.0
      %259 = vmatprep.subr.mxu0 0.0
      %260 = vmatpush1.xpose.msra.mxu0 0.0
      %261 = vmatprep.subr.mxu0 0.0
      %262 = vmatpush1.xpose.msra.mxu0 0.0
      %263 = vmatprep.subr.mxu0 0.0
      %264 = vmatpush1.xpose.msra.mxu0 0.0
      %265 = vmatprep.subr.mxu0 0.0
      %266 = vmatpush1.xpose.msra.mxu0 0.0
      %267 = vmatprep.subr.mxu0 0.0
      %268 = vmatpush1.xpose.msra.mxu0 0.0
      %269 = vmatprep.subr.mxu0 0.0
      %270 = vmatpush1.xpose.msra.mxu0 0.0
      %271 = vmatprep.subr.mxu0 0.0
      %272 = vmatpush1.xpose.msra.mxu0 0.0
      %273 = vmatprep.subr.mxu0 0.0
      %274 = vmatpush1.xpose.msra.mxu0 0.0
      %275 = vmatprep.subr.mxu0 0.0
      %276 = vmatpush1.xpose.msra.mxu0 0.0
      %277 = vmatprep.subr.mxu0 0.0
      %278 = vmatpush1.xpose.msra.mxu0 0.0
      %279 = vmatprep.subr.mxu0 0.0
      %280 = vmatpush1.xpose.msra.mxu0 0.0
      %281 = vmatprep.subr.mxu0 0.0
      %282 = vmatpush1.xpose.msra.mxu0 0.0
      %283 = vmatprep.subr.mxu0 0.0
      %284 = vmatpush1.xpose.msra.mxu0 0.0
      %285 = vmatprep.subr.mxu0 0.0
      %286 = vmatpush1.xpose.msra.mxu0 0.0
      %287 = vmatprep.subr.mxu0 0.0
      %288 = vmatpush1.xpose.msra.mxu0 0.0
      %289 = vmatprep.subr.mxu0 0.0
      %290 = vmatpush1.xpose.msra.mxu0 0.0
      %291 = vmatprep.subr.mxu0 0.0
      %292 = vmatpush1.xpose.msra.mxu0 0.0
      %293 = vmatprep.subr.mxu0 0.0
      %294 = vmatpush1.xpose.msra.mxu0 0.0
      %295 = vmatprep.subr.mxu0 0.0
      %296 = vmatpush1.xpose.msra.mxu0 0.0
      %297 = vmatprep.subr.mxu0 0.0
      %298 = vmatpush1.xpose.msra.mxu0 0.0
      %299 = vmatprep.subr.mxu0 0.0
      %300 = vmatpush1.xpose.msra.mxu0 0.0
      %301 = vmatprep.subr.mxu0 0.0
      %302 = vmatpush1.xpose.msra.mxu0 0.0
      %303 = vmatprep.subr.mxu0 0.0
      %304 = vmatpush1.xpose.msra.mxu0 0.0
      %305 = vmatprep.subr.mxu0 0.0
      %306 = vmatpush1.xpose.msra.mxu0 0.0
      %307 = vmatprep.subr.mxu0 0.0
      %308 = vmatpush1.xpose.msra.mxu0 0.0
      %309 = vmatprep.subr.mxu0 0.0
      %310 = vmatpush1.xpose.msra.mxu0 0.0
      %311 = vmatprep.subr.mxu0 0.0
      %312 = vmatpush1.xpose.msra.mxu0 0.0
      %313 = vmatprep.mubr.f32.mxu0 0.0
      %v314 = vand.u32 %v243, 4294901760
      %v315 = vsub.f32 %v243, %v314
      %v316 = vand.u32 %v315, 4294901760
      %v317 = vsub.f32 %v315, %v316
      %v318 = vand.u32 %v317, 4294901760
      %319 = vmatmul.mubr.f32.gmra.mrb[0].mxu0 %v318
      %v320 = vpop.f32.mrb[0].mxu0
      %v321 = vadd.f32 0.0, %v320
      %v322 = vpop.f32.mrb[0].mxu0
      %323 = vdwg.mxu0
      %324 = vmatprep.subr.mxu0 0.0
      %v325 = vand.u32 %v246, 4294901760
      %v326 = vsub.f32 %v246, %v325
      %v327 = vand.u32 %v326, 4294901760
      %v328 = vsub.f32 %v326, %v327
      %v329 = vand.u32 %v328, 4294901760
      %330 = vmatpush1.xpose.msra.mxu0 %v329
      %331 = vmatprep.subr.mxu0 0.0
      %332 = vmatpush1.xpose.msra.mxu0 0.0
      %333 = vmatprep.subr.mxu0 0.0
      %334 = vmatpush1.xpose.msra.mxu0 0.0
      %335 = vmatprep.subr.mxu0 0.0
      %336 = vmatpush1.xpose.msra.mxu0 0.0
      %337 = vmatprep.subr.mxu0 0.0
      %338 = vmatpush1.xpose.msra.mxu0 0.0
      %339 = vmatprep.subr.mxu0 0.0
      %340 = vmatpush1.xpose.msra.mxu0 0.0
      %341 = vmatprep.subr.mxu0 0.0
      %342 = vmatpush1.xpose.msra.mxu0 0.0
      %343 = vmatprep.subr.mxu0 0.0
      %344 = vmatpush1.xpose.msra.mxu0 0.0
      %345 = vmatprep.subr.mxu0 0.0
      %346 = vmatpush1.xpose.msra.mxu0 0.0
      %347 = vmatprep.subr.mxu0 0.0
      %348 = vmatpush1.xpose.msra.mxu0 0.0
      %349 = vmatprep.subr.mxu0 0.0
      %350 = vmatpush1.xpose.msra.mxu0 0.0
      %351 = vmatprep.subr.mxu0 0.0
      %352 = vmatpush1.xpose.msra.mxu0 0.0
      %353 = vmatprep.subr.mxu0 0.0
      %354 = vmatpush1.xpose.msra.mxu0 0.0
      %355 = vmatprep.subr.mxu0 0.0
      %356 = vmatpush1.xpose.msra.mxu0 0.0
      %357 = vmatprep.subr.mxu0 0.0
      %358 = vmatpush1.xpose.msra.mxu0 0.0
      %359 = vmatprep.subr.mxu0 0.0
      %360 = vmatpush1.xpose.msra.mxu0 0.0
      %361 = vmatprep.subr.mxu0 0.0
      %362 = vmatpush1.xpose.msra.mxu0 0.0
      %363 = vmatprep.subr.mxu0 0.0
      %364 = vmatpush1.xpose.msra.mxu0 0.0
      %365 = vmatprep.subr.mxu0 0.0
      %366 = vmatpush1.xpose.msra.mxu0 0.0
      %367 = vmatprep.subr.mxu0 0.0
      %368 = vmatpush1.xpose.msra.mxu0 0.0
      %369 = vmatprep.subr.mxu0 0.0
      %370 = vmatpush1.xpose.msra.mxu0 0.0
      %371 = vmatprep.subr.mxu0 0.0
      %372 = vmatpush1.xpose.msra.mxu0 0.0
      %373 = vmatprep.subr.mxu0 0.0
      %374 = vmatpush1.xpose.msra.mxu0 0.0
      %375 = vmatprep.subr.mxu0 0.0
      %376 = vmatpush1.xpose.msra.mxu0 0.0
      %377 = vmatprep.subr.mxu0 0.0
      %378 = vmatpush1.xpose.msra.mxu0 0.0
      %379 = vmatprep.subr.mxu0 0.0
      %380 = vmatpush1.xpose.msra.mxu0 0.0
      %381 = vmatprep.subr.mxu0 0.0
      %382 = vmatpush1.xpose.msra.mxu0 0.0
      %383 = vmatprep.subr.mxu0 0.0
      %384 = vmatpush1.xpose.msra.mxu0 0.0
      %385 = vmatprep.subr.mxu0 0.0
      %386 = vmatpush1.xpose.msra.mxu0 0.0
      %387 = vmatprep.subr.mxu0 0.0
      %388 = vmatpush1.xpose.msra.mxu0 0.0
      %389 = vmatprep.subr.mxu0 0.0
      %390 = vmatpush1.xpose.msra.mxu0 0.0
      %391 = vmatprep.subr.mxu0 0.0
      %392 = vmatpush1.xpose.msra.mxu0 0.0
      %393 = vmatprep.mubr.f32.mxu0 0.0
      %v394 = vand.u32 %v243, 4294901760
      %395 = vmatmul.mubr.f32.gmra.mrb[0].mxu0 %v394
      %v396 = vpop.f32.mrb[0].mxu0
      %v397 = vadd.f32 %v321, %v396
      %v398 = vpop.f32.mrb[0].mxu0
      %399 = vdwg.mxu0
      %400 = vmatprep.subr.mxu0 0.0
      %v401 = vand.u32 %v246, 4294901760
      %v402 = vsub.f32 %v246, %v401
      %403 = vmatpush1.xpose.msra.mxu0 %v402
      %404 = vmatprep.subr.mxu0 0.0
      %405 = vmatpush1.xpose.msra.mxu0 0.0
      %406 = vmatprep.subr.mxu0 0.0
      %407 = vmatpush1.xpose.msra.mxu0 0.0
      %408 = vmatprep.subr.mxu0 0.0
      %409 = vmatpush1.xpose.msra.mxu0 0.0
      %410 = vmatprep.subr.mxu0 0.0
      %411 = vmatpush1.xpose.msra.mxu0 0.0
      %412 = vmatprep.subr.mxu0 0.0
      %413 = vmatpush1.xpose.msra.mxu0 0.0
      %414 = vmatprep.subr.mxu0 0.0
      %415 = vmatpush1.xpose.msra.mxu0 0.0
      %416 = vmatprep.subr.mxu0 0.0
      %417 = vmatpush1.xpose.msra.mxu0 0.0
      %418 = vmatprep.subr.mxu0 0.0
      %419 = vmatpush1.xpose.msra.mxu0 0.0
      %420 = vmatprep.subr.mxu0 0.0
      %421 = vmatpush1.xpose.msra.mxu0 0.0
      %422 = vmatprep.subr.mxu0 0.0
      %423 = vmatpush1.xpose.msra.mxu0 0.0
      %424 = vmatprep.subr.mxu0 0.0
      %425 = vmatpush1.xpose.msra.mxu0 0.0
      %426 = vmatprep.subr.mxu0 0.0
      %427 = vmatpush1.xpose.msra.mxu0 0.0
      %428 = vmatprep.subr.mxu0 0.0
      %429 = vmatpush1.xpose.msra.mxu0 0.0
      %430 = vmatprep.subr.mxu0 0.0
      %431 = vmatpush1.xpose.msra.mxu0 0.0
      %432 = vmatprep.subr.mxu0 0.0
      %433 = vmatpush1.xpose.msra.mxu0 0.0
      %434 = vmatprep.subr.mxu0 0.0
      %435 = vmatpush1.xpose.msra.mxu0 0.0
      %436 = vmatprep.subr.mxu0 0.0
      %437 = vmatpush1.xpose.msra.mxu0 0.0
      %438 = vmatprep.subr.mxu0 0.0
      %439 = vmatpush1.xpose.msra.mxu0 0.0
      %440 = vmatprep.subr.mxu0 0.0
      %441 = vmatpush1.xpose.msra.mxu0 0.0
      %442 = vmatprep.subr.mxu0 0.0
      %443 = vmatpush1.xpose.msra.mxu0 0.0
      %444 = vmatprep.subr.mxu0 0.0
      %445 = vmatpush1.xpose.msra.mxu0 0.0
      %446 = vmatprep.subr.mxu0 0.0
      %447 = vmatpush1.xpose.msra.mxu0 0.0
      %448 = vmatprep.subr.mxu0 0.0
      %449 = vmatpush1.xpose.msra.mxu0 0.0
      %450 = vmatprep.subr.mxu0 0.0
      %451 = vmatpush1.xpose.msra.mxu0 0.0
      %452 = vmatprep.subr.mxu0 0.0
      %453 = vmatpush1.xpose.msra.mxu0 0.0
      %454 = vmatprep.subr.mxu0 0.0
      %455 = vmatpush1.xpose.msra.mxu0 0.0
      %456 = vmatprep.subr.mxu0 0.0
      %457 = vmatpush1.xpose.msra.mxu0 0.0
      %458 = vmatprep.subr.mxu0 0.0
      %459 = vmatpush1.xpose.msra.mxu0 0.0
      %460 = vmatprep.subr.mxu0 0.0
      %461 = vmatpush1.xpose.msra.mxu0 0.0
      %462 = vmatprep.subr.mxu0 0.0
      %463 = vmatpush1.xpose.msra.mxu0 0.0
      %464 = vmatprep.subr.mxu0 0.0
      %465 = vmatpush1.xpose.msra.mxu0 0.0
      %466 = vmatprep.mubr.f32.mxu0 0.0
      %v467 = vand.u32 %v243, 4294901760
      %v468 = vsub.f32 %v243, %v467
      %469 = vmatmul.mubr.f32.gmra.mrb[0].mxu0 %v468
      %v470 = vpop.f32.mrb[0].mxu0
      %v471 = vadd.f32 %v397, %v470
      %v472 = vpop.f32.mrb[0].mxu0
      %473 = vdwg.mxu0
      %474 = vmatprep.subr.mxu0 0.0
      %v475 = vand.u32 %v246, 4294901760
      %476 = vmatpush1.xpose.msra.mxu0 %v475
      %477 = vmatprep.subr.mxu0 0.0
      %478 = vmatpush1.xpose.msra.mxu0 0.0
      %479 = vmatprep.subr.mxu0 0.0
      %480 = vmatpush1.xpose.msra.mxu0 0.0
      %481 = vmatprep.subr.mxu0 0.0
      %482 = vmatpush1.xpose.msra.mxu0 0.0
      %483 = vmatprep.subr.mxu0 0.0
      %484 = vmatpush1.xpose.msra.mxu0 0.0
      %485 = vmatprep.subr.mxu0 0.0
      %486 = vmatpush1.xpose.msra.mxu0 0.0
      %487 = vmatprep.subr.mxu0 0.0
      %488 = vmatpush1.xpose.msra.mxu0 0.0
      %489 = vmatprep.subr.mxu0 0.0
      %490 = vmatpush1.xpose.msra.mxu0 0.0
      %491 = vmatprep.subr.mxu0 0.0
      %492 = vmatpush1.xpose.msra.mxu0 0.0
      %493 = vmatprep.subr.mxu0 0.0
      %494 = vmatpush1.xpose.msra.mxu0 0.0
      %495 = vmatprep.subr.mxu0 0.0
      %496 = vmatpush1.xpose.msra.mxu0 0.0
      %497 = vmatprep.subr.mxu0 0.0
      %498 = vmatpush1.xpose.msra.mxu0 0.0
      %499 = vmatprep.subr.mxu0 0.0
      %500 = vmatpush1.xpose.msra.mxu0 0.0
      %501 = vmatprep.subr.mxu0 0.0
      %502 = vmatpush1.xpose.msra.mxu0 0.0
      %503 = vmatprep.subr.mxu0 0.0
      %504 = vmatpush1.xpose.msra.mxu0 0.0
      %505 = vmatprep.subr.mxu0 0.0
      %506 = vmatpush1.xpose.msra.mxu0 0.0
      %507 = vmatprep.subr.mxu0 0.0
      %508 = vmatpush1.xpose.msra.mxu0 0.0
      %509 = vmatprep.subr.mxu0 0.0
      %510 = vmatpush1.xpose.msra.mxu0 0.0
      %511 = vmatprep.subr.mxu0 0.0
      %512 = vmatpush1.xpose.msra.mxu0 0.0
      %513 = vmatprep.subr.mxu0 0.0
      %514 = vmatpush1.xpose.msra.mxu0 0.0
      %515 = vmatprep.subr.mxu0 0.0
      %516 = vmatpush1.xpose.msra.mxu0 0.0
      %517 = vmatprep.subr.mxu0 0.0
      %518 = vmatpush1.xpose.msra.mxu0 0.0
      %519 = vmatprep.subr.mxu0 0.0
      %520 = vmatpush1.xpose.msra.mxu0 0.0
      %521 = vmatprep.subr.mxu0 0.0
      %522 = vmatpush1.xpose.msra.mxu0 0.0
      %523 = vmatprep.subr.mxu0 0.0
      %524 = vmatpush1.xpose.msra.mxu0 0.0
      %525 = vmatprep.subr.mxu0 0.0
      %526 = vmatpush1.xpose.msra.mxu0 0.0
      %527 = vmatprep.subr.mxu0 0.0
      %528 = vmatpush1.xpose.msra.mxu0 0.0
      %529 = vmatprep.subr.mxu0 0.0
      %530 = vmatpush1.xpose.msra.mxu0 0.0
      %531 = vmatprep.subr.mxu0 0.0
      %532 = vmatpush1.xpose.msra.mxu0 0.0
      %533 = vmatprep.subr.mxu0 0.0
      %534 = vmatpush1.xpose.msra.mxu0 0.0
      %535 = vmatprep.subr.mxu0 0.0
      %536 = vmatpush1.xpose.msra.mxu0 0.0
      %537 = vmatprep.subr.mxu0 0.0
      %538 = vmatpush1.xpose.msra.mxu0 0.0
      %539 = vmatprep.mubr.f32.mxu0 0.0
      %v540 = vand.u32 %v243, 4294901760
      %v541 = vsub.f32 %v243, %v540
      %v542 = vand.u32 %v541, 4294901760
      %543 = vmatmul.mubr.f32.gmra.mrb[0].mxu0 %v542
      %v544 = vpop.f32.mrb[0].mxu0
      %v545 = vadd.f32 %v471, %v544
      %v546 = vpop.f32.mrb[0].mxu0
      %547 = vdwg.mxu0
      %548 = vmatprep.subr.mxu0 0.0
      %v549 = vand.u32 %v246, 4294901760
      %v550 = vsub.f32 %v246, %v549
      %v551 = vand.u32 %v550, 4294901760
      %552 = vmatpush1.xpose.msra.mxu0 %v551
      %553 = vmatprep.subr.mxu0 0.0
      %554 = vmatpush1.xpose.msra.mxu0 0.0
      %555 = vmatprep.subr.mxu0 0.0
      %556 = vmatpush1.xpose.msra.mxu0 0.0
      %557 = vmatprep.subr.mxu0 0.0
      %558 = vmatpush1.xpose.msra.mxu0 0.0
      %559 = vmatprep.subr.mxu0 0.0
      %560 = vmatpush1.xpose.msra.mxu0 0.0
      %561 = vmatprep.subr.mxu0 0.0
      %562 = vmatpush1.xpose.msra.mxu0 0.0
      %563 = vmatprep.subr.mxu0 0.0
      %564 = vmatpush1.xpose.msra.mxu0 0.0
      %565 = vmatprep.subr.mxu0 0.0
      %566 = vmatpush1.xpose.msra.mxu0 0.0
      %567 = vmatprep.subr.mxu0 0.0
      %568 = vmatpush1.xpose.msra.mxu0 0.0
      %569 = vmatprep.subr.mxu0 0.0
      %570 = vmatpush1.xpose.msra.mxu0 0.0
      %571 = vmatprep.subr.mxu0 0.0
      %572 = vmatpush1.xpose.msra.mxu0 0.0
      %573 = vmatprep.subr.mxu0 0.0
      %574 = vmatpush1.xpose.msra.mxu0 0.0
      %575 = vmatprep.subr.mxu0 0.0
      %576 = vmatpush1.xpose.msra.mxu0 0.0
      %577 = vmatprep.subr.mxu0 0.0
      %578 = vmatpush1.xpose.msra.mxu0 0.0
      %579 = vmatprep.subr.mxu0 0.0
      %580 = vmatpush1.xpose.msra.mxu0 0.0
      %581 = vmatprep.subr.mxu0 0.0
      %582 = vmatpush1.xpose.msra.mxu0 0.0
      %583 = vmatprep.subr.mxu0 0.0
      %584 = vmatpush1.xpose.msra.mxu0 0.0
      %585 = vmatprep.subr.mxu0 0.0
      %586 = vmatpush1.xpose.msra.mxu0 0.0
      %587 = vmatprep.subr.mxu0 0.0
      %588 = vmatpush1.xpose.msra.mxu0 0.0
      %589 = vmatprep.subr.mxu0 0.0
      %590 = vmatpush1.xpose.msra.mxu0 0.0
      %591 = vmatprep.subr.mxu0 0.0
      %592 = vmatpush1.xpose.msra.mxu0 0.0
      %593 = vmatprep.subr.mxu0 0.0
      %594 = vmatpush1.xpose.msra.mxu0 0.0
      %595 = vmatprep.subr.mxu0 0.0
      %596 = vmatpush1.xpose.msra.mxu0 0.0
      %597 = vmatprep.subr.mxu0 0.0
      %598 = vmatpush1.xpose.msra.mxu0 0.0
      %599 = vmatprep.subr.mxu0 0.0
      %600 = vmatpush1.xpose.msra.mxu0 0.0
      %601 = vmatprep.subr.mxu0 0.0
      %602 = vmatpush1.xpose.msra.mxu0 0.0
      %603 = vmatprep.subr.mxu0 0.0
      %604 = vmatpush1.xpose.msra.mxu0 0.0
      %605 = vmatprep.subr.mxu0 0.0
      %606 = vmatpush1.xpose.msra.mxu0 0.0
      %607 = vmatprep.subr.mxu0 0.0
      %608 = vmatpush1.xpose.msra.mxu0 0.0
      %609 = vmatprep.subr.mxu0 0.0
      %610 = vmatpush1.xpose.msra.mxu0 0.0
      %611 = vmatprep.subr.mxu0 0.0
      %612 = vmatpush1.xpose.msra.mxu0 0.0
      %613 = vmatprep.subr.mxu0 0.0
      %614 = vmatpush1.xpose.msra.mxu0 0.0
      %615 = vmatprep.mubr.f32.mxu0 0.0
      %v616 = vand.u32 %v243, 4294901760
      %617 = vmatmul.mubr.f32.gmra.mrb[0].mxu0 %v616
      %v618 = vpop.f32.mrb[0].mxu0
      %v619 = vadd.f32 %v545, %v618
      %v620 = vpop.f32.mrb[0].mxu0
      %621 = vdwg.mxu0
      %622 = vmatprep.subr.mxu0 0.0
      %v623 = vand.u32 %v246, 4294901760
      %624 = vmatpush1.xpose.msra.mxu0 %v623
      %625 = vmatprep.subr.mxu0 0.0
      %626 = vmatpush1.xpose.msra.mxu0 0.0
      %627 = vmatprep.subr.mxu0 0.0
      %628 = vmatpush1.xpose.msra.mxu0 0.0
      %629 = vmatprep.subr.mxu0 0.0
      %630 = vmatpush1.xpose.msra.mxu0 0.0
      %631 = vmatprep.subr.mxu0 0.0
      %632 = vmatpush1.xpose.msra.mxu0 0.0
      %633 = vmatprep.subr.mxu0 0.0
      %634 = vmatpush1.xpose.msra.mxu0 0.0
      %635 = vmatprep.subr.mxu0 0.0
      %636 = vmatpush1.xpose.msra.mxu0 0.0
      %637 = vmatprep.subr.mxu0 0.0
      %638 = vmatpush1.xpose.msra.mxu0 0.0
      %639 = vmatprep.subr.mxu0 0.0
      %640 = vmatpush1.xpose.msra.mxu0 0.0
      %641 = vmatprep.subr.mxu0 0.0
      %642 = vmatpush1.xpose.msra.mxu0 0.0
      %643 = vmatprep.subr.mxu0 0.0
      %644 = vmatpush1.xpose.msra.mxu0 0.0
      %645 = vmatprep.subr.mxu0 0.0
      %646 = vmatpush1.xpose.msra.mxu0 0.0
      %647 = vmatprep.subr.mxu0 0.0
      %648 = vmatpush1.xpose.msra.mxu0 0.0
      %649 = vmatprep.subr.mxu0 0.0
      %650 = vmatpush1.xpose.msra.mxu0 0.0
      %651 = vmatprep.subr.mxu0 0.0
      %652 = vmatpush1.xpose.msra.mxu0 0.0
      %653 = vmatprep.subr.mxu0 0.0
      %654 = vmatpush1.xpose.msra.mxu0 0.0
      %655 = vmatprep.subr.mxu0 0.0
      %656 = vmatpush1.xpose.msra.mxu0 0.0
      %657 = vmatprep.subr.mxu0 0.0
      %658 = vmatpush1.xpose.msra.mxu0 0.0
      %659 = vmatprep.subr.mxu0 0.0
      %660 = vmatpush1.xpose.msra.mxu0 0.0
      %661 = vmatprep.subr.mxu0 0.0
      %662 = vmatpush1.xpose.msra.mxu0 0.0
      %663 = vmatprep.subr.mxu0 0.0
      %664 = vmatpush1.xpose.msra.mxu0 0.0
      %665 = vmatprep.subr.mxu0 0.0
      %666 = vmatpush1.xpose.msra.mxu0 0.0
      %667 = vmatprep.subr.mxu0 0.0
      %668 = vmatpush1.xpose.msra.mxu0 0.0
      %669 = vmatprep.subr.mxu0 0.0
      %670 = vmatpush1.xpose.msra.mxu0 0.0
      %671 = vmatprep.subr.mxu0 0.0
      %672 = vmatpush1.xpose.msra.mxu0 0.0
      %673 = vmatprep.subr.mxu0 0.0
      %674 = vmatpush1.xpose.msra.mxu0 0.0
      %675 = vmatprep.subr.mxu0 0.0
      %676 = vmatpush1.xpose.msra.mxu0 0.0
      %677 = vmatprep.subr.mxu0 0.0
      %678 = vmatpush1.xpose.msra.mxu0 0.0
      %679 = vmatprep.subr.mxu0 0.0
      %680 = vmatpush1.xpose.msra.mxu0 0.0
      %681 = vmatprep.subr.mxu0 0.0
      %682 = vmatpush1.xpose.msra.mxu0 0.0
      %683 = vmatprep.subr.mxu0 0.0
      %684 = vmatpush1.xpose.msra.mxu0 0.0
      %685 = vmatprep.subr.mxu0 0.0
      %686 = vmatpush1.xpose.msra.mxu0 0.0
      %687 = vmatprep.mubr.f32.mxu0 0.0
      %v688 = vand.u32 %v243, 4294901760
      %689 = vmatmul.mubr.f32.gmra.mrb[0].mxu0 %v688
      %v690 = vpop.f32.mrb[0].mxu0
      %v691 = vadd.f32 %v619, %v690
      %v692 = vpop.f32.mrb[0].mxu0
      %693 = vdwg.mxu0
      %v694 = vmul.f32 %v691, 0.70710677
      %vm695 = vcmask 64512
      %v696 = vsel %vm695, %v694, -inf
      %697 = vmax.xlane.f32.xlu0 %v696
      %v698 = vpop.xlane.xlu0 %697
      %v699 = vsub.f32 %v694, %v698
      %v700 = vmul.f32 %v699, 1.442695
      %v701 = vpow.pop %v700
      %v702 = vsel %vm695, %v701, 0.0
      %703 = vadd.xlane.f32.xlu0 %v702
      %v704 = vpop.xlane.xlu0 %703
      %v705 = vrcp.pop %v704
      %v706 = vmul.f32 %v701, %v705
      %v708 = vsel %vm695, %v706, 0
      %710 = vmatprep.subr.mxu0 0.0
      %v711 = vand.u32 %v240, 4294901760
      %712 = vmatpush1.msra.mxu0 %v711
      %713 = vmatprep.subr.mxu0 0.0
      %714 = vmatpush1.msra.mxu0 0.0
      %715 = vmatprep.subr.mxu0 0.0
      %716 = vmatpush1.msra.mxu0 0.0
      %717 = vmatprep.subr.mxu0 0.0
      %718 = vmatpush1.msra.mxu0 0.0
      %719 = vmatprep.subr.mxu0 0.0
      %720 = vmatpush1.msra.mxu0 0.0
      %721 = vmatprep.subr.mxu0 0.0
      %722 = vmatpush1.msra.mxu0 0.0
      %723 = vmatprep.subr.mxu0 0.0
      %724 = vmatpush1.msra.mxu0 0.0
      %725 = vmatprep.subr.mxu0 0.0
      %726 = vmatpush1.msra.mxu0 0.0
      %727 = vmatprep.subr.mxu0 0.0
      %728 = vmatpush1.msra.mxu0 0.0
      %729 = vmatprep.subr.mxu0 0.0
      %730 = vmatpush1.msra.mxu0 0.0
      %731 = vmatprep.subr.mxu0 0.0
      %732 = vmatpush1.msra.mxu0 0.0
      %733 = vmatprep.subr.mxu0 0.0
      %734 = vmatpush1.msra.mxu0 0.0
      %735 = vmatprep.subr.mxu0 0.0
      %736 = vmatpush1.msra.mxu0 0.0
      %737 = vmatprep.subr.mxu0 0.0
      %738 = vmatpush1.msra.mxu0 0.0
      %739 = vmatprep.subr.mxu0 0.0
      %740 = vmatpush1.msra.mxu0 0.0
      %741 = vmatprep.subr.mxu0 0.0
      %742 = vmatpush1.msra.mxu0 0.0
      %743 = vmatprep.subr.mxu0 0.0
      %744 = vmatpush1.msra.mxu0 0.0
      %745 = vmatprep.subr.mxu0 0.0
      %746 = vmatpush1.msra.mxu0 0.0
      %747 = vmatprep.subr.mxu0 0.0
      %748 = vmatpush1.msra.mxu0 0.0
      %749 = vmatprep.subr.mxu0 0.0
      %750 = vmatpush1.msra.mxu0 0.0
      %751 = vmatprep.subr.mxu0 0.0
      %752 = vmatpush1.msra.mxu0 0.0
      %753 = vmatprep.subr.mxu0 0.0
      %754 = vmatpush1.msra.mxu0 0.0
      %755 = vmatprep.subr.mxu0 0.0
      %756 = vmatpush1.msra.mxu0 0.0
      %757 = vmatprep.subr.mxu0 0.0
      %758 = vmatpush1.msra.mxu0 0.0
      %759 = vmatprep.subr.mxu0 0.0
      %760 = vmatpush1.msra.mxu0 0.0
      %761 = vmatprep.subr.mxu0 0.0
      %762 = vmatpush1.msra.mxu0 0.0
      %763 = vmatprep.subr.mxu0 0.0
      %764 = vmatpush1.msra.mxu0 0.0
      %765 = vmatprep.subr.mxu0 0.0
      %766 = vmatpush1.msra.mxu0 0.0
      %767 = vmatprep.subr.mxu0 0.0
      %768 = vmatpush1.msra.mxu0 0.0
      %769 = vmatprep.subr.mxu0 0.0
      %770 = vmatpush1.msra.mxu0 0.0
      %771 = vmatprep.subr.mxu0 0.0
      %772 = vmatpush1.msra.mxu0 0.0
      %773 = vmatprep.subr.mxu0 0.0
      %774 = vmatpush1.msra.mxu0 0.0
      %775 = vmatprep.mubr.f32.mxu0 0.0
      %v776 = vand.u32 %v708, 4294901760
      %v777 = vsub.f32 %v708, %v776
      %v778 = vand.u32 %v777, 4294901760
      %v779 = vsub.f32 %v777, %v778
      %v780 = vand.u32 %v779, 4294901760
      %781 = vmatmul.mubr.f32.gmra.mrb[0].mxu0 %v780
      %v782 = vpop.f32.mrb[0].mxu0
      %v783 = vadd.f32 0.0, %v782
      %v784 = vpop.f32.mrb[0].mxu0
      %785 = vdwg.mxu0
      %786 = vmatprep.subr.mxu0 0.0
      %v787 = vand.u32 %v240, 4294901760
      %v788 = vsub.f32 %v240, %v787
      %v789 = vand.u32 %v788, 4294901760
      %v790 = vsub.f32 %v788, %v789
      %v791 = vand.u32 %v790, 4294901760
      %792 = vmatpush1.msra.mxu0 %v791
      %793 = vmatprep.subr.mxu0 0.0
      %794 = vmatpush1.msra.mxu0 0.0
      %795 = vmatprep.subr.mxu0 0.0
      %796 = vmatpush1.msra.mxu0 0.0
      %797 = vmatprep.subr.mxu0 0.0
      %798 = vmatpush1.msra.mxu0 0.0
      %799 = vmatprep.subr.mxu0 0.0
      %800 = vmatpush1.msra.mxu0 0.0
      %801 = vmatprep.subr.mxu0 0.0
      %802 = vmatpush1.msra.mxu0 0.0
      %803 = vmatprep.subr.mxu0 0.0
      %804 = vmatpush1.msra.mxu0 0.0
      %805 = vmatprep.subr.mxu0 0.0
      %806 = vmatpush1.msra.mxu0 0.0
      %807 = vmatprep.subr.mxu0 0.0
      %808 = vmatpush1.msra.mxu0 0.0
      %809 = vmatprep.subr.mxu0 0.0
      %810 = vmatpush1.msra.mxu0 0.0
      %811 = vmatprep.subr.mxu0 0.0
      %812 = vmatpush1.msra.mxu0 0.0
      %813 = vmatprep.subr.mxu0 0.0
      %814 = vmatpush1.msra.mxu0 0.0
      %815 = vmatprep.subr.mxu0 0.0
      %816 = vmatpush1.msra.mxu0 0.0
      %817 = vmatprep.subr.mxu0 0.0
      %818 = vmatpush1.msra.mxu0 0.0
      %819 = vmatprep.subr.mxu0 0.0
      %820 = vmatpush1.msra.mxu0 0.0
      %821 = vmatprep.subr.mxu0 0.0
      %822 = vmatpush1.msra.mxu0 0.0
      %823 = vmatprep.subr.mxu0 0.0
      %824 = vmatpush1.msra.mxu0 0.0
      %825 = vmatprep.subr.mxu0 0.0
      %826 = vmatpush1.msra.mxu0 0.0
      %827 = vmatprep.subr.mxu0 0.0
      %828 = vmatpush1.msra.mxu0 0.0
      %829 = vmatprep.subr.mxu0 0.0
      %830 = vmatpush1.msra.mxu0 0.0
      %831 = vmatprep.subr.mxu0 0.0
      %832 = vmatpush1.msra.mxu0 0.0
      %833 = vmatprep.subr.mxu0 0.0
      %834 = vmatpush1.msra.mxu0 0.0
      %835 = vmatprep.subr.mxu0 0.0
      %836 = vmatpush1.msra.mxu0 0.0
      %837 = vmatprep.subr.mxu0 0.0
      %838 = vmatpush1.msra.mxu0 0.0
      %839 = vmatprep.subr.mxu0 0.0
      %840 = vmatpush1.msra.mxu0 0.0
      %841 = vmatprep.subr.mxu0 0.0
      %842 = vmatpush1.msra.mxu0 0.0
      %843 = vmatprep.subr.mxu0 0.0
      %844 = vmatpush1.msra.mxu0 0.0
      %845 = vmatprep.subr.mxu0 0.0
      %846 = vmatpush1.msra.mxu0 0.0
      %847 = vmatprep.subr.mxu0 0.0
      %848 = vmatpush1.msra.mxu0 0.0
      %849 = vmatprep.subr.mxu0 0.0
      %850 = vmatpush1.msra.mxu0 0.0
      %851 = vmatprep.subr.mxu0 0.0
      %852 = vmatpush1.msra.mxu0 0.0
      %853 = vmatprep.subr.mxu0 0.0
      %854 = vmatpush1.msra.mxu0 0.0
      %855 = vmatprep.mubr.f32.mxu0 0.0
      %v856 = vand.u32 %v708, 4294901760
      %857 = vmatmul.mubr.f32.gmra.mrb[0].mxu0 %v856
      %v858 = vpop.f32.mrb[0].mxu0
      %v859 = vadd.f32 %v783, %v858
      %v860 = vpop.f32.mrb[0].mxu0
      %861 = vdwg.mxu0
      %862 = vmatprep.subr.mxu0 0.0
      %v863 = vand.u32 %v240, 4294901760
      %v864 = vsub.f32 %v240, %v863
      %865 = vmatpush1.msra.mxu0 %v864
      %866 = vmatprep.subr.mxu0 0.0
      %867 = vmatpush1.msra.mxu0 0.0
      %868 = vmatprep.subr.mxu0 0.0
      %869 = vmatpush1.msra.mxu0 0.0
      %870 = vmatprep.subr.mxu0 0.0
      %871 = vmatpush1.msra.mxu0 0.0
      %872 = vmatprep.subr.mxu0 0.0
      %873 = vmatpush1.msra.mxu0 0.0
      %874 = vmatprep.subr.mxu0 0.0
      %875 = vmatpush1.msra.mxu0 0.0
      %876 = vmatprep.subr.mxu0 0.0
      %877 = vmatpush1.msra.mxu0 0.0
      %878 = vmatprep.subr.mxu0 0.0
      %879 = vmatpush1.msra.mxu0 0.0
      %880 = vmatprep.subr.mxu0 0.0
      %881 = vmatpush1.msra.mxu0 0.0
      %882 = vmatprep.subr.mxu0 0.0
      %883 = vmatpush1.msra.mxu0 0.0
      %884 = vmatprep.subr.mxu0 0.0
      %885 = vmatpush1.msra.mxu0 0.0
      %886 = vmatprep.subr.mxu0 0.0
      %887 = vmatpush1.msra.mxu0 0.0
      %888 = vmatprep.subr.mxu0 0.0
      %889 = vmatpush1.msra.mxu0 0.0
      %890 = vmatprep.subr.mxu0 0.0
      %891 = vmatpush1.msra.mxu0 0.0
      %892 = vmatprep.subr.mxu0 0.0
      %893 = vmatpush1.msra.mxu0 0.0
      %894 = vmatprep.subr.mxu0 0.0
      %895 = vmatpush1.msra.mxu0 0.0
      %896 = vmatprep.subr.mxu0 0.0
      %897 = vmatpush1.msra.mxu0 0.0
      %898 = vmatprep.subr.mxu0 0.0
      %899 = vmatpush1.msra.mxu0 0.0
      %900 = vmatprep.subr.mxu0 0.0
      %901 = vmatpush1.msra.mxu0 0.0
      %902 = vmatprep.subr.mxu0 0.0
      %903 = vmatpush1.msra.mxu0 0.0
      %904 = vmatprep.subr.mxu0 0.0
      %905 = vmatpush1.msra.mxu0 0.0
      %906 = vmatprep.subr.mxu0 0.0
      %907 = vmatpush1.msra.mxu0 0.0
      %908 = vmatprep.subr.mxu0 0.0
      %909 = vmatpush1.msra.mxu0 0.0
      %910 = vmatprep.subr.mxu0 0.0
      %911 = vmatpush1.msra.mxu0 0.0
      %912 = vmatprep.subr.mxu0 0.0
      %913 = vmatpush1.msra.mxu0 0.0
      %914 = vmatprep.subr.mxu0 0.0
      %915 = vmatpush1.msra.mxu0 0.0
      %916 = vmatprep.subr.mxu0 0.0
      %917 = vmatpush1.msra.mxu0 0.0
      %918 = vmatprep.subr.mxu0 0.0
      %919 = vmatpush1.msra.mxu0 0.0
      %920 = vmatprep.subr.mxu0 0.0
      %921 = vmatpush1.msra.mxu0 0.0
      %922 = vmatprep.subr.mxu0 0.0
      %923 = vmatpush1.msra.mxu0 0.0
      %924 = vmatprep.subr.mxu0 0.0
      %925 = vmatpush1.msra.mxu0 0.0
      %926 = vmatprep.subr.mxu0 0.0
      %927 = vmatpush1.msra.mxu0 0.0
      %928 = vmatprep.mubr.f32.mxu0 0.0
      %v929 = vand.u32 %v708, 4294901760
      %v930 = vsub.f32 %v708, %v929
      %931 = vmatmul.mubr.f32.gmra.mrb[0].mxu0 %v930
      %v932 = vpop.f32.mrb[0].mxu0
      %v933 = vadd.f32 %v859, %v932
      %v934 = vpop.f32.mrb[0].mxu0
      %935 = vdwg.mxu0
      %936 = vmatprep.subr.mxu0 0.0
      %v937 = vand.u32 %v240, 4294901760
      %938 = vmatpush1.msra.mxu0 %v937
      %939 = vmatprep.subr.mxu0 0.0
      %940 = vmatpush1.msra.mxu0 0.0
      %941 = vmatprep.subr.mxu0 0.0
      %942 = vmatpush1.msra.mxu0 0.0
      %943 = vmatprep.subr.mxu0 0.0
      %944 = vmatpush1.msra.mxu0 0.0
      %945 = vmatprep.subr.mxu0 0.0
      %946 = vmatpush1.msra.mxu0 0.0
      %947 = vmatprep.subr.mxu0 0.0
      %948 = vmatpush1.msra.mxu0 0.0
      %949 = vmatprep.subr.mxu0 0.0
      %950 = vmatpush1.msra.mxu0 0.0
      %951 = vmatprep.subr.mxu0 0.0
      %952 = vmatpush1.msra.mxu0 0.0
      %953 = vmatprep.subr.mxu0 0.0
      %954 = vmatpush1.msra.mxu0 0.0
      %955 = vmatprep.subr.mxu0 0.0
      %956 = vmatpush1.msra.mxu0 0.0
      %957 = vmatprep.subr.mxu0 0.0
      %958 = vmatpush1.msra.mxu0 0.0
      %959 = vmatprep.subr.mxu0 0.0
      %960 = vmatpush1.msra.mxu0 0.0
      %961 = vmatprep.subr.mxu0 0.0
      %962 = vmatpush1.msra.mxu0 0.0
      %963 = vmatprep.subr.mxu0 0.0
      %964 = vmatpush1.msra.mxu0 0.0
      %965 = vmatprep.subr.mxu0 0.0
      %966 = vmatpush1.msra.mxu0 0.0
      %967 = vmatprep.subr.mxu0 0.0
      %968 = vmatpush1.msra.mxu0 0.0
      %969 = vmatprep.subr.mxu0 0.0
      %970 = vmatpush1.msra.mxu0 0.0
      %971 = vmatprep.subr.mxu0 0.0
      %972 = vmatpush1.msra.mxu0 0.0
      %973 = vmatprep.subr.mxu0 0.0
      %974 = vmatpush1.msra.mxu0 0.0
      %975 = vmatprep.subr.mxu0 0.0
      %976 = vmatpush1.msra.mxu0 0.0
      %977 = vmatprep.subr.mxu0 0.0
      %978 = vmatpush1.msra.mxu0 0.0
      %979 = vmatprep.subr.mxu0 0.0
      %980 = vmatpush1.msra.mxu0 0.0
      %981 = vmatprep.subr.mxu0 0.0
      %982 = vmatpush1.msra.mxu0 0.0
      %983 = vmatprep.subr.mxu0 0.0
      %984 = vmatpush1.msra.mxu0 0.0
      %985 = vmatprep.subr.mxu0 0.0
      %986 = vmatpush1.msra.mxu0 0.0
      %987 = vmatprep.subr.mxu0 0.0
      %988 = vmatpush1.msra.mxu0 0.0
      %989 = vmatprep.subr.mxu0 0.0
      %990 = vmatpush1.msra.mxu0 0.0
      %991 = vmatprep.subr.mxu0 0.0
      %992 = vmatpush1.msra.mxu0 0.0
      %993 = vmatprep.subr.mxu0 0.0
      %994 = vmatpush1.msra.mxu0 0.0
      %995 = vmatprep.subr.mxu0 0.0
      %996 = vmatpush1.msra.mxu0 0.0
      %997 = vmatprep.subr.mxu0 0.0
      %998 = vmatpush1.msra.mxu0 0.0
      %999 = vmatprep.subr.mxu0 0.0
      %1000 = vmatpush1.msra.mxu0 0.0
      %1001 = vmatprep.mubr.f32.mxu0 0.0
      %v1002 = vand.u32 %v708, 4294901760
      %v1003 = vsub.f32 %v708, %v1002
      %v1004 = vand.u32 %v1003, 4294901760
      %1005 = vmatmul.mubr.f32.gmra.mrb[0].mxu0 %v1004
      %v1006 = vpop.f32.mrb[0].mxu0
      %v1007 = vadd.f32 %v933, %v1006
      %v1008 = vpop.f32.mrb[0].mxu0
      %1009 = vdwg.mxu0
      %1010 = vmatprep.subr.mxu0 0.0
      %v1011 = vand.u32 %v240, 4294901760
      %v1012 = vsub.f32 %v240, %v1011
      %v1013 = vand.u32 %v1012, 4294901760
      %1014 = vmatpush1.msra.mxu0 %v1013
      %1015 = vmatprep.subr.mxu0 0.0
      %1016 = vmatpush1.msra.mxu0 0.0
      %1017 = vmatprep.subr.mxu0 0.0
      %1018 = vmatpush1.msra.mxu0 0.0
      %1019 = vmatprep.subr.mxu0 0.0
      %1020 = vmatpush1.msra.mxu0 0.0
      %1021 = vmatprep.subr.mxu0 0.0
      %1022 = vmatpush1.msra.mxu0 0.0
      %1023 = vmatprep.subr.mxu0 0.0
      %1024 = vmatpush1.msra.mxu0 0.0
      %1025 = vmatprep.subr.mxu0 0.0
      %1026 = vmatpush1.msra.mxu0 0.0
      %1027 = vmatprep.subr.mxu0 0.0
      %1028 = vmatpush1.msra.mxu0 0.0
      %1029 = vmatprep.subr.mxu0 0.0
      %1030 = vmatpush1.msra.mxu0 0.0
      %1031 = vmatprep.subr.mxu0 0.0
      %1032 = vmatpush1.msra.mxu0 0.0
      %1033 = vmatprep.subr.mxu0 0.0
      %1034 = vmatpush1.msra.mxu0 0.0
      %1035 = vmatprep.subr.mxu0 0.0
      %1036 = vmatpush1.msra.mxu0 0.0
      %1037 = vmatprep.subr.mxu0 0.0
      %1038 = vmatpush1.msra.mxu0 0.0
      %1039 = vmatprep.subr.mxu0 0.0
      %1040 = vmatpush1.msra.mxu0 0.0
      %1041 = vmatprep.subr.mxu0 0.0
      %1042 = vmatpush1.msra.mxu0 0.0
      %1043 = vmatprep.subr.mxu0 0.0
      %1044 = vmatpush1.msra.mxu0 0.0
      %1045 = vmatprep.subr.mxu0 0.0
      %1046 = vmatpush1.msra.mxu0 0.0
      %1047 = vmatprep.subr.mxu0 0.0
      %1048 = vmatpush1.msra.mxu0 0.0
      %1049 = vmatprep.subr.mxu0 0.0
      %1050 = vmatpush1.msra.mxu0 0.0
      %1051 = vmatprep.subr.mxu0 0.0
      %1052 = vmatpush1.msra.mxu0 0.0
      %1053 = vmatprep.subr.mxu0 0.0
      %1054 = vmatpush1.msra.mxu0 0.0
      %1055 = vmatprep.subr.mxu0 0.0
      %1056 = vmatpush1.msra.mxu0 0.0
      %1057 = vmatprep.subr.mxu0 0.0
      %1058 = vmatpush1.msra.mxu0 0.0
      %1059 = vmatprep.subr.mxu0 0.0
      %1060 = vmatpush1.msra.mxu0 0.0
      %1061 = vmatprep.subr.mxu0 0.0
      %1062 = vmatpush1.msra.mxu0 0.0
      %1063 = vmatprep.subr.mxu0 0.0
      %1064 = vmatpush1.msra.mxu0 0.0
      %1065 = vmatprep.subr.mxu0 0.0
      %1066 = vmatpush1.msra.mxu0 0.0
      %1067 = vmatprep.subr.mxu0 0.0
      %1068 = vmatpush1.msra.mxu0 0.0
      %1069 = vmatprep.subr.mxu0 0.0
      %1070 = vmatpush1.msra.mxu0 0.0
      %1071 = vmatprep.subr.mxu0 0.0
      %1072 = vmatpush1.msra.mxu0 0.0
      %1073 = vmatprep.subr.mxu0 0.0
      %1074 = vmatpush1.msra.mxu0 0.0
      %1075 = vmatprep.subr.mxu0 0.0
      %1076 = vmatpush1.msra.mxu0 0.0
      %1077 = vmatprep.mubr.f32.mxu0 0.0
      %v1078 = vand.u32 %v708, 4294901760
      %1079 = vmatmul.mubr.f32.gmra.mrb[0].mxu0 %v1078
      %v1080 = vpop.f32.mrb[0].mxu0
      %v1081 = vadd.f32 %v1007, %v1080
      %v1082 = vpop.f32.mrb[0].mxu0
      %1083 = vdwg.mxu0
      %1084 = vmatprep.subr.mxu0 0.0
      %v1085 = vand.u32 %v240, 4294901760
      %1086 = vmatpush1.msra.mxu0 %v1085
      %1087 = vmatprep.subr.mxu0 0.0
      %1088 = vmatpush1.msra.mxu0 0.0
      %1089 = vmatprep.subr.mxu0 0.0
      %1090 = vmatpush1.msra.mxu0 0.0
      %1091 = vmatprep.subr.mxu0 0.0
      %1092 = vmatpush1.msra.mxu0 0.0
      %1093 = vmatprep.subr.mxu0 0.0
      %1094 = vmatpush1.msra.mxu0 0.0
      %1095 = vmatprep.subr.mxu0 0.0
      %1096 = vmatpush1.msra.mxu0 0.0
      %1097 = vmatprep.subr.mxu0 0.0
      %1098 = vmatpush1.msra.mxu0 0.0
      %1099 = vmatprep.subr.mxu0 0.0
      %1100 = vmatpush1.msra.mxu0 0.0
      %1101 = vmatprep.subr.mxu0 0.0
      %1102 = vmatpush1.msra.mxu0 0.0
      %1103 = vmatprep.subr.mxu0 0.0
      %1104 = vmatpush1.msra.mxu0 0.0
      %1105 = vmatprep.subr.mxu0 0.0
      %1106 = vmatpush1.msra.mxu0 0.0
      %1107 = vmatprep.subr.mxu0 0.0
      %1108 = vmatpush1.msra.mxu0 0.0
      %1109 = vmatprep.subr.mxu0 0.0
      %1110 = vmatpush1.msra.mxu0 0.0
      %1111 = vmatprep.subr.mxu0 0.0
      %1112 = vmatpush1.msra.mxu0 0.0
      %1113 = vmatprep.subr.mxu0 0.0
      %1114 = vmatpush1.msra.mxu0 0.0
      %1115 = vmatprep.subr.mxu0 0.0
      %1116 = vmatpush1.msra.mxu0 0.0
      %1117 = vmatprep.subr.mxu0 0.0
      %1118 = vmatpush1.msra.mxu0 0.0
      %1119 = vmatprep.subr.mxu0 0.0
      %1120 = vmatpush1.msra.mxu0 0.0
      %1121 = vmatprep.subr.mxu0 0.0
      %1122 = vmatpush1.msra.mxu0 0.0
      %1123 = vmatprep.subr.mxu0 0.0
      %1124 = vmatpush1.msra.mxu0 0.0
      %1125 = vmatprep.subr.mxu0 0.0
      %1126 = vmatpush1.msra.mxu0 0.0
      %1127 = vmatprep.subr.mxu0 0.0
      %1128 = vmatpush1.msra.mxu0 0.0
      %1129 = vmatprep.subr.mxu0 0.0
      %1130 = vmatpush1.msra.mxu0 0.0
      %1131 = vmatprep.subr.mxu0 0.0
      %1132 = vmatpush1.msra.mxu0 0.0
      %1133 = vmatprep.subr.mxu0 0.0
      %1134 = vmatpush1.msra.mxu0 0.0
      %1135 = vmatprep.subr.mxu0 0.0
      %1136 = vmatpush1.msra.mxu0 0.0
      %1137 = vmatprep.subr.mxu0 0.0
      %1138 = vmatpush1.msra.mxu0 0.0
      %1139 = vmatprep.subr.mxu0 0.0
      %1140 = vmatpush1.msra.mxu0 0.0
      %1141 = vmatprep.subr.mxu0 0.0
      %1142 = vmatpush1.msra.mxu0 0.0
      %1143 = vmatprep.subr.mxu0 0.0
      %1144 = vmatpush1.msra.mxu0 0.0
      %1145 = vmatprep.subr.mxu0 0.0
      %1146 = vmatpush1.msra.mxu0 0.0
      %1147 = vmatprep.subr.mxu0 0.0
      %1148 = vmatpush1.msra.mxu0 0.0
      %1149 = vmatprep.mubr.f32.mxu0 0.0
      %v1150 = vand.u32 %v708, 4294901760
      %1151 = vmatmul.mubr.f32.gmra.mrb[0].mxu0 %v1150
      %v1152 = vpop.f32.mrb[0].mxu0
      %v1153 = vadd.f32 %v1081, %v1152
      %v1154 = vpop.f32.mrb[0].mxu0
      %1155 = vdwg.mxu0
      %1156 = vst.msk [vmem:[%s237] sm:$0xff] %vm695, %v706
      %1157 = vst.msk [vmem:[%s233] sm:$0xff] %vm241, %v1153
      %p1158 = scmp.lt.s32.totalorder %s16, 15
      %s1159 = scalar_select %p1158, %s16, 15
      %s1160 = smul.addr %s1159, 8
      %s1161 = scalar_lea.vmem %s3, %s1160
      %p1162 = scmp.lt.s32.totalorder %s16, 15
      %s1163 = scalar_select %p1162, %s16, 15
      %s1164 = smul.addr %s1163, 8
      %s1165 = scalar_lea.vmem %s4, %s1164
      // Predicated region
      $region33: #{multi_head_attention.4} parent=31 // pred_check
        %p1166 = pneg %p112
      $region34: #{multi_head_attention.4} parent=31 // pred_check_branch
        %1168 = sbr.rel (%p1166) target = $region36
      $region35: #{multi_head_attention.4} parent=31 // pred_region
        _
      $region36: #{multi_head_attention.4} parent=31 // pred_fallthru
        _
      // Predicated region
      $region37: #{multi_head_attention.4} parent=31 // pred_check
        %p1169 = pneg %p138
      $region38: #{multi_head_attention.4} parent=31 // pred_check_branch
        %1171 = sbr.rel (%p1169) target = $region40
      $region39: #{multi_head_attention.4} parent=31 // pred_region
        _
      $region40: #{multi_head_attention.4} parent=31 // pred_fallthru
        _
    $region32: #{multi_head_attention.4} parent=5 // pred_fallthru
      _
    %p1172 = scmp.le.s32.totalorder 2, %s11
    // Predicated region
    $region41: #{multi_head_attention.4} parent=5 // pred_check
      %p1173 = pneg %p1172
    $region42: #{multi_head_attention.4} parent=5 // pred_check_branch
      %1175 = sbr.rel (%p1173) target = $region44
    $region43: #{multi_head_attention.4} parent=5 // pred_region
      %s1176 = ssub.s32 %s11, 2
      // Predicated region
      $region45: #{multi_head_attention.4} parent=43 // pred_check
        %p1177 = pneg %p118
      $region46: #{multi_head_attention.4} parent=43 // pred_check_branch
        %1179 = sbr.rel (%p1177) target = $region48
      $region47: #{multi_head_attention.4} parent=43 // pred_region
        %p1180 = scmp.lt.s32.totalorder %s17, 15
        %s1181 = scalar_select %p1180, %s17, 15
        %s1182 = smul.addr %s1181, 8
        %s1183 = scalar_lea.vmem %s3, %s1182
      $region48: #{multi_head_attention.4} parent=43 // pred_fallthru
        _
      // Predicated region
      $region49: #{multi_head_attention.4} parent=43 // pred_check
        %p1184 = pneg %p144
      $region50: #{multi_head_attention.4} parent=43 // pred_check_branch
        %1186 = sbr.rel (%p1184) target = $region52
      $region51: #{multi_head_attention.4} parent=43 // pred_region
        %p1187 = scmp.lt.s32.totalorder %s17, 15
        %s1188 = scalar_select %p1187, %s17, 15
        %s1189 = smul.addr %s1188, 8
        %s1190 = scalar_lea.vmem %s4, %s1189
      $region52: #{multi_head_attention.4} parent=43 // pred_fallthru
        _
    $region44: #{multi_head_attention.4} parent=5 // pred_fallthru
      _
  $region6: #{multi_head_attention.4} parent=0 // loop_footer
    %s15 = sadd.s32 1, %s11
  $region7: #{multi_head_attention.4} parent=0 // loop_footer_branch
    %10 = sbr.rel target = $region3
  $region8: #{multi_head_attention.4} parent=0 // loop_exit
    _

// kernel: multi_head_attention.3
$region0: #{multi_head_attention.3}
  #allocation0 [shape = 'u32[]', space=smem, size = 0x4, offset = 0x4, fixed_abs, tag = 'smem constant byte address 0x4 - core index']
  #allocation1 [shape = 'u32[144,128]{1,0:T(1,128)}', space=vmem, size = 0x12000, scoped, tag = 'internal scratch']
  %s0 = inlined_call_operand.vmem [shape: f32[2,8,128], index: 0, kind: input, shape index: {}]
  %s1 = inlined_call_operand.hbm [shape: f32[2,8,128], index: 1, kind: input, shape index: {}]
  %s2 = inlined_call_operand.hbm [shape: f32[2,8,128], index: 2, kind: input, shape index: {}]
  %s3 = inlined_call_operand.hbm [shape: f32[128,128], index: 3, kind: input, shape index: {}]
  %s4 = inlined_call_operand.hbm [shape: f32[128,128], index: 4, kind: input, shape index: {}]
  %s5 = inlined_call_operand.hbm [shape: f32[128,128], index: 5, kind: input, shape index: {}]
  %s6 = inlined_call_operand.vmem [shape: f32[1,128], index: 6, kind: input, shape index: {}]
  %s7 = inlined_call_operand.vmem [shape: f32[1,128], index: 7, kind: input, shape index: {}]
  %s8 = inlined_call_operand.vmem [shape: f32[1,128], index: 8, kind: input, shape index: {}]
  %s9 = inlined_call_operand.vmem [shape: f32[2,8,128], index: 9, kind: output, shape index: {0}]
  %s10 = inlined_call_operand.vmem [shape: f32[2,8,128], index: 10, kind: output, shape index: {1}]
  %s11 = inlined_call_operand.vmem [shape: f32[2,8,128], index: 11, kind: output, shape index: {2}]
  %12 = xla_tuple %s9, %s10, %s11
  %s13 = sld [smem:[#allocation0]]
  $region105: #{multi_head_attention.3} parent=0
    _
  %s15 = ssub.s32 1, %s13
  %s16 = scalar_select 0, %s15, %s13
  $region1: #{multi_head_attention.3} parent=0
    #allocation2 [shape = 'u8[8192]{0}', space=vmem, size = 0x2000, scoped, tag = 'input window, operand 1']
    #allocation3 [shape = 's32[2]{0}', space=sflag, size = 0x8, scoped, tag = 'scoped memory for multi_head_attention.3']
    #allocation4 [shape = 'u8[8192]{0}', space=vmem, size = 0x2000, scoped, tag = 'input window, operand 2']
    #allocation5 [shape = 's32[2]{0}', space=sflag, size = 0x8, scoped, tag = 'scoped memory for multi_head_attention.3']
    #allocation6 [shape = 'u8[65536]{0}', space=vmem, size = 0x10000, scoped, tag = 'input window, operand 3, single buffered']
    #allocation7 [shape = 'u8[65536]{0}', space=vmem, size = 0x10000, scoped, tag = 'input window, operand 4, single buffered']
    #allocation8 [shape = 's32[1]{0}', space=sflag, size = 0x4, scoped, tag = 'scoped memory for multi_head_attention.3']
    #allocation9 [shape = 'u8[65536]{0}', space=vmem, size = 0x10000, scoped, tag = 'input window, operand 5, single buffered']
    %17 = vsyncpa [#allocation3], 0
    %s18 = scalar_lea.sflag [#allocation3], 1
    %19 = vsyncpa %s18, 0
    %20 = vsyncpa [#allocation5], 0
    %s21 = scalar_lea.sflag [#allocation5], 1
    %22 = vsyncpa %s21, 0
    %23 = vsyncpa [#allocation8], 0
    loop: start=0, step=1, limit=4
    $region2: #{multi_head_attention.3} parent=1 // loop_pre_header
      _
    $region3: #{multi_head_attention.3} parent=1 // loop_header
      %s25 = sphi 0, %s29
      %p26 = scmp.ge.s32.totalorder %s25, 4
      %s35 = sphi 0, %s37
      %s38 = sphi 0, %s35
      %s39 = sphi 0, %s38
      %s55 = sphi 0, %s39
      %s61 = sphi 0, %s63
      %s64 = sphi 0, %s61
      %s65 = sphi 0, %s64
      %s81 = sphi 0, %s65
      %s87 = sphi 0, %s89
      %s90 = sphi 0, %s87
      %s91 = sphi 0, %s90
      %s107 = sphi 0, %s91
      %s111 = sphi 0, %s111
      %s113 = sphi 0, %s111
      %s114 = sphi 0, %s113
      %s128 = sphi 0, %s114
      %s132 = sphi 0, %s132
      %s134 = sphi 0, %s132
      %s135 = sphi 0, %s134
      %s149 = sphi 0, %s135
      %s153 = sphi 0, %s153
      %s155 = sphi 0, %s153
      %s156 = sphi 0, %s155
      %s170 = sphi 0, %s156
      %s174 = sphi 0, %s174
      %s176 = sphi 0, %s174
      %s177 = sphi 0, %s176
      %s191 = sphi 0, %s177
      %s195 = sphi 0, %s195
      %s197 = sphi 0, %s195
      %s198 = sphi 0, %s197
      %s212 = sphi 0, %s198
      %s216 = sphi 0, %s216
      %s218 = sphi 0, %s216
      %s219 = sphi 0, %s218
      %s233 = sphi 0, %s219
      %s239 = sphi 0, %s241
      %s242 = sphi 0, %s239
      %s243 = sphi 0, %s242
      %s259 = sphi 0, %s243
      %s265 = sphi 0, %s267
      %s268 = sphi 0, %s265
      %s269 = sphi 0, %s268
      %s285 = sphi 0, %s269
      %s291 = sphi 0, %s293
      %s294 = sphi 0, %s291
      %s295 = sphi 0, %s294
      %s311 = sphi 0, %s295
    $region4: #{multi_head_attention.3} parent=1 // loop_header_branch
      %28 = sbr.rel (%p26) target = $region8
    $region5: #{multi_head_attention.3} parent=1 // loop_body
      %s30 = ssub.s32 %s25, 1
      %s31 = ssub.s32 %s25, 2
      %s32 = sadd.s32 %s25, 1
      %s33 = ssub.s32 %s25, %s32
      %p34 = scmp.eq.s32.totalorder %s33, 0
      %s36 = sadd.s32 %s35, 1
      %s37 = scalar_select %p34, %s35, %s36
      %p40 = pneg %p34
      %p41 = scmp.eq.s32.totalorder %s25, 1
      %p42 = por %p40, %p41
      %p43 = scmp.ne.s32.totalorder %s35, %s38
      %p44 = scmp.eq.s32.totalorder %s25, 0
      %p45 = por %p43, %p44
      %p46 = scmp.ne.s32.totalorder %s35, %s38
      %p47 = scmp.eq.s32.totalorder %s30, 1
      %p48 = por %p46, %p47
      %p49 = scmp.ne.s32.totalorder %s38, %s39
      %p50 = scmp.eq.s32.totalorder %s30, 0
      %p51 = por %p49, %p50
      %p52 = scmp.ne.s32.totalorder %s38, %s39
      %p53 = scmp.eq.s32.totalorder %s31, 1
      %p54 = por %p52, %p53
      %p56 = scmp.ne.s32.totalorder %s39, %s55
      %p57 = scmp.eq.s32.totalorder %s31, 0
      %p58 = por %p56, %p57
      %s59 = ssub.s32 %s25, %s32
      %p60 = scmp.eq.s32.totalorder %s59, 0
      %s62 = sadd.s32 %s61, 1
      %s63 = scalar_select %p60, %s61, %s62
      %p66 = pneg %p60
      %p67 = scmp.eq.s32.totalorder %s25, 1
      %p68 = por %p66, %p67
      %p69 = scmp.ne.s32.totalorder %s61, %s64
      %p70 = scmp.eq.s32.totalorder %s25, 0
      %p71 = por %p69, %p70
      %p72 = scmp.ne.s32.totalorder %s61, %s64
      %p73 = scmp.eq.s32.totalorder %s30, 1
      %p74 = por %p72, %p73
      %p75 = scmp.ne.s32.totalorder %s64, %s65
      %p76 = scmp.eq.s32.totalorder %s30, 0
      %p77 = por %p75, %p76
      %p78 = scmp.ne.s32.totalorder %s64, %s65
      %p79 = scmp.eq.s32.totalorder %s31, 1
      %p80 = por %p78, %p79
      %p82 = scmp.ne.s32.totalorder %s65, %s81
      %p83 = scmp.eq.s32.totalorder %s31, 0
      %p84 = por %p82, %p83
      %s85 = ssub.s32 %s25, %s32
      %p86 = scmp.eq.s32.totalorder %s85, 0
      %s88 = sadd.s32 %s87, 1
      %s89 = scalar_select %p86, %s87, %s88
      %p92 = pneg %p86
      %p93 = scmp.eq.s32.totalorder %s25, 1
      %p94 = por %p92, %p93
      %p95 = scmp.ne.s32.totalorder %s87, %s90
      %p96 = scmp.eq.s32.totalorder %s25, 0
      %p97 = por %p95, %p96
      %p98 = scmp.ne.s32.totalorder %s87, %s90
      %p99 = scmp.eq.s32.totalorder %s30, 1
      %p100 = por %p98, %p99
      %p101 = scmp.ne.s32.totalorder %s90, %s91
      %p102 = scmp.eq.s32.totalorder %s30, 0
      %p103 = por %p101, %p102
      %p104 = scmp.ne.s32.totalorder %s90, %s91
      %p105 = scmp.eq.s32.totalorder %s31, 1
      %p106 = por %p104, %p105
      %p108 = scmp.ne.s32.totalorder %s91, %s107
      %p109 = scmp.eq.s32.totalorder %s31, 0
      %p110 = por %p108, %p109
      %s112 = sadd.s32 %s111, 1
      %p115 = scmp.eq.s32.totalorder %s25, 1
      %p116 = scmp.ne.s32.totalorder %s111, %s113
      %p117 = scmp.eq.s32.totalorder %s25, 0
      %p118 = por %p116, %p117
      %p119 = scmp.ne.s32.totalorder %s111, %s113
      %p120 = scmp.eq.s32.totalorder %s30, 1
      %p121 = por %p119, %p120
      %p122 = scmp.ne.s32.totalorder %s113, %s114
      %p123 = scmp.eq.s32.totalorder %s30, 0
      %p124 = por %p122, %p123
      %p125 = scmp.ne.s32.totalorder %s113, %s114
      %p126 = scmp.eq.s32.totalorder %s31, 1
      %p127 = por %p125, %p126
      %p129 = scmp.ne.s32.totalorder %s114, %s128
      %p130 = scmp.eq.s32.totalorder %s31, 0
      %p131 = por %p129, %p130
      %s133 = sadd.s32 %s132, 1
      %p136 = scmp.eq.s32.totalorder %s25, 1
      %p137 = scmp.ne.s32.totalorder %s132, %s134
      %p138 = scmp.eq.s32.totalorder %s25, 0
      %p139 = por %p137, %p138
      %p140 = scmp.ne.s32.totalorder %s132, %s134
      %p141 = scmp.eq.s32.totalorder %s30, 1
      %p142 = por %p140, %p141
      %p143 = scmp.ne.s32.totalorder %s134, %s135
      %p144 = scmp.eq.s32.totalorder %s30, 0
      %p145 = por %p143, %p144
      %p146 = scmp.ne.s32.totalorder %s134, %s135
      %p147 = scmp.eq.s32.totalorder %s31, 1
      %p148 = por %p146, %p147
      %p150 = scmp.ne.s32.totalorder %s135, %s149
      %p151 = scmp.eq.s32.totalorder %s31, 0
      %p152 = por %p150, %p151
      %s154 = sadd.s32 %s153, 1
      %p157 = scmp.eq.s32.totalorder %s25, 1
      %p158 = scmp.ne.s32.totalorder %s153, %s155
      %p159 = scmp.eq.s32.totalorder %s25, 0
      %p160 = por %p158, %p159
      %p161 = scmp.ne.s32.totalorder %s153, %s155
      %p162 = scmp.eq.s32.totalorder %s30, 1
      %p163 = por %p161, %p162
      %p164 = scmp.ne.s32.totalorder %s155, %s156
      %p165 = scmp.eq.s32.totalorder %s30, 0
      %p166 = por %p164, %p165
      %p167 = scmp.ne.s32.totalorder %s155, %s156
      %p168 = scmp.eq.s32.totalorder %s31, 1
      %p169 = por %p167, %p168
      %p171 = scmp.ne.s32.totalorder %s156, %s170
      %p172 = scmp.eq.s32.totalorder %s31, 0
      %p173 = por %p171, %p172
      %s175 = sadd.s32 %s174, 1
      %p178 = scmp.eq.s32.totalorder %s25, 1
      %p179 = scmp.ne.s32.totalorder %s174, %s176
      %p180 = scmp.eq.s32.totalorder %s25, 0
      %p181 = por %p179, %p180
      %p182 = scmp.ne.s32.totalorder %s174, %s176
      %p183 = scmp.eq.s32.totalorder %s30, 1
      %p184 = por %p182, %p183
      %p185 = scmp.ne.s32.totalorder %s176, %s177
      %p186 = scmp.eq.s32.totalorder %s30, 0
      %p187 = por %p185, %p186
      %p188 = scmp.ne.s32.totalorder %s176, %s177
      %p189 = scmp.eq.s32.totalorder %s31, 1
      %p190 = por %p188, %p189
      %p192 = scmp.ne.s32.totalorder %s177, %s191
      %p193 = scmp.eq.s32.totalorder %s31, 0
      %p194 = por %p192, %p193
      %s196 = sadd.s32 %s195, 1
      %p199 = scmp.eq.s32.totalorder %s25, 1
      %p200 = scmp.ne.s32.totalorder %s195, %s197
      %p201 = scmp.eq.s32.totalorder %s25, 0
      %p202 = por %p200, %p201
      %p203 = scmp.ne.s32.totalorder %s195, %s197
      %p204 = scmp.eq.s32.totalorder %s30, 1
      %p205 = por %p203, %p204
      %p206 = scmp.ne.s32.totalorder %s197, %s198
      %p207 = scmp.eq.s32.totalorder %s30, 0
      %p208 = por %p206, %p207
      %p209 = scmp.ne.s32.totalorder %s197, %s198
      %p210 = scmp.eq.s32.totalorder %s31, 1
      %p211 = por %p209, %p210
      %p213 = scmp.ne.s32.totalorder %s198, %s212
      %p214 = scmp.eq.s32.totalorder %s31, 0
      %p215 = por %p213, %p214
      %s217 = sadd.s32 %s216, 1
      %p220 = scmp.eq.s32.totalorder %s25, 1
      %p221 = scmp.ne.s32.totalorder %s216, %s218
      %p222 = scmp.eq.s32.totalorder %s25, 0
      %p223 = por %p221, %p222
      %p224 = scmp.ne.s32.totalorder %s216, %s218
      %p225 = scmp.eq.s32.totalorder %s30, 1
      %p226 = por %p224, %p225
      %p227 = scmp.ne.s32.totalorder %s218, %s219
      %p228 = scmp.eq.s32.totalorder %s30, 0
      %p229 = por %p227, %p228
      %p230 = scmp.ne.s32.totalorder %s218, %s219
      %p231 = scmp.eq.s32.totalorder %s31, 1
      %p232 = por %p230, %p231
      %p234 = scmp.ne.s32.totalorder %s219, %s233
      %p235 = scmp.eq.s32.totalorder %s31, 0
      %p236 = por %p234, %p235
      %s237 = ssub.s32 %s25, %s32
      %p238 = scmp.eq.s32.totalorder %s237, 0
      %s240 = sadd.s32 %s239, 1
      %s241 = scalar_select %p238, %s239, %s240
      %p244 = pneg %p238
      %p245 = scmp.eq.s32.totalorder %s25, 1
      %p246 = por %p244, %p245
      %p247 = scmp.ne.s32.totalorder %s239, %s242
      %p248 = scmp.eq.s32.totalorder %s25, 0
      %p249 = por %p247, %p248
      %p250 = scmp.ne.s32.totalorder %s239, %s242
      %p251 = scmp.eq.s32.totalorder %s30, 1
      %p252 = por %p250, %p251
      %p253 = scmp.ne.s32.totalorder %s242, %s243
      %p254 = scmp.eq.s32.totalorder %s30, 0
      %p255 = por %p253, %p254
      %p256 = scmp.ne.s32.totalorder %s242, %s243
      %p257 = scmp.eq.s32.totalorder %s31, 1
      %p258 = por %p256, %p257
      %p260 = scmp.ne.s32.totalorder %s243, %s259
      %p261 = scmp.eq.s32.totalorder %s31, 0
      %p262 = por %p260, %p261
      %s263 = ssub.s32 %s25, %s32
      %p264 = scmp.eq.s32.totalorder %s263, 0
      %s266 = sadd.s32 %s265, 1
      %s267 = scalar_select %p264, %s265, %s266
      %p270 = pneg %p264
      %p271 = scmp.eq.s32.totalorder %s25, 1
      %p272 = por %p270, %p271
      %p273 = scmp.ne.s32.totalorder %s265, %s268
      %p274 = scmp.eq.s32.totalorder %s25, 0
      %p275 = por %p273, %p274
      %p276 = scmp.ne.s32.totalorder %s265, %s268
      %p277 = scmp.eq.s32.totalorder %s30, 1
      %p278 = por %p276, %p277
      %p279 = scmp.ne.s32.totalorder %s268, %s269
      %p280 = scmp.eq.s32.totalorder %s30, 0
      %p281 = por %p279, %p280
      %p282 = scmp.ne.s32.totalorder %s268, %s269
      %p283 = scmp.eq.s32.totalorder %s31, 1
      %p284 = por %p282, %p283
      %p286 = scmp.ne.s32.totalorder %s269, %s285
      %p287 = scmp.eq.s32.totalorder %s31, 0
      %p288 = por %p286, %p287
      %s289 = ssub.s32 %s25, %s32
      %p290 = scmp.eq.s32.totalorder %s289, 0
      %s292 = sadd.s32 %s291, 1
      %s293 = scalar_select %p290, %s291, %s292
      %p296 = pneg %p290
      %p297 = scmp.eq.s32.totalorder %s25, 1
      %p298 = por %p296, %p297
      %p299 = scmp.ne.s32.totalorder %s291, %s294
      %p300 = scmp.eq.s32.totalorder %s25, 0
      %p301 = por %p299, %p300
      %p302 = scmp.ne.s32.totalorder %s291, %s294
      %p303 = scmp.eq.s32.totalorder %s30, 1
      %p304 = por %p302, %p303
      %p305 = scmp.ne.s32.totalorder %s294, %s295
      %p306 = scmp.eq.s32.totalorder %s30, 0
      %p307 = por %p305, %p306
      %p308 = scmp.ne.s32.totalorder %s294, %s295
      %p309 = scmp.eq.s32.totalorder %s31, 1
      %p310 = por %p308, %p309
      %p312 = scmp.ne.s32.totalorder %s295, %s311
      %p313 = scmp.eq.s32.totalorder %s31, 0
      %p314 = por %p312, %p313
      %p315 = scmp.le.s32.totalorder 1, %s25
      %p316 = scmp.lt.s32.totalorder %s25, 3
      %p317 = pnand %p315, %p316
      %p318 = pneg %p317
      // Predicated region
      $region9: #{multi_head_attention.3} parent=5 // pred_check
        _
      $region10: #{multi_head_attention.3} parent=5 // pred_check_branch
        %320 = sbr.rel (%p317) target = $region12
      $region11: #{multi_head_attention.3} parent=5 // pred_region
        %s321 = ssub.s32 %s25, 1
        // Predicated region
        $region13: #{multi_head_attention.3} parent=11 // pred_check
          %p322 = pneg %p124
        $region14: #{multi_head_attention.3} parent=11 // pred_check_branch
          %324 = sbr.rel (%p322) target = $region16
        $region15: #{multi_head_attention.3} parent=11 // pred_region
          %s326 = ssub.s32 2048, 2048
          %327 = vsyncadd [#allocation5], %s326
          %s328 = sshll.u32 [#allocation6], 4
          %s329 = int_to_ptr.vmem [resolvable:$true] %s328
          %334 = dma.hbm_to_vmem [thread:$0]  %s3, 2048, %s329, [#allocation5], 128, 128, 8
        $region16: #{multi_head_attention.3} parent=11 // pred_fallthru
          _
        // Predicated region
        $region17: #{multi_head_attention.3} parent=11 // pred_check
          %p335 = pneg %p145
        $region18: #{multi_head_attention.3} parent=11 // pred_check_branch
          %337 = sbr.rel (%p335) target = $region20
        $region19: #{multi_head_attention.3} parent=11 // pred_region
          %s339 = ssub.s32 2048, 2048
          %340 = vsyncadd [#allocation8], %s339
          %s341 = sshll.u32 [#allocation7], 4
          %s342 = int_to_ptr.vmem [resolvable:$true] %s341
          %347 = dma.hbm_to_vmem [thread:$0]  %s4, 2048, %s342, [#allocation8], 128, 128, 8
        $region20: #{multi_head_attention.3} parent=11 // pred_fallthru
          _
        // Predicated region
        $region21: #{multi_head_attention.3} parent=11 // pred_check
          %p348 = pneg %p166
        $region22: #{multi_head_attention.3} parent=11 // pred_check_branch
          %350 = sbr.rel (%p348) target = $region24
        $region23: #{multi_head_attention.3} parent=11 // pred_region
          %s352 = ssub.s32 2048, 2048
          %353 = vsyncadd [#allocation8], %s352
          %s354 = sshll.u32 [#allocation9], 4
          %s355 = int_to_ptr.vmem [resolvable:$true] %s354
          %360 = dma.hbm_to_vmem [thread:$0]  %s5, 2048, %s355, [#allocation8], 128, 128, 8
        $region24: #{multi_head_attention.3} parent=11 // pred_fallthru
          _
        // Predicated region
        $region25: #{multi_head_attention.3} parent=11 // pred_check
          %p361 = pneg %p187
        $region26: #{multi_head_attention.3} parent=11 // pred_check_branch
          %363 = sbr.rel (%p361) target = $region28
        $region27: #{multi_head_attention.3} parent=11 // pred_region
          _
        $region28: #{multi_head_attention.3} parent=11 // pred_fallthru
          _
        // Predicated region
        $region29: #{multi_head_attention.3} parent=11 // pred_check
          %p364 = pneg %p208
        $region30: #{multi_head_attention.3} parent=11 // pred_check_branch
          %366 = sbr.rel (%p364) target = $region32
        $region31: #{multi_head_attention.3} parent=11 // pred_region
          _
        $region32: #{multi_head_attention.3} parent=11 // pred_fallthru
          _
        // Predicated region
        $region33: #{multi_head_attention.3} parent=11 // pred_check
          %p367 = pneg %p229
        $region34: #{multi_head_attention.3} parent=11 // pred_check_branch
          %369 = sbr.rel (%p367) target = $region36
        $region35: #{multi_head_attention.3} parent=11 // pred_region
          _
        $region36: #{multi_head_attention.3} parent=11 // pred_fallthru
          _
      $region12: #{multi_head_attention.3} parent=5 // pred_fallthru
        _
      %p370 = scmp.lt.s32.totalorder %s25, 2
      // Predicated region
      $region37: #{multi_head_attention.3} parent=5 // pred_check
        %p371 = pneg %p370
      $region38: #{multi_head_attention.3} parent=5 // pred_check_branch
        %373 = sbr.rel (%p371) target = $region40
      $region39: #{multi_head_attention.3} parent=5 // pred_region
        // Predicated region
        $region41: #{multi_head_attention.3} parent=39 // pred_check
          %p374 = pneg %p45
        $region42: #{multi_head_attention.3} parent=39 // pred_check_branch
          %376 = sbr.rel (%p374) target = $region44
        $region43: #{multi_head_attention.3} parent=39 // pred_region
          %p377 = scmp.lt.s32.totalorder %s25, 1
          %s378 = scalar_select %p377, %s25, 1
          %s379 = smul.addr %s378, 8
          %s380 = scalar_lea.vmem %s0, %s379
        $region44: #{multi_head_attention.3} parent=39 // pred_fallthru
          _
        // Predicated region
        $region45: #{multi_head_attention.3} parent=39 // pred_check
          %p381 = pneg %p71
        $region46: #{multi_head_attention.3} parent=39 // pred_check_branch
          %383 = sbr.rel (%p381) target = $region48
        $region47: #{multi_head_attention.3} parent=39 // pred_region
          %s384 = sand.u32 %s61, 1
          %s385 = scalar_lea.sflag [#allocation3], %s384
          %s386 = sand.u32 %s61, 1
          %s387 = smul.addr %s386, 8
          %s388 = scalar_lea.vmem [#allocation2], %s387
          %s390 = ssub.s32 128, 128
          %391 = vsyncadd %s385, %s390
          %s392 = smul.addr %s25, 128
          %s393 = scalar_lea.hbm %s1, %s392
          %s395 = sshll.u32 %s388, 4
          %s396 = int_to_ptr.vmem [resolvable:$true] %s395
          %398 = dma.hbm_to_vmem [thread:$0]  %s393, 128, %s396, %s385
        $region48: #{multi_head_attention.3} parent=39 // pred_fallthru
          _
        // Predicated region
        $region49: #{multi_head_attention.3} parent=39 // pred_check
          %p399 = pneg %p97
        $region50: #{multi_head_attention.3} parent=39 // pred_check_branch
          %401 = sbr.rel (%p399) target = $region52
        $region51: #{multi_head_attention.3} parent=39 // pred_region
          %s402 = sand.u32 %s25, 1
          %s403 = scalar_lea.sflag [#allocation5], %s402
          %s404 = sand.u32 %s87, 1
          %s405 = smul.addr %s404, 8
          %s406 = scalar_lea.vmem [#allocation4], %s405
          %s408 = ssub.s32 128, 128
          %409 = vsyncadd %s403, %s408
          %s410 = smul.addr %s25, 128
          %s411 = scalar_lea.hbm %s2, %s410
          %s413 = sshll.u32 %s406, 4
          %s414 = int_to_ptr.vmem [resolvable:$true] %s413
          %416 = dma.hbm_to_vmem [thread:$0]  %s411, 128, %s414, %s403
        $region52: #{multi_head_attention.3} parent=39 // pred_fallthru
          _
      $region40: #{multi_head_attention.3} parent=5 // pred_fallthru
        _
      %p417 = scmp.le.s32.totalorder 1, %s25
      %p418 = scmp.lt.s32.totalorder %s25, 3
      %p419 = pnand %p417, %p418
      %p420 = pneg %p419
      // Predicated region
      $region53: #{multi_head_attention.3} parent=5 // pred_check
        _
      $region54: #{multi_head_attention.3} parent=5 // pred_check_branch
        %422 = sbr.rel (%p419) target = $region56
      $region55: #{multi_head_attention.3} parent=5 // pred_region
        %s423 = ssub.s32 %s25, 1
        %s424 = sand.u32 %s64, 1
        %s425 = scalar_lea.sflag [#allocation3], %s424
        %s426 = sand.u32 %s64, 1
        %s427 = smul.addr %s426, 8
        %s428 = scalar_lea.vmem [#allocation2], %s427
        // Predicated region
        $region57: #{multi_head_attention.3} parent=55 // pred_check
          %p429 = pneg %p77
        $region58: #{multi_head_attention.3} parent=55 // pred_check_branch
          %431 = sbr.rel (%p429) target = $region60
        $region59: #{multi_head_attention.3} parent=55 // pred_region
          %432 = dma.done %s425, 128
        $region60: #{multi_head_attention.3} parent=55 // pred_fallthru
          _
        %s433 = sand.u32 %s30, 1
        %s434 = scalar_lea.sflag [#allocation5], %s433
        %s435 = sand.u32 %s90, 1
        %s436 = smul.addr %s435, 8
        %s437 = scalar_lea.vmem [#allocation4], %s436
        // Predicated region
        $region61: #{multi_head_attention.3} parent=55 // pred_check
          %p438 = pneg %p103
        $region62: #{multi_head_attention.3} parent=55 // pred_check_branch
          %440 = sbr.rel (%p438) target = $region64
        $region63: #{multi_head_attention.3} parent=55 // pred_region
          %441 = dma.done %s434, 128
        $region64: #{multi_head_attention.3} parent=55 // pred_fallthru
          _
        // Predicated region
        $region65: #{multi_head_attention.3} parent=55 // pred_check
          %p442 = pneg %p124
        $region66: #{multi_head_attention.3} parent=55 // pred_check_branch
          %444 = sbr.rel (%p442) target = $region68
        $region67: #{multi_head_attention.3} parent=55 // pred_region
          %445 = dma.done [#allocation5], 2048
        $region68: #{multi_head_attention.3} parent=55 // pred_fallthru
          _
        // Predicated region
        $region69: #{multi_head_attention.3} parent=55 // pred_check
          %p446 = pneg %p145
        $region70: #{multi_head_attention.3} parent=55 // pred_check_branch
          %448 = sbr.rel (%p446) target = $region72
        $region71: #{multi_head_attention.3} parent=55 // pred_region
          %449 = dma.done [#allocation8], 2048
        $region72: #{multi_head_attention.3} parent=55 // pred_fallthru
          _
        // Predicated region
        $region73: #{multi_head_attention.3} parent=55 // pred_check
          %p450 = pneg %p166
        $region74: #{multi_head_attention.3} parent=55 // pred_check_branch
          %452 = sbr.rel (%p450) target = $region76
        $region75: #{multi_head_attention.3} parent=55 // pred_region
          %453 = dma.done [#allocation8], 2048
        $region76: #{multi_head_attention.3} parent=55 // pred_fallthru
          _
        %p454 = scmp.lt.s32.totalorder %s30, 1
        %s455 = scalar_select %p454, %s30, 1
        %s456 = smul.addr %s455, 8
        %s457 = scalar_lea.vmem %s0, %s456
        %p458 = pneg %p51
        %p459 = pneg %p48
        %s460 = sand.u32 %s64, 1
        %s461 = scalar_lea.sflag [#allocation3], %s460
        %s462 = sand.u32 %s64, 1
        %s463 = smul.addr %s462, 8
        %s464 = scalar_lea.vmem [#allocation2], %s463
        %p465 = pneg %p77
        %p466 = pneg %p74
        %s467 = sand.u32 %s30, 1
        %s468 = scalar_lea.sflag [#allocation5], %s467
        %s469 = sand.u32 %s90, 1
        %s470 = smul.addr %s469, 8
        %s471 = scalar_lea.vmem [#allocation4], %s470
        %p472 = pneg %p103
        %p473 = pneg %p100
        %p474 = pneg %p124
        %p475 = pneg %p121
        %p476 = pneg %p145
        %p477 = pneg %p142
        %p478 = pneg %p166
        %p479 = pneg %p163
        %p480 = pneg %p187
        %p481 = pneg %p184
        %p482 = pneg %p208
        %p483 = pneg %p205
        %p484 = pneg %p229
        %p485 = pneg %p226
        %p486 = pneg %p255
        %p487 = pneg %p252
        %p488 = scmp.lt.s32.totalorder %s30, 1
        %s489 = scalar_select %p488, %s30, 1
        %s490 = smul.addr %s489, 8
        %s491 = scalar_lea.vmem %s9, %s490
        %p492 = pneg %p281
        %p493 = pneg %p278
        %p494 = scmp.lt.s32.totalorder %s30, 1
        %s495 = scalar_select %p494, %s30, 1
        %s496 = smul.addr %s495, 8
        %s497 = scalar_lea.vmem %s10, %s496
        %p498 = pneg %p307
        %p499 = pneg %p304
        %p500 = scmp.lt.s32.totalorder %s30, 1
        %s501 = scalar_select %p500, %s30, 1
        %s502 = smul.addr %s501, 8
        %s503 = scalar_lea.vmem %s11, %s502
        %p504 = scmp.lt.s32.totalorder %s30, 1
        %s505 = scalar_select %p504, %s30, 1
        %s506 = smul.addr %s505, 8
        %s507 = scalar_lea.vmem %s0, %s506
        %p508 = scmp.lt.s32.totalorder %s30, 1
        %s509 = scalar_select %p508, %s30, 1
        %s510 = smul.addr %s509, 8
        %s511 = scalar_lea.vmem %s9, %s510
        %p512 = scmp.lt.s32.totalorder %s30, 1
        %s513 = scalar_select %p512, %s30, 1
        %s514 = smul.addr %s513, 8
        %s515 = scalar_lea.vmem %s10, %s514
        %p516 = scmp.lt.s32.totalorder %s30, 1
        %s517 = scalar_select %p516, %s30, 1
        %s518 = smul.addr %s517, 8
        %s519 = scalar_lea.vmem %s11, %s518
        %v520 = vld [vmem:[%s507] sm:$0xff]
        %v521 = vld [vmem:[#allocation6] sm:$0xff]
        %v522 = vld [vmem:[#allocation6 + $0x8] sm:$0xff]
        %v523 = vld [vmem:[#allocation6 + $0x10] sm:$0xff]
        %v524 = vld [vmem:[#allocation6 + $0x18] sm:$0xff]
        %v525 = vld [vmem:[#allocation6 + $0x20] sm:$0xff]
        %v526 = vld [vmem:[#allocation6 + $0x28] sm:$0xff]
        %v527 = vld [vmem:[#allocation6 + $0x30] sm:$0xff]
        %v528 = vld [vmem:[#allocation6 + $0x38] sm:$0xff]
        %v529 = vld [vmem:[#allocation6 + $0x40] sm:$0xff]
        %v530 = vld [vmem:[#allocation6 + $0x48] sm:$0xff]
        %v531 = vld [vmem:[#allocation6 + $0x50] sm:$0xff]
        %v532 = vld [vmem:[#allocation6 + $0x58] sm:$0xff]
        %v533 = vld [vmem:[#allocation6 + $0x60] sm:$0xff]
        %v534 = vld [vmem:[#allocation6 + $0x68] sm:$0xff]
        %v535 = vld [vmem:[#allocation6 + $0x70] sm:$0xff]
        %v536 = vld [vmem:[#allocation6 + $0x78] sm:$0xff]
        %v537 = vld [vmem:[%s6] sm:$0x1]
        %v539 = vlaneseq
        %v540 = vshrl.u32 %v539, 7
        %v541 = vsub.s32 0, %v540
        %v542 = vrot.slane %v537, %v541
        %544 = vmatprep.subr.mxu0 0.0
        %v545 = vand.u32 %v521, 4294901760
        %546 = vmatpush1.msra.mxu0 %v545
        %547 = vmatprep.subr.mxu0 0.0
        %v548 = vand.u32 %v522, 4294901760
        %549 = vmatpush1.msra.mxu0 %v548
        %550 = vmatprep.subr.mxu0 0.0
        %v551 = vand.u32 %v523, 4294901760
        %552 = vmatpush1.msra.mxu0 %v551
        %553 = vmatprep.subr.mxu0 0.0
        %v554 = vand.u32 %v524, 4294901760
        %555 = vmatpush1.msra.mxu0 %v554
        %556 = vmatprep.subr.mxu0 0.0
        %v557 = vand.u32 %v525, 4294901760
        %558 = vmatpush1.msra.mxu0 %v557
        %559 = vmatprep.subr.mxu0 0.0
        %v560 = vand.u32 %v526, 4294901760
        %561 = vmatpush1.msra.mxu0 %v560
        %562 = vmatprep.subr.mxu0 0.0
        %v563 = vand.u32 %v527, 4294901760
        %564 = vmatpush1.msra.mxu0 %v563
        %565 = vmatprep.subr.mxu0 0.0
        %v566 = vand.u32 %v528, 4294901760
        %567 = vmatpush1.msra.mxu0 %v566
        %568 = vmatprep.subr.mxu0 0.0
        %v569 = vand.u32 %v529, 4294901760
        %570 = vmatpush1.msra.mxu0 %v569
        %571 = vmatprep.subr.mxu0 0.0
        %v572 = vand.u32 %v530, 4294901760
        %573 = vmatpush1.msra.mxu0 %v572
        %574 = vmatprep.subr.mxu0 0.0
        %v575 = vand.u32 %v531, 4294901760
        %576 = vmatpush1.msra.mxu0 %v575
        %577 = vmatprep.subr.mxu0 0.0
        %v578 = vand.u32 %v532, 4294901760
        %579 = vmatpush1.msra.mxu0 %v578
        %580 = vmatprep.subr.mxu0 0.0
        %v581 = vand.u32 %v533, 4294901760
        %582 = vmatpush1.msra.mxu0 %v581
        %583 = vmatprep.subr.mxu0 0.0
        %v584 = vand.u32 %v534, 4294901760
        %585 = vmatpush1.msra.mxu0 %v584
        %586 = vmatprep.subr.mxu0 0.0
        %v587 = vand.u32 %v535, 4294901760
        %588 = vmatpush1.msra.mxu0 %v587
        %589 = vmatprep.subr.mxu0 0.0
        %v590 = vand.u32 %v536, 4294901760
        %591 = vmatpush1.msra.mxu0 %v590
        %592 = vmatprep.subr.mxu0 0.0
        %593 = vmatpush1.msra.mxu0 0.0
        %594 = vmatprep.subr.mxu0 0.0
        %595 = vmatpush1.msra.mxu0 0.0
        %596 = vmatprep.subr.mxu0 0.0
        %597 = vmatpush1.msra.mxu0 0.0
        %598 = vmatprep.subr.mxu0 0.0
        %599 = vmatpush1.msra.mxu0 0.0
        %600 = vmatprep.subr.mxu0 0.0
        %601 = vmatpush1.msra.mxu0 0.0
        %602 = vmatprep.subr.mxu0 0.0
        %603 = vmatpush1.msra.mxu0 0.0
        %604 = vmatprep.subr.mxu0 0.0
        %605 = vmatpush1.msra.mxu0 0.0
        %606 = vmatprep.subr.mxu0 0.0
        %607 = vmatpush1.msra.mxu0 0.0
        %608 = vmatprep.subr.mxu0 0.0
        %609 = vmatpush1.msra.mxu0 0.0
        %610 = vmatprep.subr.mxu0 0.0
        %611 = vmatpush1.msra.mxu0 0.0
        %612 = vmatprep.subr.mxu0 0.0
        %613 = vmatpush1.msra.mxu0 0.0
        %614 = vmatprep.subr.mxu0 0.0
        %615 = vmatpush1.msra.mxu0 0.0
        %616 = vmatprep.subr.mxu0 0.0
        %617 = vmatpush1.msra.mxu0 0.0
        %618 = vmatprep.subr.mxu0 0.0
        %619 = vmatpush1.msra.mxu0 0.0
        %620 = vmatprep.subr.mxu0 0.0
        %621 = vmatpush1.msra.mxu0 0.0
        %622 = vmatprep.subr.mxu0 0.0
        %623 = vmatpush1.msra.mxu0 0.0
        %624 = vmatprep.mubr.f32.mxu0 0.0
        %v625 = vand.u32 %v520, 4294901760
        %v626 = vsub.f32 %v520, %v625
        %v627 = vand.u32 %v626, 4294901760
        %v628 = vsub.f32 %v626, %v627
        %v629 = vand.u32 %v628, 4294901760
        %630 = vmatmul.mubr.f32.gmra.mrb[0].mxu0 %v629
        %v631 = vpop.f32.mrb[0].mxu0
        %v632 = vadd.f32 %v542, %v631
        %v633 = vpop.f32.mrb[0].mxu0
        %634 = vdwg.mxu0
        %635 = vmatprep.subr.mxu0 0.0
        %v636 = vand.u32 %v521, 4294901760
        %v637 = vsub.f32 %v521, %v636
        %v638 = vand.u32 %v637, 4294901760
        %v639 = vsub.f32 %v637, %v638
        %v640 = vand.u32 %v639, 4294901760
        %641 = vmatpush1.msra.mxu0 %v640
        %642 = vmatprep.subr.mxu0 0.0
        %v643 = vand.u32 %v522, 4294901760
        %v644 = vsub.f32 %v522, %v643
        %v645 = vand.u32 %v644, 4294901760
        %v646 = vsub.f32 %v644, %v645
        %v647 = vand.u32 %v646, 4294901760
        %648 = vmatpush1.msra.mxu0 %v647
        %649 = vmatprep.subr.mxu0 0.0
        %v650 = vand.u32 %v523, 4294901760
        %v651 = vsub.f32 %v523, %v650
        %v652 = vand.u32 %v651, 4294901760
        %v653 = vsub.f32 %v651, %v652
        %v654 = vand.u32 %v653, 4294901760
        %655 = vmatpush1.msra.mxu0 %v654
        %656 = vmatprep.subr.mxu0 0.0
        %v657 = vand.u32 %v524, 4294901760
        %v658 = vsub.f32 %v524, %v657
        %v659 = vand.u32 %v658, 4294901760
        %v660 = vsub.f32 %v658, %v659
        %v661 = vand.u32 %v660, 4294901760
        %662 = vmatpush1.msra.mxu0 %v661
        %663 = vmatprep.subr.mxu0 0.0
        %v664 = vand.u32 %v525, 4294901760
        %v665 = vsub.f32 %v525, %v664
        %v666 = vand.u32 %v665, 4294901760
        %v667 = vsub.f32 %v665, %v666
        %v668 = vand.u32 %v667, 4294901760
        %669 = vmatpush1.msra.mxu0 %v668
        %670 = vmatprep.subr.mxu0 0.0
        %v671 = vand.u32 %v526, 4294901760
        %v672 = vsub.f32 %v526, %v671
        %v673 = vand.u32 %v672, 4294901760
        %v674 = vsub.f32 %v672, %v673
        %v675 = vand.u32 %v674, 4294901760
        %676 = vmatpush1.msra.mxu0 %v675
        %677 = vmatprep.subr.mxu0 0.0
        %v678 = vand.u32 %v527, 4294901760
        %v679 = vsub.f32 %v527, %v678
        %v680 = vand.u32 %v679, 4294901760
        %v681 = vsub.f32 %v679, %v680
        %v682 = vand.u32 %v681, 4294901760
        %683 = vmatpush1.msra.mxu0 %v682
        %684 = vmatprep.subr.mxu0 0.0
        %v685 = vand.u32 %v528, 4294901760
        %v686 = vsub.f32 %v528, %v685
        %v687 = vand.u32 %v686, 4294901760
        %v688 = vsub.f32 %v686, %v687
        %v689 = vand.u32 %v688, 4294901760
        %690 = vmatpush1.msra.mxu0 %v689
        %691 = vmatprep.subr.mxu0 0.0
        %v692 = vand.u32 %v529, 4294901760
        %v693 = vsub.f32 %v529, %v692
        %v694 = vand.u32 %v693, 4294901760
        %v695 = vsub.f32 %v693, %v694
        %v696 = vand.u32 %v695, 4294901760
        %697 = vmatpush1.msra.mxu0 %v696
        %698 = vmatprep.subr.mxu0 0.0
        %v699 = vand.u32 %v530, 4294901760
        %v700 = vsub.f32 %v530, %v699
        %v701 = vand.u32 %v700, 4294901760
        %v702 = vsub.f32 %v700, %v701
        %v703 = vand.u32 %v702, 4294901760
        %704 = vmatpush1.msra.mxu0 %v703
        %705 = vmatprep.subr.mxu0 0.0
        %v706 = vand.u32 %v531, 4294901760
        %v707 = vsub.f32 %v531, %v706
        %v708 = vand.u32 %v707, 4294901760
        %v709 = vsub.f32 %v707, %v708
        %v710 = vand.u32 %v709, 4294901760
        %711 = vmatpush1.msra.mxu0 %v710
        %712 = vmatprep.subr.mxu0 0.0
        %v713 = vand.u32 %v532, 4294901760
        %v714 = vsub.f32 %v532, %v713
        %v715 = vand.u32 %v714, 4294901760
        %v716 = vsub.f32 %v714, %v715
        %v717 = vand.u32 %v716, 4294901760
        %718 = vmatpush1.msra.mxu0 %v717
        %719 = vmatprep.subr.mxu0 0.0
        %v720 = vand.u32 %v533, 4294901760
        %v721 = vsub.f32 %v533, %v720
        %v722 = vand.u32 %v721, 4294901760
        %v723 = vsub.f32 %v721, %v722
        %v724 = vand.u32 %v723, 4294901760
        %725 = vmatpush1.msra.mxu0 %v724
        %726 = vmatprep.subr.mxu0 0.0
        %v727 = vand.u32 %v534, 4294901760
        %v728 = vsub.f32 %v534, %v727
        %v729 = vand.u32 %v728, 4294901760
        %v730 = vsub.f32 %v728, %v729
        %v731 = vand.u32 %v730, 4294901760
        %732 = vmatpush1.msra.mxu0 %v731
        %733 = vmatprep.subr.mxu0 0.0
        %v734 = vand.u32 %v535, 4294901760
        %v735 = vsub.f32 %v535, %v734
        %v736 = vand.u32 %v735, 4294901760
        %v737 = vsub.f32 %v735, %v736
        %v738 = vand.u32 %v737, 4294901760
        %739 = vmatpush1.msra.mxu0 %v738
        %740 = vmatprep.subr.mxu0 0.0
        %v741 = vand.u32 %v536, 4294901760
        %v742 = vsub.f32 %v536, %v741
        %v743 = vand.u32 %v742, 4294901760
        %v744 = vsub.f32 %v742, %v743
        %v745 = vand.u32 %v744, 4294901760
        %746 = vmatpush1.msra.mxu0 %v745
        %747 = vmatprep.subr.mxu0 0.0
        %748 = vmatpush1.msra.mxu0 0.0
        %749 = vmatprep.subr.mxu0 0.0
        %750 = vmatpush1.msra.mxu0 0.0
        %751 = vmatprep.subr.mxu0 0.0
        %752 = vmatpush1.msra.mxu0 0.0
        %753 = vmatprep.subr.mxu0 0.0
        %754 = vmatpush1.msra.mxu0 0.0
        %755 = vmatprep.subr.mxu0 0.0
        %756 = vmatpush1.msra.mxu0 0.0
        %757 = vmatprep.subr.mxu0 0.0
        %758 = vmatpush1.msra.mxu0 0.0
        %759 = vmatprep.subr.mxu0 0.0
        %760 = vmatpush1.msra.mxu0 0.0
        %761 = vmatprep.subr.mxu0 0.0
        %762 = vmatpush1.msra.mxu0 0.0
        %763 = vmatprep.subr.mxu0 0.0
        %764 = vmatpush1.msra.mxu0 0.0
        %765 = vmatprep.subr.mxu0 0.0
        %766 = vmatpush1.msra.mxu0 0.0
        %767 = vmatprep.subr.mxu0 0.0
        %768 = vmatpush1.msra.mxu0 0.0
        %769 = vmatprep.subr.mxu0 0.0
        %770 = vmatpush1.msra.mxu0 0.0
        %771 = vmatprep.subr.mxu0 0.0
        %772 = vmatpush1.msra.mxu0 0.0
        %773 = vmatprep.subr.mxu0 0.0
        %774 = vmatpush1.msra.mxu0 0.0
        %775 = vmatprep.subr.mxu0 0.0
        %776 = vmatpush1.msra.mxu0 0.0
        %777 = vmatprep.subr.mxu0 0.0
        %778 = vmatpush1.msra.mxu0 0.0
        %779 = vmatprep.mubr.f32.mxu0 0.0
        %v780 = vand.u32 %v520, 4294901760
        %781 = vmatmul.mubr.f32.gmra.mrb[0].mxu0 %v780
        %v782 = vpop.f32.mrb[0].mxu0
        %v783 = vadd.f32 %v632, %v782
        %v784 = vpop.f32.mrb[0].mxu0
        %785 = vdwg.mxu0
        %786 = vmatprep.subr.mxu0 0.0
        %v787 = vand.u32 %v521, 4294901760
        %v788 = vsub.f32 %v521, %v787
        %789 = vmatpush1.msra.mxu0 %v788
        %790 = vmatprep.subr.mxu0 0.0
        %v791 = vand.u32 %v522, 4294901760
        %v792 = vsub.f32 %v522, %v791
        %793 = vmatpush1.msra.mxu0 %v792
        %794 = vmatprep.subr.mxu0 0.0
        %v795 = vand.u32 %v523, 4294901760
        %v796 = vsub.f32 %v523, %v795
        %797 = vmatpush1.msra.mxu0 %v796
        %798 = vmatprep.subr.mxu0 0.0
        %v799 = vand.u32 %v524, 4294901760
        %v800 = vsub.f32 %v524, %v799
        %801 = vmatpush1.msra.mxu0 %v800
        %802 = vmatprep.subr.mxu0 0.0
        %v803 = vand.u32 %v525, 4294901760
        %v804 = vsub.f32 %v525, %v803
        %805 = vmatpush1.msra.mxu0 %v804
        %806 = vmatprep.subr.mxu0 0.0
        %v807 = vand.u32 %v526, 4294901760
        %v808 = vsub.f32 %v526, %v807
        %809 = vmatpush1.msra.mxu0 %v808
        %810 = vmatprep.subr.mxu0 0.0
        %v811 = vand.u32 %v527, 4294901760
        %v812 = vsub.f32 %v527, %v811
        %813 = vmatpush1.msra.mxu0 %v812
        %814 = vmatprep.subr.mxu0 0.0
        %v815 = vand.u32 %v528, 4294901760
        %v816 = vsub.f32 %v528, %v815
        %817 = vmatpush1.msra.mxu0 %v816
        %818 = vmatprep.subr.mxu0 0.0
        %v819 = vand.u32 %v529, 4294901760
        %v820 = vsub.f32 %v529, %v819
        %821 = vmatpush1.msra.mxu0 %v820
        %822 = vmatprep.subr.mxu0 0.0
        %v823 = vand.u32 %v530, 4294901760
        %v824 = vsub.f32 %v530, %v823
        %825 = vmatpush1.msra.mxu0 %v824
        %826 = vmatprep.subr.mxu0 0.0
        %v827 = vand.u32 %v531, 4294901760
        %v828 = vsub.f32 %v531, %v827
        %829 = vmatpush1.msra.mxu0 %v828
        %830 = vmatprep.subr.mxu0 0.0
        %v831 = vand.u32 %v532, 4294901760
        %v832 = vsub.f32 %v532, %v831
        %833 = vmatpush1.msra.mxu0 %v832
        %834 = vmatprep.subr.mxu0 0.0
        %v835 = vand.u32 %v533, 4294901760
        %v836 = vsub.f32 %v533, %v835
        %837 = vmatpush1.msra.mxu0 %v836
        %838 = vmatprep.subr.mxu0 0.0
        %v839 = vand.u32 %v534, 4294901760
        %v840 = vsub.f32 %v534, %v839
        %841 = vmatpush1.msra.mxu0 %v840
        %842 = vmatprep.subr.mxu0 0.0
        %v843 = vand.u32 %v535, 4294901760
        %v844 = vsub.f32 %v535, %v843
        %845 = vmatpush1.msra.mxu0 %v844
        %846 = vmatprep.subr.mxu0 0.0
        %v847 = vand.u32 %v536, 4294901760
        %v848 = vsub.f32 %v536, %v847
        %849 = vmatpush1.msra.mxu0 %v848
        %850 = vmatprep.subr.mxu0 0.0
        %851 = vmatpush1.msra.mxu0 0.0
        %852 = vmatprep.subr.mxu0 0.0
        %853 = vmatpush1.msra.mxu0 0.0
        %854 = vmatprep.subr.mxu0 0.0
        %855 = vmatpush1.msra.mxu0 0.0
        %856 = vmatprep.subr.mxu0 0.0
        %857 = vmatpush1.msra.mxu0 0.0
        %858 = vmatprep.subr.mxu0 0.0
        %859 = vmatpush1.msra.mxu0 0.0
        %860 = vmatprep.subr.mxu0 0.0
        %861 = vmatpush1.msra.mxu0 0.0
        %862 = vmatprep.subr.mxu0 0.0
        %863 = vmatpush1.msra.mxu0 0.0
        %864 = vmatprep.subr.mxu0 0.0
        %865 = vmatpush1.msra.mxu0 0.0
        %866 = vmatprep.subr.mxu0 0.0
        %867 = vmatpush1.msra.mxu0 0.0
        %868 = vmatprep.subr.mxu0 0.0
        %869 = vmatpush1.msra.mxu0 0.0
        %870 = vmatprep.subr.mxu0 0.0
        %871 = vmatpush1.msra.mxu0 0.0
        %872 = vmatprep.subr.mxu0 0.0
        %873 = vmatpush1.msra.mxu0 0.0
        %874 = vmatprep.subr.mxu0 0.0
        %875 = vmatpush1.msra.mxu0 0.0
        %876 = vmatprep.subr.mxu0 0.0
        %877 = vmatpush1.msra.mxu0 0.0
        %878 = vmatprep.subr.mxu0 0.0
        %879 = vmatpush1.msra.mxu0 0.0
        %880 = vmatprep.subr.mxu0 0.0
        %881 = vmatpush1.msra.mxu0 0.0
        %882 = vmatprep.mubr.f32.mxu0 0.0
        %v883 = vand.u32 %v520, 4294901760
        %v884 = vsub.f32 %v520, %v883
        %885 = vmatmul.mubr.f32.gmra.mrb[0].mxu0 %v884
        %v886 = vpop.f32.mrb[0].mxu0
        %v887 = vadd.f32 %v783, %v886
        %v888 = vpop.f32.mrb[0].mxu0
        %889 = vdwg.mxu0
        %890 = vmatprep.subr.mxu0 0.0
        %v891 = vand.u32 %v521, 4294901760
        %892 = vmatpush1.msra.mxu0 %v891
        %893 = vmatprep.subr.mxu0 0.0
        %v894 = vand.u32 %v522, 4294901760
        %895 = vmatpush1.msra.mxu0 %v894
        %896 = vmatprep.subr.mxu0 0.0
        %v897 = vand.u32 %v523, 4294901760
        %898 = vmatpush1.msra.mxu0 %v897
        %899 = vmatprep.subr.mxu0 0.0
        %v900 = vand.u32 %v524, 4294901760
        %901 = vmatpush1.msra.mxu0 %v900
        %902 = vmatprep.subr.mxu0 0.0
        %v903 = vand.u32 %v525, 4294901760
        %904 = vmatpush1.msra.mxu0 %v903
        %905 = vmatprep.subr.mxu0 0.0
        %v906 = vand.u32 %v526, 4294901760
        %907 = vmatpush1.msra.mxu0 %v906
        %908 = vmatprep.subr.mxu0 0.0
        %v909 = vand.u32 %v527, 4294901760
        %910 = vmatpush1.msra.mxu0 %v909
        %911 = vmatprep.subr.mxu0 0.0
        %v912 = vand.u32 %v528, 4294901760
        %913 = vmatpush1.msra.mxu0 %v912
        %914 = vmatprep.subr.mxu0 0.0
        %v915 = vand.u32 %v529, 4294901760
        %916 = vmatpush1.msra.mxu0 %v915
        %917 = vmatprep.subr.mxu0 0.0
        %v918 = vand.u32 %v530, 4294901760
        %919 = vmatpush1.msra.mxu0 %v918
        %920 = vmatprep.subr.mxu0 0.0
        %v921 = vand.u32 %v531, 4294901760
        %922 = vmatpush1.msra.mxu0 %v921
        %923 = vmatprep.subr.mxu0 0.0
        %v924 = vand.u32 %v532, 4294901760
        %925 = vmatpush1.msra.mxu0 %v924
        %926 = vmatprep.subr.mxu0 0.0
        %v927 = vand.u32 %v533, 4294901760
        %928 = vmatpush1.msra.mxu0 %v927
        %929 = vmatprep.subr.mxu0 0.0
        %v930 = vand.u32 %v534, 4294901760
        %931 = vmatpush1.msra.mxu0 %v930
        %932 = vmatprep.subr.mxu0 0.0
        %v933 = vand.u32 %v535, 4294901760
        %934 = vmatpush1.msra.mxu0 %v933
        %935 = vmatprep.subr.mxu0 0.0
        %v936 = vand.u32 %v536, 4294901760
        %937 = vmatpush1.msra.mxu0 %v936
        %938 = vmatprep.subr.mxu0 0.0
        %939 = vmatpush1.msra.mxu0 0.0
        %940 = vmatprep.subr.mxu0 0.0
        %941 = vmatpush1.msra.mxu0 0.0
        %942 = vmatprep.subr.mxu0 0.0
        %943 = vmatpush1.msra.mxu0 0.0
        %944 = vmatprep.subr.mxu0 0.0
        %945 = vmatpush1.msra.mxu0 0.0
        %946 = vmatprep.subr.mxu0 0.0
        %947 = vmatpush1.msra.mxu0 0.0
        %948 = vmatprep.subr.mxu0 0.0
        %949 = vmatpush1.msra.mxu0 0.0
        %950 = vmatprep.subr.mxu0 0.0
        %951 = vmatpush1.msra.mxu0 0.0
        %952 = vmatprep.subr.mxu0 0.0
        %953 = vmatpush1.msra.mxu0 0.0
        %954 = vmatprep.subr.mxu0 0.0
        %955 = vmatpush1.msra.mxu0 0.0
        %956 = vmatprep.subr.mxu0 0.0
        %957 = vmatpush1.msra.mxu0 0.0
        %958 = vmatprep.subr.mxu0 0.0
        %959 = vmatpush1.msra.mxu0 0.0
        %960 = vmatprep.subr.mxu0 0.0
        %961 = vmatpush1.msra.mxu0 0.0
        %962 = vmatprep.subr.mxu0 0.0
        %963 = vmatpush1.msra.mxu0 0.0
        %964 = vmatprep.subr.mxu0 0.0
        %965 = vmatpush1.msra.mxu0 0.0
        %966 = vmatprep.subr.mxu0 0.0
        %967 = vmatpush1.msra.mxu0 0.0
        %968 = vmatprep.subr.mxu0 0.0
        %969 = vmatpush1.msra.mxu0 0.0
        %970 = vmatprep.mubr.f32.mxu0 0.0
        %v971 = vand.u32 %v520, 4294901760
        %v972 = vsub.f32 %v520, %v971
        %v973 = vand.u32 %v972, 4294901760
        %974 = vmatmul.mubr.f32.gmra.mrb[0].mxu0 %v973
        %v975 = vpop.f32.mrb[0].mxu0
        %v976 = vadd.f32 %v887, %v975
        %v977 = vpop.f32.mrb[0].mxu0
        %978 = vdwg.mxu0
        %979 = vmatprep.subr.mxu0 0.0
        %v980 = vand.u32 %v521, 4294901760
        %v981 = vsub.f32 %v521, %v980
        %v982 = vand.u32 %v981, 4294901760
        %983 = vmatpush1.msra.mxu0 %v982
        %984 = vmatprep.subr.mxu0 0.0
        %v985 = vand.u32 %v522, 4294901760
        %v986 = vsub.f32 %v522, %v985
        %v987 = vand.u32 %v986, 4294901760
        %988 = vmatpush1.msra.mxu0 %v987
        %989 = vmatprep.subr.mxu0 0.0
        %v990 = vand.u32 %v523, 4294901760
        %v991 = vsub.f32 %v523, %v990
        %v992 = vand.u32 %v991, 4294901760
        %993 = vmatpush1.msra.mxu0 %v992
        %994 = vmatprep.subr.mxu0 0.0
        %v995 = vand.u32 %v524, 4294901760
        %v996 = vsub.f32 %v524, %v995
        %v997 = vand.u32 %v996, 4294901760
        %998 = vmatpush1.msra.mxu0 %v997
        %999 = vmatprep.subr.mxu0 0.0
        %v1000 = vand.u32 %v525, 4294901760
        %v1001 = vsub.f32 %v525, %v1000
        %v1002 = vand.u32 %v1001, 4294901760
        %1003 = vmatpush1.msra.mxu0 %v1002
        %1004 = vmatprep.subr.mxu0 0.0
        %v1005 = vand.u32 %v526, 4294901760
        %v1006 = vsub.f32 %v526, %v1005
        %v1007 = vand.u32 %v1006, 4294901760
        %1008 = vmatpush1.msra.mxu0 %v1007
        %1009 = vmatprep.subr.mxu0 0.0
        %v1010 = vand.u32 %v527, 4294901760
        %v1011 = vsub.f32 %v527, %v1010
        %v1012 = vand.u32 %v1011, 4294901760
        %1013 = vmatpush1.msra.mxu0 %v1012
        %1014 = vmatprep.subr.mxu0 0.0
        %v1015 = vand.u32 %v528, 4294901760
        %v1016 = vsub.f32 %v528, %v1015
        %v1017 = vand.u32 %v1016, 4294901760
        %1018 = vmatpush1.msra.mxu0 %v1017
        %1019 = vmatprep.subr.mxu0 0.0
        %v1020 = vand.u32 %v529, 4294901760
        %v1021 = vsub.f32 %v529, %v1020
        %v1022 = vand.u32 %v1021, 4294901760
        %1023 = vmatpush1.msra.mxu0 %v1022
        %1024 = vmatprep.subr.mxu0 0.0
        %v1025 = vand.u32 %v530, 4294901760
        %v1026 = vsub.f32 %v530, %v1025
        %v1027 = vand.u32 %v1026, 4294901760
        %1028 = vmatpush1.msra.mxu0 %v1027
        %1029 = vmatprep.subr.mxu0 0.0
        %v1030 = vand.u32 %v531, 4294901760
        %v1031 = vsub.f32 %v531, %v1030
        %v1032 = vand.u32 %v1031, 4294901760
        %1033 = vmatpush1.msra.mxu0 %v1032
        %1034 = vmatprep.subr.mxu0 0.0
        %v1035 = vand.u32 %v532, 4294901760
        %v1036 = vsub.f32 %v532, %v1035
        %v1037 = vand.u32 %v1036, 4294901760
        %1038 = vmatpush1.msra.mxu0 %v1037
        %1039 = vmatprep.subr.mxu0 0.0
        %v1040 = vand.u32 %v533, 4294901760
        %v1041 = vsub.f32 %v533, %v1040
        %v1042 = vand.u32 %v1041, 4294901760
        %1043 = vmatpush1.msra.mxu0 %v1042
        %1044 = vmatprep.subr.mxu0 0.0
        %v1045 = vand.u32 %v534, 4294901760
        %v1046 = vsub.f32 %v534, %v1045
        %v1047 = vand.u32 %v1046, 4294901760
        %1048 = vmatpush1.msra.mxu0 %v1047
        %1049 = vmatprep.subr.mxu0 0.0
        %v1050 = vand.u32 %v535, 4294901760
        %v1051 = vsub.f32 %v535, %v1050
        %v1052 = vand.u32 %v1051, 4294901760
        %1053 = vmatpush1.msra.mxu0 %v1052
        %1054 = vmatprep.subr.mxu0 0.0
        %v1055 = vand.u32 %v536, 4294901760
        %v1056 = vsub.f32 %v536, %v1055
        %v1057 = vand.u32 %v1056, 4294901760
        %1058 = vmatpush1.msra.mxu0 %v1057
        %1059 = vmatprep.subr.mxu0 0.0
        %1060 = vmatpush1.msra.mxu0 0.0
        %1061 = vmatprep.subr.mxu0 0.0
        %1062 = vmatpush1.msra.mxu0 0.0
        %1063 = vmatprep.subr.mxu0 0.0
        %1064 = vmatpush1.msra.mxu0 0.0
        %1065 = vmatprep.subr.mxu0 0.0
        %1066 = vmatpush1.msra.mxu0 0.0
        %1067 = vmatprep.subr.mxu0 0.0
        %1068 = vmatpush1.msra.mxu0 0.0
        %1069 = vmatprep.subr.mxu0 0.0
        %1070 = vmatpush1.msra.mxu0 0.0
        %1071 = vmatprep.subr.mxu0 0.0
        %1072 = vmatpush1.msra.mxu0 0.0
        %1073 = vmatprep.subr.mxu0 0.0
        %1074 = vmatpush1.msra.mxu0 0.0
        %1075 = vmatprep.subr.mxu0 0.0
        %1076 = vmatpush1.msra.mxu0 0.0
        %1077 = vmatprep.subr.mxu0 0.0
        %1078 = vmatpush1.msra.mxu0 0.0
        %1079 = vmatprep.subr.mxu0 0.0
        %1080 = vmatpush1.msra.mxu0 0.0
        %1081 = vmatprep.subr.mxu0 0.0
        %1082 = vmatpush1.msra.mxu0 0.0
        %1083 = vmatprep.subr.mxu0 0.0
        %1084 = vmatpush1.msra.mxu0 0.0
        %1085 = vmatprep.subr.mxu0 0.0
        %1086 = vmatpush1.msra.mxu0 0.0
        %1087 = vmatprep.subr.mxu0 0.0
        %1088 = vmatpush1.msra.mxu0 0.0
        %1089 = vmatprep.subr.mxu0 0.0
        %1090 = vmatpush1.msra.mxu0 0.0
        %1091 = vmatprep.mubr.f32.mxu0 0.0
        %v1092 = vand.u32 %v520, 4294901760
        %1093 = vmatmul.mubr.f32.gmra.mrb[0].mxu0 %v1092
        %v1094 = vpop.f32.mrb[0].mxu0
        %v1095 = vadd.f32 %v976, %v1094
        %v1096 = vpop.f32.mrb[0].mxu0
        %1097 = vdwg.mxu0
        %1098 = vmatprep.subr.mxu0 0.0
        %v1099 = vand.u32 %v521, 4294901760
        %1100 = vmatpush1.msra.mxu0 %v1099
        %1101 = vmatprep.subr.mxu0 0.0
        %v1102 = vand.u32 %v522, 4294901760
        %1103 = vmatpush1.msra.mxu0 %v1102
        %1104 = vmatprep.subr.mxu0 0.0
        %v1105 = vand.u32 %v523, 4294901760
        %1106 = vmatpush1.msra.mxu0 %v1105
        %1107 = vmatprep.subr.mxu0 0.0
        %v1108 = vand.u32 %v524, 4294901760
        %1109 = vmatpush1.msra.mxu0 %v1108
        %1110 = vmatprep.subr.mxu0 0.0
        %v1111 = vand.u32 %v525, 4294901760
        %1112 = vmatpush1.msra.mxu0 %v1111
        %1113 = vmatprep.subr.mxu0 0.0
        %v1114 = vand.u32 %v526, 4294901760
        %1115 = vmatpush1.msra.mxu0 %v1114
        %1116 = vmatprep.subr.mxu0 0.0
        %v1117 = vand.u32 %v527, 4294901760
        %1118 = vmatpush1.msra.mxu0 %v1117
        %1119 = vmatprep.subr.mxu0 0.0
        %v1120 = vand.u32 %v528, 4294901760
        %1121 = vmatpush1.msra.mxu0 %v1120
        %1122 = vmatprep.subr.mxu0 0.0
        %v1123 = vand.u32 %v529, 4294901760
        %1124 = vmatpush1.msra.mxu0 %v1123
        %1125 = vmatprep.subr.mxu0 0.0
        %v1126 = vand.u32 %v530, 4294901760
        %1127 = vmatpush1.msra.mxu0 %v1126
        %1128 = vmatprep.subr.mxu0 0.0
        %v1129 = vand.u32 %v531, 4294901760
        %1130 = vmatpush1.msra.mxu0 %v1129
        %1131 = vmatprep.subr.mxu0 0.0
        %v1132 = vand.u32 %v532, 4294901760
        %1133 = vmatpush1.msra.mxu0 %v1132
        %1134 = vmatprep.subr.mxu0 0.0
        %v1135 = vand.u32 %v533, 4294901760
        %1136 = vmatpush1.msra.mxu0 %v1135
        %1137 = vmatprep.subr.mxu0 0.0
        %v1138 = vand.u32 %v534, 4294901760
        %1139 = vmatpush1.msra.mxu0 %v1138
        %1140 = vmatprep.subr.mxu0 0.0
        %v1141 = vand.u32 %v535, 4294901760
        %1142 = vmatpush1.msra.mxu0 %v1141
        %1143 = vmatprep.subr.mxu0 0.0
        %v1144 = vand.u32 %v536, 4294901760
        %1145 = vmatpush1.msra.mxu0 %v1144
        %1146 = vmatprep.subr.mxu0 0.0
        %1147 = vmatpush1.msra.mxu0 0.0
        %1148 = vmatprep.subr.mxu0 0.0
        %1149 = vmatpush1.msra.mxu0 0.0
        %1150 = vmatprep.subr.mxu0 0.0
        %1151 = vmatpush1.msra.mxu0 0.0
        %1152 = vmatprep.subr.mxu0 0.0
        %1153 = vmatpush1.msra.mxu0 0.0
        %1154 = vmatprep.subr.mxu0 0.0
        %1155 = vmatpush1.msra.mxu0 0.0
        %1156 = vmatprep.subr.mxu0 0.0
        %1157 = vmatpush1.msra.mxu0 0.0
        %1158 = vmatprep.subr.mxu0 0.0
        %1159 = vmatpush1.msra.mxu0 0.0
        %1160 = vmatprep.subr.mxu0 0.0
        %1161 = vmatpush1.msra.mxu0 0.0
        %1162 = vmatprep.subr.mxu0 0.0
        %1163 = vmatpush1.msra.mxu0 0.0
        %1164 = vmatprep.subr.mxu0 0.0
        %1165 = vmatpush1.msra.mxu0 0.0
        %1166 = vmatprep.subr.mxu0 0.0
        %1167 = vmatpush1.msra.mxu0 0.0
        %1168 = vmatprep.subr.mxu0 0.0
        %1169 = vmatpush1.msra.mxu0 0.0
        %1170 = vmatprep.subr.mxu0 0.0
        %1171 = vmatpush1.msra.mxu0 0.0
        %1172 = vmatprep.subr.mxu0 0.0
        %1173 = vmatpush1.msra.mxu0 0.0
        %1174 = vmatprep.subr.mxu0 0.0
        %1175 = vmatpush1.msra.mxu0 0.0
        %1176 = vmatprep.subr.mxu0 0.0
        %1177 = vmatpush1.msra.mxu0 0.0
        %1178 = vmatprep.mubr.f32.mxu0 0.0
        %v1179 = vand.u32 %v520, 4294901760
        %1180 = vmatmul.mubr.f32.gmra.mrb[0].mxu0 %v1179
        %v1181 = vpop.f32.mrb[0].mxu0
        %v1182 = vadd.f32 %v1095, %v1181
        %v1183 = vpop.f32.mrb[0].mxu0
        %1184 = vdwg.mxu0
        %1185 = vst [vmem:[%s511] sm:$0xff] %v1182
        %v1186 = vld [vmem:[%s428] sm:$0xff]
        %v1187 = vld [vmem:[#allocation7] sm:$0xff]
        %v1188 = vld [vmem:[#allocation7 + $0x8] sm:$0xff]
        %v1189 = vld [vmem:[#allocation7 + $0x10] sm:$0xff]
        %v1190 = vld [vmem:[#allocation7 + $0x18] sm:$0xff]
        %v1191 = vld [vmem:[#allocation7 + $0x20] sm:$0xff]
        %v1192 = vld [vmem:[#allocation7 + $0x28] sm:$0xff]
        %v1193 = vld [vmem:[#allocation7 + $0x30] sm:$0xff]
        %v1194 = vld [vmem:[#allocation7 + $0x38] sm:$0xff]
        %v1195 = vld [vmem:[#allocation7 + $0x40] sm:$0xff]
        %v1196 = vld [vmem:[#allocation7 + $0x48] sm:$0xff]
        %v1197 = vld [vmem:[#allocation7 + $0x50] sm:$0xff]
        %v1198 = vld [vmem:[#allocation7 + $0x58] sm:$0xff]
        %v1199 = vld [vmem:[#allocation7 + $0x60] sm:$0xff]
        %v1200 = vld [vmem:[#allocation7 + $0x68] sm:$0xff]
        %v1201 = vld [vmem:[#allocation7 + $0x70] sm:$0xff]
        %v1202 = vld [vmem:[#allocation7 + $0x78] sm:$0xff]
        %v1203 = vld [vmem:[%s7] sm:$0x1]
        %v1205 = vlaneseq
        %v1206 = vshrl.u32 %v1205, 7
        %v1207 = vsub.s32 0, %v1206
        %v1208 = vrot.slane %v1203, %v1207
        %1210 = vmatprep.subr.mxu0 0.0
        %v1211 = vand.u32 %v1187, 4294901760
        %1212 = vmatpush1.msra.mxu0 %v1211
        %1213 = vmatprep.subr.mxu0 0.0
        %v1214 = vand.u32 %v1188, 4294901760
        %1215 = vmatpush1.msra.mxu0 %v1214
        %1216 = vmatprep.subr.mxu0 0.0
        %v1217 = vand.u32 %v1189, 4294901760
        %1218 = vmatpush1.msra.mxu0 %v1217
        %1219 = vmatprep.subr.mxu0 0.0
        %v1220 = vand.u32 %v1190, 4294901760
        %1221 = vmatpush1.msra.mxu0 %v1220
        %1222 = vmatprep.subr.mxu0 0.0
        %v1223 = vand.u32 %v1191, 4294901760
        %1224 = vmatpush1.msra.mxu0 %v1223
        %1225 = vmatprep.subr.mxu0 0.0
        %v1226 = vand.u32 %v1192, 4294901760
        %1227 = vmatpush1.msra.mxu0 %v1226
        %1228 = vmatprep.subr.mxu0 0.0
        %v1229 = vand.u32 %v1193, 4294901760
        %1230 = vmatpush1.msra.mxu0 %v1229
        %1231 = vmatprep.subr.mxu0 0.0
        %v1232 = vand.u32 %v1194, 4294901760
        %1233 = vmatpush1.msra.mxu0 %v1232
        %1234 = vmatprep.subr.mxu0 0.0
        %v1235 = vand.u32 %v1195, 4294901760
        %1236 = vmatpush1.msra.mxu0 %v1235
        %1237 = vmatprep.subr.mxu0 0.0
        %v1238 = vand.u32 %v1196, 4294901760
        %1239 = vmatpush1.msra.mxu0 %v1238
        %1240 = vmatprep.subr.mxu0 0.0
        %v1241 = vand.u32 %v1197, 4294901760
        %1242 = vmatpush1.msra.mxu0 %v1241
        %1243 = vmatprep.subr.mxu0 0.0
        %v1244 = vand.u32 %v1198, 4294901760
        %1245 = vmatpush1.msra.mxu0 %v1244
        %1246 = vmatprep.subr.mxu0 0.0
        %v1247 = vand.u32 %v1199, 4294901760
        %1248 = vmatpush1.msra.mxu0 %v1247
        %1249 = vmatprep.subr.mxu0 0.0
        %v1250 = vand.u32 %v1200, 4294901760
        %1251 = vmatpush1.msra.mxu0 %v1250
        %1252 = vmatprep.subr.mxu0 0.0
        %v1253 = vand.u32 %v1201, 4294901760
        %1254 = vmatpush1.msra.mxu0 %v1253
        %1255 = vmatprep.subr.mxu0 0.0
        %v1256 = vand.u32 %v1202, 4294901760
        %1257 = vmatpush1.msra.mxu0 %v1256
        %1258 = vmatprep.subr.mxu0 0.0
        %1259 = vmatpush1.msra.mxu0 0.0
        %1260 = vmatprep.subr.mxu0 0.0
        %1261 = vmatpush1.msra.mxu0 0.0
        %1262 = vmatprep.subr.mxu0 0.0
        %1263 = vmatpush1.msra.mxu0 0.0
        %1264 = vmatprep.subr.mxu0 0.0
        %1265 = vmatpush1.msra.mxu0 0.0
        %1266 = vmatprep.subr.mxu0 0.0
        %1267 = vmatpush1.msra.mxu0 0.0
        %1268 = vmatprep.subr.mxu0 0.0
        %1269 = vmatpush1.msra.mxu0 0.0
        %1270 = vmatprep.subr.mxu0 0.0
        %1271 = vmatpush1.msra.mxu0 0.0
        %1272 = vmatprep.subr.mxu0 0.0
        %1273 = vmatpush1.msra.mxu0 0.0
        %1274 = vmatprep.subr.mxu0 0.0
        %1275 = vmatpush1.msra.mxu0 0.0
        %1276 = vmatprep.subr.mxu0 0.0
        %1277 = vmatpush1.msra.mxu0 0.0
        %1278 = vmatprep.subr.mxu0 0.0
        %1279 = vmatpush1.msra.mxu0 0.0
        %1280 = vmatprep.subr.mxu0 0.0
        %1281 = vmatpush1.msra.mxu0 0.0
        %1282 = vmatprep.subr.mxu0 0.0
        %1283 = vmatpush1.msra.mxu0 0.0
        %1284 = vmatprep.subr.mxu0 0.0
        %1285 = vmatpush1.msra.mxu0 0.0
        %1286 = vmatprep.subr.mxu0 0.0
        %1287 = vmatpush1.msra.mxu0 0.0
        %1288 = vmatprep.subr.mxu0 0.0
        %1289 = vmatpush1.msra.mxu0 0.0
        %1290 = vmatprep.mubr.f32.mxu0 0.0
        %v1291 = vand.u32 %v1186, 4294901760
        %v1292 = vsub.f32 %v1186, %v1291
        %v1293 = vand.u32 %v1292, 4294901760
        %v1294 = vsub.f32 %v1292, %v1293
        %v1295 = vand.u32 %v1294, 4294901760
        %1296 = vmatmul.mubr.f32.gmra.mrb[0].mxu0 %v1295
        %v1297 = vpop.f32.mrb[0].mxu0
        %v1298 = vadd.f32 %v1208, %v1297
        %v1299 = vpop.f32.mrb[0].mxu0
        %1300 = vdwg.mxu0
        %1301 = vmatprep.subr.mxu0 0.0
        %v1302 = vand.u32 %v1187, 4294901760
        %v1303 = vsub.f32 %v1187, %v1302
        %v1304 = vand.u32 %v1303, 4294901760
        %v1305 = vsub.f32 %v1303, %v1304
        %v1306 = vand.u32 %v1305, 4294901760
        %1307 = vmatpush1.msra.mxu0 %v1306
        %1308 = vmatprep.subr.mxu0 0.0
        %v1309 = vand.u32 %v1188, 4294901760
        %v1310 = vsub.f32 %v1188, %v1309
        %v1311 = vand.u32 %v1310, 4294901760
        %v1312 = vsub.f32 %v1310, %v1311
        %v1313 = vand.u32 %v1312, 4294901760
        %1314 = vmatpush1.msra.mxu0 %v1313
        %1315 = vmatprep.subr.mxu0 0.0
        %v1316 = vand.u32 %v1189, 4294901760
        %v1317 = vsub.f32 %v1189, %v1316
        %v1318 = vand.u32 %v1317, 4294901760
        %v1319 = vsub.f32 %v1317, %v1318
        %v1320 = vand.u32 %v1319, 4294901760
        %1321 = vmatpush1.msra.mxu0 %v1320
        %1322 = vmatprep.subr.mxu0 0.0
        %v1323 = vand.u32 %v1190, 4294901760
        %v1324 = vsub.f32 %v1190, %v1323
        %v1325 = vand.u32 %v1324, 4294901760
        %v1326 = vsub.f32 %v1324, %v1325
        %v1327 = vand.u32 %v1326, 4294901760
        %1328 = vmatpush1.msra.mxu0 %v1327
        %1329 = vmatprep.subr.mxu0 0.0
        %v1330 = vand.u32 %v1191, 4294901760
        %v1331 = vsub.f32 %v1191, %v1330
        %v1332 = vand.u32 %v1331, 4294901760
        %v1333 = vsub.f32 %v1331, %v1332
        %v1334 = vand.u32 %v1333, 4294901760
        %1335 = vmatpush1.msra.mxu0 %v1334
        %1336 = vmatprep.subr.mxu0 0.0
        %v1337 = vand.u32 %v1192, 4294901760
        %v1338 = vsub.f32 %v1192, %v1337
        %v1339 = vand.u32 %v1338, 4294901760
        %v1340 = vsub.f32 %v1338, %v1339
        %v1341 = vand.u32 %v1340, 4294901760
        %1342 = vmatpush1.msra.mxu0 %v1341
        %1343 = vmatprep.subr.mxu0 0.0
        %v1344 = vand.u32 %v1193, 4294901760
        %v1345 = vsub.f32 %v1193, %v1344
        %v1346 = vand.u32 %v1345, 4294901760
        %v1347 = vsub.f32 %v1345, %v1346
        %v1348 = vand.u32 %v1347, 4294901760
        %1349 = vmatpush1.msra.mxu0 %v1348
        %1350 = vmatprep.subr.mxu0 0.0
        %v1351 = vand.u32 %v1194, 4294901760
        %v1352 = vsub.f32 %v1194, %v1351
        %v1353 = vand.u32 %v1352, 4294901760
        %v1354 = vsub.f32 %v1352, %v1353
        %v1355 = vand.u32 %v1354, 4294901760
        %1356 = vmatpush1.msra.mxu0 %v1355
        %1357 = vmatprep.subr.mxu0 0.0
        %v1358 = vand.u32 %v1195, 4294901760
        %v1359 = vsub.f32 %v1195, %v1358
        %v1360 = vand.u32 %v1359, 4294901760
        %v1361 = vsub.f32 %v1359, %v1360
        %v1362 = vand.u32 %v1361, 4294901760
        %1363 = vmatpush1.msra.mxu0 %v1362
        %1364 = vmatprep.subr.mxu0 0.0
        %v1365 = vand.u32 %v1196, 4294901760
        %v1366 = vsub.f32 %v1196, %v1365
        %v1367 = vand.u32 %v1366, 4294901760
        %v1368 = vsub.f32 %v1366, %v1367
        %v1369 = vand.u32 %v1368, 4294901760
        %1370 = vmatpush1.msra.mxu0 %v1369
        %1371 = vmatprep.subr.mxu0 0.0
        %v1372 = vand.u32 %v1197, 4294901760
        %v1373 = vsub.f32 %v1197, %v1372
        %v1374 = vand.u32 %v1373, 4294901760
        %v1375 = vsub.f32 %v1373, %v1374
        %v1376 = vand.u32 %v1375, 4294901760
        %1377 = vmatpush1.msra.mxu0 %v1376
        %1378 = vmatprep.subr.mxu0 0.0
        %v1379 = vand.u32 %v1198, 4294901760
        %v1380 = vsub.f32 %v1198, %v1379
        %v1381 = vand.u32 %v1380, 4294901760
        %v1382 = vsub.f32 %v1380, %v1381
        %v1383 = vand.u32 %v1382, 4294901760
        %1384 = vmatpush1.msra.mxu0 %v1383
        %1385 = vmatprep.subr.mxu0 0.0
        %v1386 = vand.u32 %v1199, 4294901760
        %v1387 = vsub.f32 %v1199, %v1386
        %v1388 = vand.u32 %v1387, 4294901760
        %v1389 = vsub.f32 %v1387, %v1388
        %v1390 = vand.u32 %v1389, 4294901760
        %1391 = vmatpush1.msra.mxu0 %v1390
        %1392 = vmatprep.subr.mxu0 0.0
        %v1393 = vand.u32 %v1200, 4294901760
        %v1394 = vsub.f32 %v1200, %v1393
        %v1395 = vand.u32 %v1394, 4294901760
        %v1396 = vsub.f32 %v1394, %v1395
        %v1397 = vand.u32 %v1396, 4294901760
        %1398 = vmatpush1.msra.mxu0 %v1397
        %1399 = vmatprep.subr.mxu0 0.0
        %v1400 = vand.u32 %v1201, 4294901760
        %v1401 = vsub.f32 %v1201, %v1400
        %v1402 = vand.u32 %v1401, 4294901760
        %v1403 = vsub.f32 %v1401, %v1402
        %v1404 = vand.u32 %v1403, 4294901760
        %1405 = vmatpush1.msra.mxu0 %v1404
        %1406 = vmatprep.subr.mxu0 0.0
        %v1407 = vand.u32 %v1202, 4294901760
        %v1408 = vsub.f32 %v1202, %v1407
        %v1409 = vand.u32 %v1408, 4294901760
        %v1410 = vsub.f32 %v1408, %v1409
        %v1411 = vand.u32 %v1410, 4294901760
        %1412 = vmatpush1.msra.mxu0 %v1411
        %1413 = vmatprep.subr.mxu0 0.0
        %1414 = vmatpush1.msra.mxu0 0.0
        %1415 = vmatprep.subr.mxu0 0.0
        %1416 = vmatpush1.msra.mxu0 0.0
        %1417 = vmatprep.subr.mxu0 0.0
        %1418 = vmatpush1.msra.mxu0 0.0
        %1419 = vmatprep.subr.mxu0 0.0
        %1420 = vmatpush1.msra.mxu0 0.0
        %1421 = vmatprep.subr.mxu0 0.0
        %1422 = vmatpush1.msra.mxu0 0.0
        %1423 = vmatprep.subr.mxu0 0.0
        %1424 = vmatpush1.msra.mxu0 0.0
        %1425 = vmatprep.subr.mxu0 0.0
        %1426 = vmatpush1.msra.mxu0 0.0
        %1427 = vmatprep.subr.mxu0 0.0
        %1428 = vmatpush1.msra.mxu0 0.0
        %1429 = vmatprep.subr.mxu0 0.0
        %1430 = vmatpush1.msra.mxu0 0.0
        %1431 = vmatprep.subr.mxu0 0.0
        %1432 = vmatpush1.msra.mxu0 0.0
        %1433 = vmatprep.subr.mxu0 0.0
        %1434 = vmatpush1.msra.mxu0 0.0
        %1435 = vmatprep.subr.mxu0 0.0
        %1436 = vmatpush1.msra.mxu0 0.0
        %1437 = vmatprep.subr.mxu0 0.0
        %1438 = vmatpush1.msra.mxu0 0.0
        %1439 = vmatprep.subr.mxu0 0.0
        %1440 = vmatpush1.msra.mxu0 0.0
        %1441 = vmatprep.subr.mxu0 0.0
        %1442 = vmatpush1.msra.mxu0 0.0
        %1443 = vmatprep.subr.mxu0 0.0
        %1444 = vmatpush1.msra.mxu0 0.0
        %1445 = vmatprep.mubr.f32.mxu0 0.0
        %v1446 = vand.u32 %v1186, 4294901760
        %1447 = vmatmul.mubr.f32.gmra.mrb[0].mxu0 %v1446
        %v1448 = vpop.f32.mrb[0].mxu0
        %v1449 = vadd.f32 %v1298, %v1448
        %v1450 = vpop.f32.mrb[0].mxu0
        %1451 = vdwg.mxu0
        %1452 = vmatprep.subr.mxu0 0.0
        %v1453 = vand.u32 %v1187, 4294901760
        %v1454 = vsub.f32 %v1187, %v1453
        %1455 = vmatpush1.msra.mxu0 %v1454
        %1456 = vmatprep.subr.mxu0 0.0
        %v1457 = vand.u32 %v1188, 4294901760
        %v1458 = vsub.f32 %v1188, %v1457
        %1459 = vmatpush1.msra.mxu0 %v1458
        %1460 = vmatprep.subr.mxu0 0.0
        %v1461 = vand.u32 %v1189, 4294901760
        %v1462 = vsub.f32 %v1189, %v1461
        %1463 = vmatpush1.msra.mxu0 %v1462
        %1464 = vmatprep.subr.mxu0 0.0
        %v1465 = vand.u32 %v1190, 4294901760
        %v1466 = vsub.f32 %v1190, %v1465
        %1467 = vmatpush1.msra.mxu0 %v1466
        %1468 = vmatprep.subr.mxu0 0.0
        %v1469 = vand.u32 %v1191, 4294901760
        %v1470 = vsub.f32 %v1191, %v1469
        %1471 = vmatpush1.msra.mxu0 %v1470
        %1472 = vmatprep.subr.mxu0 0.0
        %v1473 = vand.u32 %v1192, 4294901760
        %v1474 = vsub.f32 %v1192, %v1473
        %1475 = vmatpush1.msra.mxu0 %v1474
        %1476 = vmatprep.subr.mxu0 0.0
        %v1477 = vand.u32 %v1193, 4294901760
        %v1478 = vsub.f32 %v1193, %v1477
        %1479 = vmatpush1.msra.mxu0 %v1478
        %1480 = vmatprep.subr.mxu0 0.0
        %v1481 = vand.u32 %v1194, 4294901760
        %v1482 = vsub.f32 %v1194, %v1481
        %1483 = vmatpush1.msra.mxu0 %v1482
        %1484 = vmatprep.subr.mxu0 0.0
        %v1485 = vand.u32 %v1195, 4294901760
        %v1486 = vsub.f32 %v1195, %v1485
        %1487 = vmatpush1.msra.mxu0 %v1486
        %1488 = vmatprep.subr.mxu0 0.0
        %v1489 = vand.u32 %v1196, 4294901760
        %v1490 = vsub.f32 %v1196, %v1489
        %1491 = vmatpush1.msra.mxu0 %v1490
        %1492 = vmatprep.subr.mxu0 0.0
        %v1493 = vand.u32 %v1197, 4294901760
        %v1494 = vsub.f32 %v1197, %v1493
        %1495 = vmatpush1.msra.mxu0 %v1494
        %1496 = vmatprep.subr.mxu0 0.0
        %v1497 = vand.u32 %v1198, 4294901760
        %v1498 = vsub.f32 %v1198, %v1497
        %1499 = vmatpush1.msra.mxu0 %v1498
        %1500 = vmatprep.subr.mxu0 0.0
        %v1501 = vand.u32 %v1199, 4294901760
        %v1502 = vsub.f32 %v1199, %v1501
        %1503 = vmatpush1.msra.mxu0 %v1502
        %1504 = vmatprep.subr.mxu0 0.0
        %v1505 = vand.u32 %v1200, 4294901760
        %v1506 = vsub.f32 %v1200, %v1505
        %1507 = vmatpush1.msra.mxu0 %v1506
        %1508 = vmatprep.subr.mxu0 0.0
        %v1509 = vand.u32 %v1201, 4294901760
        %v1510 = vsub.f32 %v1201, %v1509
        %1511 = vmatpush1.msra.mxu0 %v1510
        %1512 = vmatprep.subr.mxu0 0.0
        %v1513 = vand.u32 %v1202, 4294901760
        %v1514 = vsub.f32 %v1202, %v1513
        %1515 = vmatpush1.msra.mxu0 %v1514
        %1516 = vmatprep.subr.mxu0 0.0
        %1517 = vmatpush1.msra.mxu0 0.0
        %1518 = vmatprep.subr.mxu0 0.0
        %1519 = vmatpush1.msra.mxu0 0.0
        %1520 = vmatprep.subr.mxu0 0.0
        %1521 = vmatpush1.msra.mxu0 0.0
        %1522 = vmatprep.subr.mxu0 0.0
        %1523 = vmatpush1.msra.mxu0 0.0
        %1524 = vmatprep.subr.mxu0 0.0
        %1525 = vmatpush1.msra.mxu0 0.0
        %1526 = vmatprep.subr.mxu0 0.0
        %1527 = vmatpush1.msra.mxu0 0.0
        %1528 = vmatprep.subr.mxu0 0.0
        %1529 = vmatpush1.msra.mxu0 0.0
        %1530 = vmatprep.subr.mxu0 0.0
        %1531 = vmatpush1.msra.mxu0 0.0
        %1532 = vmatprep.subr.mxu0 0.0
        %1533 = vmatpush1.msra.mxu0 0.0
        %1534 = vmatprep.subr.mxu0 0.0
        %1535 = vmatpush1.msra.mxu0 0.0
        %1536 = vmatprep.subr.mxu0 0.0
        %1537 = vmatpush1.msra.mxu0 0.0
        %1538 = vmatprep.subr.mxu0 0.0
        %1539 = vmatpush1.msra.mxu0 0.0
        %1540 = vmatprep.subr.mxu0 0.0
        %1541 = vmatpush1.msra.mxu0 0.0
        %1542 = vmatprep.subr.mxu0 0.0
        %1543 = vmatpush1.msra.mxu0 0.0
        %1544 = vmatprep.subr.mxu0 0.0
        %1545 = vmatpush1.msra.mxu0 0.0
        %1546 = vmatprep.subr.mxu0 0.0
        %1547 = vmatpush1.msra.mxu0 0.0
        %1548 = vmatprep.mubr.f32.mxu0 0.0
        %v1549 = vand.u32 %v1186, 4294901760
        %v1550 = vsub.f32 %v1186, %v1549
        %1551 = vmatmul.mubr.f32.gmra.mrb[0].mxu0 %v1550
        %v1552 = vpop.f32.mrb[0].mxu0
        %v1553 = vadd.f32 %v1449, %v1552
        %v1554 = vpop.f32.mrb[0].mxu0
        %1555 = vdwg.mxu0
        %1556 = vmatprep.subr.mxu0 0.0
        %v1557 = vand.u32 %v1187, 4294901760
        %1558 = vmatpush1.msra.mxu0 %v1557
        %1559 = vmatprep.subr.mxu0 0.0
        %v1560 = vand.u32 %v1188, 4294901760
        %1561 = vmatpush1.msra.mxu0 %v1560
        %1562 = vmatprep.subr.mxu0 0.0
        %v1563 = vand.u32 %v1189, 4294901760
        %1564 = vmatpush1.msra.mxu0 %v1563
        %1565 = vmatprep.subr.mxu0 0.0
        %v1566 = vand.u32 %v1190, 4294901760
        %1567 = vmatpush1.msra.mxu0 %v1566
        %1568 = vmatprep.subr.mxu0 0.0
        %v1569 = vand.u32 %v1191, 4294901760
        %1570 = vmatpush1.msra.mxu0 %v1569
        %1571 = vmatprep.subr.mxu0 0.0
        %v1572 = vand.u32 %v1192, 4294901760
        %1573 = vmatpush1.msra.mxu0 %v1572
        %1574 = vmatprep.subr.mxu0 0.0
        %v1575 = vand.u32 %v1193, 4294901760
        %1576 = vmatpush1.msra.mxu0 %v1575
        %1577 = vmatprep.subr.mxu0 0.0
        %v1578 = vand.u32 %v1194, 4294901760
        %1579 = vmatpush1.msra.mxu0 %v1578
        %1580 = vmatprep.subr.mxu0 0.0
        %v1581 = vand.u32 %v1195, 4294901760
        %1582 = vmatpush1.msra.mxu0 %v1581
        %1583 = vmatprep.subr.mxu0 0.0
        %v1584 = vand.u32 %v1196, 4294901760
        %1585 = vmatpush1.msra.mxu0 %v1584
        %1586 = vmatprep.subr.mxu0 0.0
        %v1587 = vand.u32 %v1197, 4294901760
        %1588 = vmatpush1.msra.mxu0 %v1587
        %1589 = vmatprep.subr.mxu0 0.0
        %v1590 = vand.u32 %v1198, 4294901760
        %1591 = vmatpush1.msra.mxu0 %v1590
        %1592 = vmatprep.subr.mxu0 0.0
        %v1593 = vand.u32 %v1199, 4294901760
        %1594 = vmatpush1.msra.mxu0 %v1593
        %1595 = vmatprep.subr.mxu0 0.0
        %v1596 = vand.u32 %v1200, 4294901760
        %1597 = vmatpush1.msra.mxu0 %v1596
        %1598 = vmatprep.subr.mxu0 0.0
        %v1599 = vand.u32 %v1201, 4294901760
        %1600 = vmatpush1.msra.mxu0 %v1599
        %1601 = vmatprep.subr.mxu0 0.0
        %v1602 = vand.u32 %v1202, 4294901760
        %1603 = vmatpush1.msra.mxu0 %v1602
        %1604 = vmatprep.subr.mxu0 0.0
        %1605 = vmatpush1.msra.mxu0 0.0
        %1606 = vmatprep.subr.mxu0 0.0
        %1607 = vmatpush1.msra.mxu0 0.0
        %1608 = vmatprep.subr.mxu0 0.0
        %1609 = vmatpush1.msra.mxu0 0.0
        %1610 = vmatprep.subr.mxu0 0.0
        %1611 = vmatpush1.msra.mxu0 0.0
        %1612 = vmatprep.subr.mxu0 0.0
        %1613 = vmatpush1.msra.mxu0 0.0
        %1614 = vmatprep.subr.mxu0 0.0
        %1615 = vmatpush1.msra.mxu0 0.0
        %1616 = vmatprep.subr.mxu0 0.0
        %1617 = vmatpush1.msra.mxu0 0.0
        %1618 = vmatprep.subr.mxu0 0.0
        %1619 = vmatpush1.msra.mxu0 0.0
        %1620 = vmatprep.subr.mxu0 0.0
        %1621 = vmatpush1.msra.mxu0 0.0
        %1622 = vmatprep.subr.mxu0 0.0
        %1623 = vmatpush1.msra.mxu0 0.0
        %1624 = vmatprep.subr.mxu0 0.0
        %1625 = vmatpush1.msra.mxu0 0.0
        %1626 = vmatprep.subr.mxu0 0.0
        %1627 = vmatpush1.msra.mxu0 0.0
        %1628 = vmatprep.subr.mxu0 0.0
        %1629 = vmatpush1.msra.mxu0 0.0
        %1630 = vmatprep.subr.mxu0 0.0
        %1631 = vmatpush1.msra.mxu0 0.0
        %1632 = vmatprep.subr.mxu0 0.0
        %1633 = vmatpush1.msra.mxu0 0.0
        %1634 = vmatprep.subr.mxu0 0.0
        %1635 = vmatpush1.msra.mxu0 0.0
        %1636 = vmatprep.mubr.f32.mxu0 0.0
        %v1637 = vand.u32 %v1186, 4294901760
        %v1638 = vsub.f32 %v1186, %v1637
        %v1639 = vand.u32 %v1638, 4294901760
        %1640 = vmatmul.mubr.f32.gmra.mrb[0].mxu0 %v1639
        %v1641 = vpop.f32.mrb[0].mxu0
        %v1642 = vadd.f32 %v1553, %v1641
        %v1643 = vpop.f32.mrb[0].mxu0
        %1644 = vdwg.mxu0
        %1645 = vmatprep.subr.mxu0 0.0
        %v1646 = vand.u32 %v1187, 4294901760
        %v1647 = vsub.f32 %v1187, %v1646
        %v1648 = vand.u32 %v1647, 4294901760
        %1649 = vmatpush1.msra.mxu0 %v1648
        %1650 = vmatprep.subr.mxu0 0.0
        %v1651 = vand.u32 %v1188, 4294901760
        %v1652 = vsub.f32 %v1188, %v1651
        %v1653 = vand.u32 %v1652, 4294901760
        %1654 = vmatpush1.msra.mxu0 %v1653
        %1655 = vmatprep.subr.mxu0 0.0
        %v1656 = vand.u32 %v1189, 4294901760
        %v1657 = vsub.f32 %v1189, %v1656
        %v1658 = vand.u32 %v1657, 4294901760
        %1659 = vmatpush1.msra.mxu0 %v1658
        %1660 = vmatprep.subr.mxu0 0.0
        %v1661 = vand.u32 %v1190, 4294901760
        %v1662 = vsub.f32 %v1190, %v1661
        %v1663 = vand.u32 %v1662, 4294901760
        %1664 = vmatpush1.msra.mxu0 %v1663
        %1665 = vmatprep.subr.mxu0 0.0
        %v1666 = vand.u32 %v1191, 4294901760
        %v1667 = vsub.f32 %v1191, %v1666
        %v1668 = vand.u32 %v1667, 4294901760
        %1669 = vmatpush1.msra.mxu0 %v1668
        %1670 = vmatprep.subr.mxu0 0.0
        %v1671 = vand.u32 %v1192, 4294901760
        %v1672 = vsub.f32 %v1192, %v1671
        %v1673 = vand.u32 %v1672, 4294901760
        %1674 = vmatpush1.msra.mxu0 %v1673
        %1675 = vmatprep.subr.mxu0 0.0
        %v1676 = vand.u32 %v1193, 4294901760
        %v1677 = vsub.f32 %v1193, %v1676
        %v1678 = vand.u32 %v1677, 4294901760
        %1679 = vmatpush1.msra.mxu0 %v1678
        %1680 = vmatprep.subr.mxu0 0.0
        %v1681 = vand.u32 %v1194, 4294901760
        %v1682 = vsub.f32 %v1194, %v1681
        %v1683 = vand.u32 %v1682, 4294901760
        %1684 = vmatpush1.msra.mxu0 %v1683
        %1685 = vmatprep.subr.mxu0 0.0
        %v1686 = vand.u32 %v1195, 4294901760
        %v1687 = vsub.f32 %v1195, %v1686
        %v1688 = vand.u32 %v1687, 4294901760
        %1689 = vmatpush1.msra.mxu0 %v1688
        %1690 = vmatprep.subr.mxu0 0.0
        %v1691 = vand.u32 %v1196, 4294901760
        %v1692 = vsub.f32 %v1196, %v1691
        %v1693 = vand.u32 %v1692, 4294901760
        %1694 = vmatpush1.msra.mxu0 %v1693
        %1695 = vmatprep.subr.mxu0 0.0
        %v1696 = vand.u32 %v1197, 4294901760
        %v1697 = vsub.f32 %v1197, %v1696
        %v1698 = vand.u32 %v1697, 4294901760
        %1699 = vmatpush1.msra.mxu0 %v1698
        %1700 = vmatprep.subr.mxu0 0.0
        %v1701 = vand.u32 %v1198, 4294901760
        %v1702 = vsub.f32 %v1198, %v1701
        %v1703 = vand.u32 %v1702, 4294901760
        %1704 = vmatpush1.msra.mxu0 %v1703
        %1705 = vmatprep.subr.mxu0 0.0
        %v1706 = vand.u32 %v1199, 4294901760
        %v1707 = vsub.f32 %v1199, %v1706
        %v1708 = vand.u32 %v1707, 4294901760
        %1709 = vmatpush1.msra.mxu0 %v1708
        %1710 = vmatprep.subr.mxu0 0.0
        %v1711 = vand.u32 %v1200, 4294901760
        %v1712 = vsub.f32 %v1200, %v1711
        %v1713 = vand.u32 %v1712, 4294901760
        %1714 = vmatpush1.msra.mxu0 %v1713
        %1715 = vmatprep.subr.mxu0 0.0
        %v1716 = vand.u32 %v1201, 4294901760
        %v1717 = vsub.f32 %v1201, %v1716
        %v1718 = vand.u32 %v1717, 4294901760
        %1719 = vmatpush1.msra.mxu0 %v1718
        %1720 = vmatprep.subr.mxu0 0.0
        %v1721 = vand.u32 %v1202, 4294901760
        %v1722 = vsub.f32 %v1202, %v1721
        %v1723 = vand.u32 %v1722, 4294901760
        %1724 = vmatpush1.msra.mxu0 %v1723
        %1725 = vmatprep.subr.mxu0 0.0
        %1726 = vmatpush1.msra.mxu0 0.0
        %1727 = vmatprep.subr.mxu0 0.0
        %1728 = vmatpush1.msra.mxu0 0.0
        %1729 = vmatprep.subr.mxu0 0.0
        %1730 = vmatpush1.msra.mxu0 0.0
        %1731 = vmatprep.subr.mxu0 0.0
        %1732 = vmatpush1.msra.mxu0 0.0
        %1733 = vmatprep.subr.mxu0 0.0
        %1734 = vmatpush1.msra.mxu0 0.0
        %1735 = vmatprep.subr.mxu0 0.0
        %1736 = vmatpush1.msra.mxu0 0.0
        %1737 = vmatprep.subr.mxu0 0.0
        %1738 = vmatpush1.msra.mxu0 0.0
        %1739 = vmatprep.subr.mxu0 0.0
        %1740 = vmatpush1.msra.mxu0 0.0
        %1741 = vmatprep.subr.mxu0 0.0
        %1742 = vmatpush1.msra.mxu0 0.0
        %1743 = vmatprep.subr.mxu0 0.0
        %1744 = vmatpush1.msra.mxu0 0.0
        %1745 = vmatprep.subr.mxu0 0.0
        %1746 = vmatpush1.msra.mxu0 0.0
        %1747 = vmatprep.subr.mxu0 0.0
        %1748 = vmatpush1.msra.mxu0 0.0
        %1749 = vmatprep.subr.mxu0 0.0
        %1750 = vmatpush1.msra.mxu0 0.0
        %1751 = vmatprep.subr.mxu0 0.0
        %1752 = vmatpush1.msra.mxu0 0.0
        %1753 = vmatprep.subr.mxu0 0.0
        %1754 = vmatpush1.msra.mxu0 0.0
        %1755 = vmatprep.subr.mxu0 0.0
        %1756 = vmatpush1.msra.mxu0 0.0
        %1757 = vmatprep.mubr.f32.mxu0 0.0
        %v1758 = vand.u32 %v1186, 4294901760
        %1759 = vmatmul.mubr.f32.gmra.mrb[0].mxu0 %v1758
        %v1760 = vpop.f32.mrb[0].mxu0
        %v1761 = vadd.f32 %v1642, %v1760
        %v1762 = vpop.f32.mrb[0].mxu0
        %1763 = vdwg.mxu0
        %1764 = vmatprep.subr.mxu0 0.0
        %v1765 = vand.u32 %v1187, 4294901760
        %1766 = vmatpush1.msra.mxu0 %v1765
        %1767 = vmatprep.subr.mxu0 0.0
        %v1768 = vand.u32 %v1188, 4294901760
        %1769 = vmatpush1.msra.mxu0 %v1768
        %1770 = vmatprep.subr.mxu0 0.0
        %v1771 = vand.u32 %v1189, 4294901760
        %1772 = vmatpush1.msra.mxu0 %v1771
        %1773 = vmatprep.subr.mxu0 0.0
        %v1774 = vand.u32 %v1190, 4294901760
        %1775 = vmatpush1.msra.mxu0 %v1774
        %1776 = vmatprep.subr.mxu0 0.0
        %v1777 = vand.u32 %v1191, 4294901760
        %1778 = vmatpush1.msra.mxu0 %v1777
        %1779 = vmatprep.subr.mxu0 0.0
        %v1780 = vand.u32 %v1192, 4294901760
        %1781 = vmatpush1.msra.mxu0 %v1780
        %1782 = vmatprep.subr.mxu0 0.0
        %v1783 = vand.u32 %v1193, 4294901760
        %1784 = vmatpush1.msra.mxu0 %v1783
        %1785 = vmatprep.subr.mxu0 0.0
        %v1786 = vand.u32 %v1194, 4294901760
        %1787 = vmatpush1.msra.mxu0 %v1786
        %1788 = vmatprep.subr.mxu0 0.0
        %v1789 = vand.u32 %v1195, 4294901760
        %1790 = vmatpush1.msra.mxu0 %v1789
        %1791 = vmatprep.subr.mxu0 0.0
        %v1792 = vand.u32 %v1196, 4294901760
        %1793 = vmatpush1.msra.mxu0 %v1792
        %1794 = vmatprep.subr.mxu0 0.0
        %v1795 = vand.u32 %v1197, 4294901760
        %1796 = vmatpush1.msra.mxu0 %v1795
        %1797 = vmatprep.subr.mxu0 0.0
        %v1798 = vand.u32 %v1198, 4294901760
        %1799 = vmatpush1.msra.mxu0 %v1798
        %1800 = vmatprep.subr.mxu0 0.0
        %v1801 = vand.u32 %v1199, 4294901760
        %1802 = vmatpush1.msra.mxu0 %v1801
        %1803 = vmatprep.subr.mxu0 0.0
        %v1804 = vand.u32 %v1200, 4294901760
        %1805 = vmatpush1.msra.mxu0 %v1804
        %1806 = vmatprep.subr.mxu0 0.0
        %v1807 = vand.u32 %v1201, 4294901760
        %1808 = vmatpush1.msra.mxu0 %v1807
        %1809 = vmatprep.subr.mxu0 0.0
        %v1810 = vand.u32 %v1202, 4294901760
        %1811 = vmatpush1.msra.mxu0 %v1810
        %1812 = vmatprep.subr.mxu0 0.0
        %1813 = vmatpush1.msra.mxu0 0.0
        %1814 = vmatprep.subr.mxu0 0.0
        %1815 = vmatpush1.msra.mxu0 0.0
        %1816 = vmatprep.subr.mxu0 0.0
        %1817 = vmatpush1.msra.mxu0 0.0
        %1818 = vmatprep.subr.mxu0 0.0
        %1819 = vmatpush1.msra.mxu0 0.0
        %1820 = vmatprep.subr.mxu0 0.0
        %1821 = vmatpush1.msra.mxu0 0.0
        %1822 = vmatprep.subr.mxu0 0.0
        %1823 = vmatpush1.msra.mxu0 0.0
        %1824 = vmatprep.subr.mxu0 0.0
        %1825 = vmatpush1.msra.mxu0 0.0
        %1826 = vmatprep.subr.mxu0 0.0
        %1827 = vmatpush1.msra.mxu0 0.0
        %1828 = vmatprep.subr.mxu0 0.0
        %1829 = vmatpush1.msra.mxu0 0.0
        %1830 = vmatprep.subr.mxu0 0.0
        %1831 = vmatpush1.msra.mxu0 0.0
        %1832 = vmatprep.subr.mxu0 0.0
        %1833 = vmatpush1.msra.mxu0 0.0
        %1834 = vmatprep.subr.mxu0 0.0
        %1835 = vmatpush1.msra.mxu0 0.0
        %1836 = vmatprep.subr.mxu0 0.0
        %1837 = vmatpush1.msra.mxu0 0.0
        %1838 = vmatprep.subr.mxu0 0.0
        %1839 = vmatpush1.msra.mxu0 0.0
        %1840 = vmatprep.subr.mxu0 0.0
        %1841 = vmatpush1.msra.mxu0 0.0
        %1842 = vmatprep.subr.mxu0 0.0
        %1843 = vmatpush1.msra.mxu0 0.0
        %1844 = vmatprep.mubr.f32.mxu0 0.0
        %v1845 = vand.u32 %v1186, 4294901760
        %1846 = vmatmul.mubr.f32.gmra.mrb[0].mxu0 %v1845
        %v1847 = vpop.f32.mrb[0].mxu0
        %v1848 = vadd.f32 %v1761, %v1847
        %v1849 = vpop.f32.mrb[0].mxu0
        %1850 = vdwg.mxu0
        %1851 = vst [vmem:[%s515] sm:$0xff] %v1848
        %v1852 = vld [vmem:[%s437] sm:$0xff]
        %v1853 = vld [vmem:[#allocation9] sm:$0xff]
        %v1854 = vld [vmem:[#allocation9 + $0x8] sm:$0xff]
        %v1855 = vld [vmem:[#allocation9 + $0x10] sm:$0xff]
        %v1856 = vld [vmem:[#allocation9 + $0x18] sm:$0xff]
        %v1857 = vld [vmem:[#allocation9 + $0x20] sm:$0xff]
        %v1858 = vld [vmem:[#allocation9 + $0x28] sm:$0xff]
        %v1859 = vld [vmem:[#allocation9 + $0x30] sm:$0xff]
        %v1860 = vld [vmem:[#allocation9 + $0x38] sm:$0xff]
        %v1861 = vld [vmem:[#allocation9 + $0x40] sm:$0xff]
        %v1862 = vld [vmem:[#allocation9 + $0x48] sm:$0xff]
        %v1863 = vld [vmem:[#allocation9 + $0x50] sm:$0xff]
        %v1864 = vld [vmem:[#allocation9 + $0x58] sm:$0xff]
        %v1865 = vld [vmem:[#allocation9 + $0x60] sm:$0xff]
        %v1866 = vld [vmem:[#allocation9 + $0x68] sm:$0xff]
        %v1867 = vld [vmem:[#allocation9 + $0x70] sm:$0xff]
        %v1868 = vld [vmem:[#allocation9 + $0x78] sm:$0xff]
        %v1869 = vld [vmem:[%s8] sm:$0x1]
        %v1871 = vlaneseq
        %v1872 = vshrl.u32 %v1871, 7
        %v1873 = vsub.s32 0, %v1872
        %v1874 = vrot.slane %v1869, %v1873
        %1876 = vmatprep.subr.mxu0 0.0
        %v1877 = vand.u32 %v1853, 4294901760
        %1878 = vmatpush1.msra.mxu0 %v1877
        %1879 = vmatprep.subr.mxu0 0.0
        %v1880 = vand.u32 %v1854, 4294901760
        %1881 = vmatpush1.msra.mxu0 %v1880
        %1882 = vmatprep.subr.mxu0 0.0
        %v1883 = vand.u32 %v1855, 4294901760
        %1884 = vmatpush1.msra.mxu0 %v1883
        %1885 = vmatprep.subr.mxu0 0.0
        %v1886 = vand.u32 %v1856, 4294901760
        %1887 = vmatpush1.msra.mxu0 %v1886
        %1888 = vmatprep.subr.mxu0 0.0
        %v1889 = vand.u32 %v1857, 4294901760
        %1890 = vmatpush1.msra.mxu0 %v1889
        %1891 = vmatprep.subr.mxu0 0.0
        %v1892 = vand.u32 %v1858, 4294901760
        %1893 = vmatpush1.msra.mxu0 %v1892
        %1894 = vmatprep.subr.mxu0 0.0
        %v1895 = vand.u32 %v1859, 4294901760
        %1896 = vmatpush1.msra.mxu0 %v1895
        %1897 = vmatprep.subr.mxu0 0.0
        %v1898 = vand.u32 %v1860, 4294901760
        %1899 = vmatpush1.msra.mxu0 %v1898
        %1900 = vmatprep.subr.mxu0 0.0
        %v1901 = vand.u32 %v1861, 4294901760
        %1902 = vmatpush1.msra.mxu0 %v1901
        %1903 = vmatprep.subr.mxu0 0.0
        %v1904 = vand.u32 %v1862, 4294901760
        %1905 = vmatpush1.msra.mxu0 %v1904
        %1906 = vmatprep.subr.mxu0 0.0
        %v1907 = vand.u32 %v1863, 4294901760
        %1908 = vmatpush1.msra.mxu0 %v1907
        %1909 = vmatprep.subr.mxu0 0.0
        %v1910 = vand.u32 %v1864, 4294901760
        %1911 = vmatpush1.msra.mxu0 %v1910
        %1912 = vmatprep.subr.mxu0 0.0
        %v1913 = vand.u32 %v1865, 4294901760
        %1914 = vmatpush1.msra.mxu0 %v1913
        %1915 = vmatprep.subr.mxu0 0.0
        %v1916 = vand.u32 %v1866, 4294901760
        %1917 = vmatpush1.msra.mxu0 %v1916
        %1918 = vmatprep.subr.mxu0 0.0
        %v1919 = vand.u32 %v1867, 4294901760
        %1920 = vmatpush1.msra.mxu0 %v1919
        %1921 = vmatprep.subr.mxu0 0.0
        %v1922 = vand.u32 %v1868, 4294901760
        %1923 = vmatpush1.msra.mxu0 %v1922
        %1924 = vmatprep.subr.mxu0 0.0
        %1925 = vmatpush1.msra.mxu0 0.0
        %1926 = vmatprep.subr.mxu0 0.0
        %1927 = vmatpush1.msra.mxu0 0.0
        %1928 = vmatprep.subr.mxu0 0.0
        %1929 = vmatpush1.msra.mxu0 0.0
        %1930 = vmatprep.subr.mxu0 0.0
        %1931 = vmatpush1.msra.mxu0 0.0
        %1932 = vmatprep.subr.mxu0 0.0
        %1933 = vmatpush1.msra.mxu0 0.0
        %1934 = vmatprep.subr.mxu0 0.0
        %1935 = vmatpush1.msra.mxu0 0.0
        %1936 = vmatprep.subr.mxu0 0.0
        %1937 = vmatpush1.msra.mxu0 0.0
        %1938 = vmatprep.subr.mxu0 0.0
        %1939 = vmatpush1.msra.mxu0 0.0
        %1940 = vmatprep.subr.mxu0 0.0
        %1941 = vmatpush1.msra.mxu0 0.0
        %1942 = vmatprep.subr.mxu0 0.0
        %1943 = vmatpush1.msra.mxu0 0.0
        %1944 = vmatprep.subr.mxu0 0.0
        %1945 = vmatpush1.msra.mxu0 0.0
        %1946 = vmatprep.subr.mxu0 0.0
        %1947 = vmatpush1.msra.mxu0 0.0
        %1948 = vmatprep.subr.mxu0 0.0
        %1949 = vmatpush1.msra.mxu0 0.0
        %1950 = vmatprep.subr.mxu0 0.0
        %1951 = vmatpush1.msra.mxu0 0.0
        %1952 = vmatprep.subr.mxu0 0.0
        %1953 = vmatpush1.msra.mxu0 0.0
        %1954 = vmatprep.subr.mxu0 0.0
        %1955 = vmatpush1.msra.mxu0 0.0
        %1956 = vmatprep.mubr.f32.mxu0 0.0
        %v1957 = vand.u32 %v1852, 4294901760
        %v1958 = vsub.f32 %v1852, %v1957
        %v1959 = vand.u32 %v1958, 4294901760
        %v1960 = vsub.f32 %v1958, %v1959
        %v1961 = vand.u32 %v1960, 4294901760
        %1962 = vmatmul.mubr.f32.gmra.mrb[0].mxu0 %v1961
        %v1963 = vpop.f32.mrb[0].mxu0
        %v1964 = vadd.f32 %v1874, %v1963
        %v1965 = vpop.f32.mrb[0].mxu0
        %1966 = vdwg.mxu0
        %1967 = vmatprep.subr.mxu0 0.0
        %v1968 = vand.u32 %v1853, 4294901760
        %v1969 = vsub.f32 %v1853, %v1968
        %v1970 = vand.u32 %v1969, 4294901760
        %v1971 = vsub.f32 %v1969, %v1970
        %v1972 = vand.u32 %v1971, 4294901760
        %1973 = vmatpush1.msra.mxu0 %v1972
        %1974 = vmatprep.subr.mxu0 0.0
        %v1975 = vand.u32 %v1854, 4294901760
        %v1976 = vsub.f32 %v1854, %v1975
        %v1977 = vand.u32 %v1976, 4294901760
        %v1978 = vsub.f32 %v1976, %v1977
        %v1979 = vand.u32 %v1978, 4294901760
        %1980 = vmatpush1.msra.mxu0 %v1979
        %1981 = vmatprep.subr.mxu0 0.0
        %v1982 = vand.u32 %v1855, 4294901760
        %v1983 = vsub.f32 %v1855, %v1982
        %v1984 = vand.u32 %v1983, 4294901760
        %v1985 = vsub.f32 %v1983, %v1984
        %v1986 = vand.u32 %v1985, 4294901760
        %1987 = vmatpush1.msra.mxu0 %v1986
        %1988 = vmatprep.subr.mxu0 0.0
        %v1989 = vand.u32 %v1856, 4294901760
        %v1990 = vsub.f32 %v1856, %v1989
        %v1991 = vand.u32 %v1990, 4294901760
        %v1992 = vsub.f32 %v1990, %v1991
        %v1993 = vand.u32 %v1992, 4294901760
        %1994 = vmatpush1.msra.mxu0 %v1993
        %1995 = vmatprep.subr.mxu0 0.0
        %v1996 = vand.u32 %v1857, 4294901760
        %v1997 = vsub.f32 %v1857, %v1996
        %v1998 = vand.u32 %v1997, 4294901760
        %v1999 = vsub.f32 %v1997, %v1998
        %v2000 = vand.u32 %v1999, 4294901760
        %2001 = vmatpush1.msra.mxu0 %v2000
        %2002 = vmatprep.subr.mxu0 0.0
        %v2003 = vand.u32 %v1858, 4294901760
        %v2004 = vsub.f32 %v1858, %v2003
        %v2005 = vand.u32 %v2004, 4294901760
        %v2006 = vsub.f32 %v2004, %v2005
        %v2007 = vand.u32 %v2006, 4294901760
        %2008 = vmatpush1.msra.mxu0 %v2007
        %2009 = vmatprep.subr.mxu0 0.0
        %v2010 = vand.u32 %v1859, 4294901760
        %v2011 = vsub.f32 %v1859, %v2010
        %v2012 = vand.u32 %v2011, 4294901760
        %v2013 = vsub.f32 %v2011, %v2012
        %v2014 = vand.u32 %v2013, 4294901760
        %2015 = vmatpush1.msra.mxu0 %v2014
        %2016 = vmatprep.subr.mxu0 0.0
        %v2017 = vand.u32 %v1860, 4294901760
        %v2018 = vsub.f32 %v1860, %v2017
        %v2019 = vand.u32 %v2018, 4294901760
        %v2020 = vsub.f32 %v2018, %v2019
        %v2021 = vand.u32 %v2020, 4294901760
        %2022 = vmatpush1.msra.mxu0 %v2021
        %2023 = vmatprep.subr.mxu0 0.0
        %v2024 = vand.u32 %v1861, 4294901760
        %v2025 = vsub.f32 %v1861, %v2024
        %v2026 = vand.u32 %v2025, 4294901760
        %v2027 = vsub.f32 %v2025, %v2026
        %v2028 = vand.u32 %v2027, 4294901760
        %2029 = vmatpush1.msra.mxu0 %v2028
        %2030 = vmatprep.subr.mxu0 0.0
        %v2031 = vand.u32 %v1862, 4294901760
        %v2032 = vsub.f32 %v1862, %v2031
        %v2033 = vand.u32 %v2032, 4294901760
        %v2034 = vsub.f32 %v2032, %v2033
        %v2035 = vand.u32 %v2034, 4294901760
        %2036 = vmatpush1.msra.mxu0 %v2035
        %2037 = vmatprep.subr.mxu0 0.0
        %v2038 = vand.u32 %v1863, 4294901760
        %v2039 = vsub.f32 %v1863, %v2038
        %v2040 = vand.u32 %v2039, 4294901760
        %v2041 = vsub.f32 %v2039, %v2040
        %v2042 = vand.u32 %v2041, 4294901760
        %2043 = vmatpush1.msra.mxu0 %v2042
        %2044 = vmatprep.subr.mxu0 0.0
        %v2045 = vand.u32 %v1864, 4294901760
        %v2046 = vsub.f32 %v1864, %v2045
        %v2047 = vand.u32 %v2046, 4294901760
        %v2048 = vsub.f32 %v2046, %v2047
        %v2049 = vand.u32 %v2048, 4294901760
        %2050 = vmatpush1.msra.mxu0 %v2049
        %2051 = vmatprep.subr.mxu0 0.0
        %v2052 = vand.u32 %v1865, 4294901760
        %v2053 = vsub.f32 %v1865, %v2052
        %v2054 = vand.u32 %v2053, 4294901760
        %v2055 = vsub.f32 %v2053, %v2054
        %v2056 = vand.u32 %v2055, 4294901760
        %2057 = vmatpush1.msra.mxu0 %v2056
        %2058 = vmatprep.subr.mxu0 0.0
        %v2059 = vand.u32 %v1866, 4294901760
        %v2060 = vsub.f32 %v1866, %v2059
        %v2061 = vand.u32 %v2060, 4294901760
        %v2062 = vsub.f32 %v2060, %v2061
        %v2063 = vand.u32 %v2062, 4294901760
        %2064 = vmatpush1.msra.mxu0 %v2063
        %2065 = vmatprep.subr.mxu0 0.0
        %v2066 = vand.u32 %v1867, 4294901760
        %v2067 = vsub.f32 %v1867, %v2066
        %v2068 = vand.u32 %v2067, 4294901760
        %v2069 = vsub.f32 %v2067, %v2068
        %v2070 = vand.u32 %v2069, 4294901760
        %2071 = vmatpush1.msra.mxu0 %v2070
        %2072 = vmatprep.subr.mxu0 0.0
        %v2073 = vand.u32 %v1868, 4294901760
        %v2074 = vsub.f32 %v1868, %v2073
        %v2075 = vand.u32 %v2074, 4294901760
        %v2076 = vsub.f32 %v2074, %v2075
        %v2077 = vand.u32 %v2076, 4294901760
        %2078 = vmatpush1.msra.mxu0 %v2077
        %2079 = vmatprep.subr.mxu0 0.0
        %2080 = vmatpush1.msra.mxu0 0.0
        %2081 = vmatprep.subr.mxu0 0.0
        %2082 = vmatpush1.msra.mxu0 0.0
        %2083 = vmatprep.subr.mxu0 0.0
        %2084 = vmatpush1.msra.mxu0 0.0
        %2085 = vmatprep.subr.mxu0 0.0
        %2086 = vmatpush1.msra.mxu0 0.0
        %2087 = vmatprep.subr.mxu0 0.0
        %2088 = vmatpush1.msra.mxu0 0.0
        %2089 = vmatprep.subr.mxu0 0.0
        %2090 = vmatpush1.msra.mxu0 0.0
        %2091 = vmatprep.subr.mxu0 0.0
        %2092 = vmatpush1.msra.mxu0 0.0
        %2093 = vmatprep.subr.mxu0 0.0
        %2094 = vmatpush1.msra.mxu0 0.0
        %2095 = vmatprep.subr.mxu0 0.0
        %2096 = vmatpush1.msra.mxu0 0.0
        %2097 = vmatprep.subr.mxu0 0.0
        %2098 = vmatpush1.msra.mxu0 0.0
        %2099 = vmatprep.subr.mxu0 0.0
        %2100 = vmatpush1.msra.mxu0 0.0
        %2101 = vmatprep.subr.mxu0 0.0
        %2102 = vmatpush1.msra.mxu0 0.0
        %2103 = vmatprep.subr.mxu0 0.0
        %2104 = vmatpush1.msra.mxu0 0.0
        %2105 = vmatprep.subr.mxu0 0.0
        %2106 = vmatpush1.msra.mxu0 0.0
        %2107 = vmatprep.subr.mxu0 0.0
        %2108 = vmatpush1.msra.mxu0 0.0
        %2109 = vmatprep.subr.mxu0 0.0
        %2110 = vmatpush1.msra.mxu0 0.0
        %2111 = vmatprep.mubr.f32.mxu0 0.0
        %v2112 = vand.u32 %v1852, 4294901760
        %2113 = vmatmul.mubr.f32.gmra.mrb[0].mxu0 %v2112
        %v2114 = vpop.f32.mrb[0].mxu0
        %v2115 = vadd.f32 %v1964, %v2114
        %v2116 = vpop.f32.mrb[0].mxu0
        %2117 = vdwg.mxu0
        %2118 = vmatprep.subr.mxu0 0.0
        %v2119 = vand.u32 %v1853, 4294901760
        %v2120 = vsub.f32 %v1853, %v2119
        %2121 = vmatpush1.msra.mxu0 %v2120
        %2122 = vmatprep.subr.mxu0 0.0
        %v2123 = vand.u32 %v1854, 4294901760
        %v2124 = vsub.f32 %v1854, %v2123
        %2125 = vmatpush1.msra.mxu0 %v2124
        %2126 = vmatprep.subr.mxu0 0.0
        %v2127 = vand.u32 %v1855, 4294901760
        %v2128 = vsub.f32 %v1855, %v2127
        %2129 = vmatpush1.msra.mxu0 %v2128
        %2130 = vmatprep.subr.mxu0 0.0
        %v2131 = vand.u32 %v1856, 4294901760
        %v2132 = vsub.f32 %v1856, %v2131
        %2133 = vmatpush1.msra.mxu0 %v2132
        %2134 = vmatprep.subr.mxu0 0.0
        %v2135 = vand.u32 %v1857, 4294901760
        %v2136 = vsub.f32 %v1857, %v2135
        %2137 = vmatpush1.msra.mxu0 %v2136
        %2138 = vmatprep.subr.mxu0 0.0
        %v2139 = vand.u32 %v1858, 4294901760
        %v2140 = vsub.f32 %v1858, %v2139
        %2141 = vmatpush1.msra.mxu0 %v2140
        %2142 = vmatprep.subr.mxu0 0.0
        %v2143 = vand.u32 %v1859, 4294901760
        %v2144 = vsub.f32 %v1859, %v2143
        %2145 = vmatpush1.msra.mxu0 %v2144
        %2146 = vmatprep.subr.mxu0 0.0
        %v2147 = vand.u32 %v1860, 4294901760
        %v2148 = vsub.f32 %v1860, %v2147
        %2149 = vmatpush1.msra.mxu0 %v2148
        %2150 = vmatprep.subr.mxu0 0.0
        %v2151 = vand.u32 %v1861, 4294901760
        %v2152 = vsub.f32 %v1861, %v2151
        %2153 = vmatpush1.msra.mxu0 %v2152
        %2154 = vmatprep.subr.mxu0 0.0
        %v2155 = vand.u32 %v1862, 4294901760
        %v2156 = vsub.f32 %v1862, %v2155
        %2157 = vmatpush1.msra.mxu0 %v2156
        %2158 = vmatprep.subr.mxu0 0.0
        %v2159 = vand.u32 %v1863, 4294901760
        %v2160 = vsub.f32 %v1863, %v2159
        %2161 = vmatpush1.msra.mxu0 %v2160
        %2162 = vmatprep.subr.mxu0 0.0
        %v2163 = vand.u32 %v1864, 4294901760
        %v2164 = vsub.f32 %v1864, %v2163
        %2165 = vmatpush1.msra.mxu0 %v2164
        %2166 = vmatprep.subr.mxu0 0.0
        %v2167 = vand.u32 %v1865, 4294901760
        %v2168 = vsub.f32 %v1865, %v2167
        %2169 = vmatpush1.msra.mxu0 %v2168
        %2170 = vmatprep.subr.mxu0 0.0
        %v2171 = vand.u32 %v1866, 4294901760
        %v2172 = vsub.f32 %v1866, %v2171
        %2173 = vmatpush1.msra.mxu0 %v2172
        %2174 = vmatprep.subr.mxu0 0.0
        %v2175 = vand.u32 %v1867, 4294901760
        %v2176 = vsub.f32 %v1867, %v2175
        %2177 = vmatpush1.msra.mxu0 %v2176
        %2178 = vmatprep.subr.mxu0 0.0
        %v2179 = vand.u32 %v1868, 4294901760
        %v2180 = vsub.f32 %v1868, %v2179
        %2181 = vmatpush1.msra.mxu0 %v2180
        %2182 = vmatprep.subr.mxu0 0.0
        %2183 = vmatpush1.msra.mxu0 0.0
        %2184 = vmatprep.subr.mxu0 0.0
        %2185 = vmatpush1.msra.mxu0 0.0
        %2186 = vmatprep.subr.mxu0 0.0
        %2187 = vmatpush1.msra.mxu0 0.0
        %2188 = vmatprep.subr.mxu0 0.0
        %2189 = vmatpush1.msra.mxu0 0.0
        %2190 = vmatprep.subr.mxu0 0.0
        %2191 = vmatpush1.msra.mxu0 0.0
        %2192 = vmatprep.subr.mxu0 0.0
        %2193 = vmatpush1.msra.mxu0 0.0
        %2194 = vmatprep.subr.mxu0 0.0
        %2195 = vmatpush1.msra.mxu0 0.0
        %2196 = vmatprep.subr.mxu0 0.0
        %2197 = vmatpush1.msra.mxu0 0.0
        %2198 = vmatprep.subr.mxu0 0.0
        %2199 = vmatpush1.msra.mxu0 0.0
        %2200 = vmatprep.subr.mxu0 0.0
        %2201 = vmatpush1.msra.mxu0 0.0
        %2202 = vmatprep.subr.mxu0 0.0
        %2203 = vmatpush1.msra.mxu0 0.0
        %2204 = vmatprep.subr.mxu0 0.0
        %2205 = vmatpush1.msra.mxu0 0.0
        %2206 = vmatprep.subr.mxu0 0.0
        %2207 = vmatpush1.msra.mxu0 0.0
        %2208 = vmatprep.subr.mxu0 0.0
        %2209 = vmatpush1.msra.mxu0 0.0
        %2210 = vmatprep.subr.mxu0 0.0
        %2211 = vmatpush1.msra.mxu0 0.0
        %2212 = vmatprep.subr.mxu0 0.0
        %2213 = vmatpush1.msra.mxu0 0.0
        %2214 = vmatprep.mubr.f32.mxu0 0.0
        %v2215 = vand.u32 %v1852, 4294901760
        %v2216 = vsub.f32 %v1852, %v2215
        %2217 = vmatmul.mubr.f32.gmra.mrb[0].mxu0 %v2216
        %v2218 = vpop.f32.mrb[0].mxu0
        %v2219 = vadd.f32 %v2115, %v2218
        %v2220 = vpop.f32.mrb[0].mxu0
        %2221 = vdwg.mxu0
        %2222 = vmatprep.subr.mxu0 0.0
        %v2223 = vand.u32 %v1853, 4294901760
        %2224 = vmatpush1.msra.mxu0 %v2223
        %2225 = vmatprep.subr.mxu0 0.0
        %v2226 = vand.u32 %v1854, 4294901760
        %2227 = vmatpush1.msra.mxu0 %v2226
        %2228 = vmatprep.subr.mxu0 0.0
        %v2229 = vand.u32 %v1855, 4294901760
        %2230 = vmatpush1.msra.mxu0 %v2229
        %2231 = vmatprep.subr.mxu0 0.0
        %v2232 = vand.u32 %v1856, 4294901760
        %2233 = vmatpush1.msra.mxu0 %v2232
        %2234 = vmatprep.subr.mxu0 0.0
        %v2235 = vand.u32 %v1857, 4294901760
        %2236 = vmatpush1.msra.mxu0 %v2235
        %2237 = vmatprep.subr.mxu0 0.0
        %v2238 = vand.u32 %v1858, 4294901760
        %2239 = vmatpush1.msra.mxu0 %v2238
        %2240 = vmatprep.subr.mxu0 0.0
        %v2241 = vand.u32 %v1859, 4294901760
        %2242 = vmatpush1.msra.mxu0 %v2241
        %2243 = vmatprep.subr.mxu0 0.0
        %v2244 = vand.u32 %v1860, 4294901760
        %2245 = vmatpush1.msra.mxu0 %v2244
        %2246 = vmatprep.subr.mxu0 0.0
        %v2247 = vand.u32 %v1861, 4294901760
        %2248 = vmatpush1.msra.mxu0 %v2247
        %2249 = vmatprep.subr.mxu0 0.0
        %v2250 = vand.u32 %v1862, 4294901760
        %2251 = vmatpush1.msra.mxu0 %v2250
        %2252 = vmatprep.subr.mxu0 0.0
        %v2253 = vand.u32 %v1863, 4294901760
        %2254 = vmatpush1.msra.mxu0 %v2253
        %2255 = vmatprep.subr.mxu0 0.0
        %v2256 = vand.u32 %v1864, 4294901760
        %2257 = vmatpush1.msra.mxu0 %v2256
        %2258 = vmatprep.subr.mxu0 0.0
        %v2259 = vand.u32 %v1865, 4294901760
        %2260 = vmatpush1.msra.mxu0 %v2259
        %2261 = vmatprep.subr.mxu0 0.0
        %v2262 = vand.u32 %v1866, 4294901760
        %2263 = vmatpush1.msra.mxu0 %v2262
        %2264 = vmatprep.subr.mxu0 0.0
        %v2265 = vand.u32 %v1867, 4294901760
        %2266 = vmatpush1.msra.mxu0 %v2265
        %2267 = vmatprep.subr.mxu0 0.0
        %v2268 = vand.u32 %v1868, 4294901760
        %2269 = vmatpush1.msra.mxu0 %v2268
        %2270 = vmatprep.subr.mxu0 0.0
        %2271 = vmatpush1.msra.mxu0 0.0
        %2272 = vmatprep.subr.mxu0 0.0
        %2273 = vmatpush1.msra.mxu0 0.0
        %2274 = vmatprep.subr.mxu0 0.0
        %2275 = vmatpush1.msra.mxu0 0.0
        %2276 = vmatprep.subr.mxu0 0.0
        %2277 = vmatpush1.msra.mxu0 0.0
        %2278 = vmatprep.subr.mxu0 0.0
        %2279 = vmatpush1.msra.mxu0 0.0
        %2280 = vmatprep.subr.mxu0 0.0
        %2281 = vmatpush1.msra.mxu0 0.0
        %2282 = vmatprep.subr.mxu0 0.0
        %2283 = vmatpush1.msra.mxu0 0.0
        %2284 = vmatprep.subr.mxu0 0.0
        %2285 = vmatpush1.msra.mxu0 0.0
        %2286 = vmatprep.subr.mxu0 0.0
        %2287 = vmatpush1.msra.mxu0 0.0
        %2288 = vmatprep.subr.mxu0 0.0
        %2289 = vmatpush1.msra.mxu0 0.0
        %2290 = vmatprep.subr.mxu0 0.0
        %2291 = vmatpush1.msra.mxu0 0.0
        %2292 = vmatprep.subr.mxu0 0.0
        %2293 = vmatpush1.msra.mxu0 0.0
        %2294 = vmatprep.subr.mxu0 0.0
        %2295 = vmatpush1.msra.mxu0 0.0
        %2296 = vmatprep.subr.mxu0 0.0
        %2297 = vmatpush1.msra.mxu0 0.0
        %2298 = vmatprep.subr.mxu0 0.0
        %2299 = vmatpush1.msra.mxu0 0.0
        %2300 = vmatprep.subr.mxu0 0.0
        %2301 = vmatpush1.msra.mxu0 0.0
        %2302 = vmatprep.mubr.f32.mxu0 0.0
        %v2303 = vand.u32 %v1852, 4294901760
        %v2304 = vsub.f32 %v1852, %v2303
        %v2305 = vand.u32 %v2304, 4294901760
        %2306 = vmatmul.mubr.f32.gmra.mrb[0].mxu0 %v2305
        %v2307 = vpop.f32.mrb[0].mxu0
        %v2308 = vadd.f32 %v2219, %v2307
        %v2309 = vpop.f32.mrb[0].mxu0
        %2310 = vdwg.mxu0
        %2311 = vmatprep.subr.mxu0 0.0
        %v2312 = vand.u32 %v1853, 4294901760
        %v2313 = vsub.f32 %v1853, %v2312
        %v2314 = vand.u32 %v2313, 4294901760
        %2315 = vmatpush1.msra.mxu0 %v2314
        %2316 = vmatprep.subr.mxu0 0.0
        %v2317 = vand.u32 %v1854, 4294901760
        %v2318 = vsub.f32 %v1854, %v2317
        %v2319 = vand.u32 %v2318, 4294901760
        %2320 = vmatpush1.msra.mxu0 %v2319
        %2321 = vmatprep.subr.mxu0 0.0
        %v2322 = vand.u32 %v1855, 4294901760
        %v2323 = vsub.f32 %v1855, %v2322
        %v2324 = vand.u32 %v2323, 4294901760
        %2325 = vmatpush1.msra.mxu0 %v2324
        %2326 = vmatprep.subr.mxu0 0.0
        %v2327 = vand.u32 %v1856, 4294901760
        %v2328 = vsub.f32 %v1856, %v2327
        %v2329 = vand.u32 %v2328, 4294901760
        %2330 = vmatpush1.msra.mxu0 %v2329
        %2331 = vmatprep.subr.mxu0 0.0
        %v2332 = vand.u32 %v1857, 4294901760
        %v2333 = vsub.f32 %v1857, %v2332
        %v2334 = vand.u32 %v2333, 4294901760
        %2335 = vmatpush1.msra.mxu0 %v2334
        %2336 = vmatprep.subr.mxu0 0.0
        %v2337 = vand.u32 %v1858, 4294901760
        %v2338 = vsub.f32 %v1858, %v2337
        %v2339 = vand.u32 %v2338, 4294901760
        %2340 = vmatpush1.msra.mxu0 %v2339
        %2341 = vmatprep.subr.mxu0 0.0
        %v2342 = vand.u32 %v1859, 4294901760
        %v2343 = vsub.f32 %v1859, %v2342
        %v2344 = vand.u32 %v2343, 4294901760
        %2345 = vmatpush1.msra.mxu0 %v2344
        %2346 = vmatprep.subr.mxu0 0.0
        %v2347 = vand.u32 %v1860, 4294901760
        %v2348 = vsub.f32 %v1860, %v2347
        %v2349 = vand.u32 %v2348, 4294901760
        %2350 = vmatpush1.msra.mxu0 %v2349
        %2351 = vmatprep.subr.mxu0 0.0
        %v2352 = vand.u32 %v1861, 4294901760
        %v2353 = vsub.f32 %v1861, %v2352
        %v2354 = vand.u32 %v2353, 4294901760
        %2355 = vmatpush1.msra.mxu0 %v2354
        %2356 = vmatprep.subr.mxu0 0.0
        %v2357 = vand.u32 %v1862, 4294901760
        %v2358 = vsub.f32 %v1862, %v2357
        %v2359 = vand.u32 %v2358, 4294901760
        %2360 = vmatpush1.msra.mxu0 %v2359
        %2361 = vmatprep.subr.mxu0 0.0
        %v2362 = vand.u32 %v1863, 4294901760
        %v2363 = vsub.f32 %v1863, %v2362
        %v2364 = vand.u32 %v2363, 4294901760
        %2365 = vmatpush1.msra.mxu0 %v2364
        %2366 = vmatprep.subr.mxu0 0.0
        %v2367 = vand.u32 %v1864, 4294901760
        %v2368 = vsub.f32 %v1864, %v2367
        %v2369 = vand.u32 %v2368, 4294901760
        %2370 = vmatpush1.msra.mxu0 %v2369
        %2371 = vmatprep.subr.mxu0 0.0
        %v2372 = vand.u32 %v1865, 4294901760
        %v2373 = vsub.f32 %v1865, %v2372
        %v2374 = vand.u32 %v2373, 4294901760
        %2375 = vmatpush1.msra.mxu0 %v2374
        %2376 = vmatprep.subr.mxu0 0.0
        %v2377 = vand.u32 %v1866, 4294901760
        %v2378 = vsub.f32 %v1866, %v2377
        %v2379 = vand.u32 %v2378, 4294901760
        %2380 = vmatpush1.msra.mxu0 %v2379
        %2381 = vmatprep.subr.mxu0 0.0
        %v2382 = vand.u32 %v1867, 4294901760
        %v2383 = vsub.f32 %v1867, %v2382
        %v2384 = vand.u32 %v2383, 4294901760
        %2385 = vmatpush1.msra.mxu0 %v2384
        %2386 = vmatprep.subr.mxu0 0.0
        %v2387 = vand.u32 %v1868, 4294901760
        %v2388 = vsub.f32 %v1868, %v2387
        %v2389 = vand.u32 %v2388, 4294901760
        %2390 = vmatpush1.msra.mxu0 %v2389
        %2391 = vmatprep.subr.mxu0 0.0
        %2392 = vmatpush1.msra.mxu0 0.0
        %2393 = vmatprep.subr.mxu0 0.0
        %2394 = vmatpush1.msra.mxu0 0.0
        %2395 = vmatprep.subr.mxu0 0.0
        %2396 = vmatpush1.msra.mxu0 0.0
        %2397 = vmatprep.subr.mxu0 0.0
        %2398 = vmatpush1.msra.mxu0 0.0
        %2399 = vmatprep.subr.mxu0 0.0
        %2400 = vmatpush1.msra.mxu0 0.0
        %2401 = vmatprep.subr.mxu0 0.0
        %2402 = vmatpush1.msra.mxu0 0.0
        %2403 = vmatprep.subr.mxu0 0.0
        %2404 = vmatpush1.msra.mxu0 0.0
        %2405 = vmatprep.subr.mxu0 0.0
        %2406 = vmatpush1.msra.mxu0 0.0
        %2407 = vmatprep.subr.mxu0 0.0
        %2408 = vmatpush1.msra.mxu0 0.0
        %2409 = vmatprep.subr.mxu0 0.0
        %2410 = vmatpush1.msra.mxu0 0.0
        %2411 = vmatprep.subr.mxu0 0.0
        %2412 = vmatpush1.msra.mxu0 0.0
        %2413 = vmatprep.subr.mxu0 0.0
        %2414 = vmatpush1.msra.mxu0 0.0
        %2415 = vmatprep.subr.mxu0 0.0
        %2416 = vmatpush1.msra.mxu0 0.0
        %2417 = vmatprep.subr.mxu0 0.0
        %2418 = vmatpush1.msra.mxu0 0.0
        %2419 = vmatprep.subr.mxu0 0.0
        %2420 = vmatpush1.msra.mxu0 0.0
        %2421 = vmatprep.subr.mxu0 0.0
        %2422 = vmatpush1.msra.mxu0 0.0
        %2423 = vmatprep.mubr.f32.mxu0 0.0
        %v2424 = vand.u32 %v1852, 4294901760
        %2425 = vmatmul.mubr.f32.gmra.mrb[0].mxu0 %v2424
        %v2426 = vpop.f32.mrb[0].mxu0
        %v2427 = vadd.f32 %v2308, %v2426
        %v2428 = vpop.f32.mrb[0].mxu0
        %2429 = vdwg.mxu0
        %2430 = vmatprep.subr.mxu0 0.0
        %v2431 = vand.u32 %v1853, 4294901760
        %2432 = vmatpush1.msra.mxu0 %v2431
        %2433 = vmatprep.subr.mxu0 0.0
        %v2434 = vand.u32 %v1854, 4294901760
        %2435 = vmatpush1.msra.mxu0 %v2434
        %2436 = vmatprep.subr.mxu0 0.0
        %v2437 = vand.u32 %v1855, 4294901760
        %2438 = vmatpush1.msra.mxu0 %v2437
        %2439 = vmatprep.subr.mxu0 0.0
        %v2440 = vand.u32 %v1856, 4294901760
        %2441 = vmatpush1.msra.mxu0 %v2440
        %2442 = vmatprep.subr.mxu0 0.0
        %v2443 = vand.u32 %v1857, 4294901760
        %2444 = vmatpush1.msra.mxu0 %v2443
        %2445 = vmatprep.subr.mxu0 0.0
        %v2446 = vand.u32 %v1858, 4294901760
        %2447 = vmatpush1.msra.mxu0 %v2446
        %2448 = vmatprep.subr.mxu0 0.0
        %v2449 = vand.u32 %v1859, 4294901760
        %2450 = vmatpush1.msra.mxu0 %v2449
        %2451 = vmatprep.subr.mxu0 0.0
        %v2452 = vand.u32 %v1860, 4294901760
        %2453 = vmatpush1.msra.mxu0 %v2452
        %2454 = vmatprep.subr.mxu0 0.0
        %v2455 = vand.u32 %v1861, 4294901760
        %2456 = vmatpush1.msra.mxu0 %v2455
        %2457 = vmatprep.subr.mxu0 0.0
        %v2458 = vand.u32 %v1862, 4294901760
        %2459 = vmatpush1.msra.mxu0 %v2458
        %2460 = vmatprep.subr.mxu0 0.0
        %v2461 = vand.u32 %v1863, 4294901760
        %2462 = vmatpush1.msra.mxu0 %v2461
        %2463 = vmatprep.subr.mxu0 0.0
        %v2464 = vand.u32 %v1864, 4294901760
        %2465 = vmatpush1.msra.mxu0 %v2464
        %2466 = vmatprep.subr.mxu0 0.0
        %v2467 = vand.u32 %v1865, 4294901760
        %2468 = vmatpush1.msra.mxu0 %v2467
        %2469 = vmatprep.subr.mxu0 0.0
        %v2470 = vand.u32 %v1866, 4294901760
        %2471 = vmatpush1.msra.mxu0 %v2470
        %2472 = vmatprep.subr.mxu0 0.0
        %v2473 = vand.u32 %v1867, 4294901760
        %2474 = vmatpush1.msra.mxu0 %v2473
        %2475 = vmatprep.subr.mxu0 0.0
        %v2476 = vand.u32 %v1868, 4294901760
        %2477 = vmatpush1.msra.mxu0 %v2476
        %2478 = vmatprep.subr.mxu0 0.0
        %2479 = vmatpush1.msra.mxu0 0.0
        %2480 = vmatprep.subr.mxu0 0.0
        %2481 = vmatpush1.msra.mxu0 0.0
        %2482 = vmatprep.subr.mxu0 0.0
        %2483 = vmatpush1.msra.mxu0 0.0
        %2484 = vmatprep.subr.mxu0 0.0
        %2485 = vmatpush1.msra.mxu0 0.0
        %2486 = vmatprep.subr.mxu0 0.0
        %2487 = vmatpush1.msra.mxu0 0.0
        %2488 = vmatprep.subr.mxu0 0.0
        %2489 = vmatpush1.msra.mxu0 0.0
        %2490 = vmatprep.subr.mxu0 0.0
        %2491 = vmatpush1.msra.mxu0 0.0
        %2492 = vmatprep.subr.mxu0 0.0
        %2493 = vmatpush1.msra.mxu0 0.0
        %2494 = vmatprep.subr.mxu0 0.0
        %2495 = vmatpush1.msra.mxu0 0.0
        %2496 = vmatprep.subr.mxu0 0.0
        %2497 = vmatpush1.msra.mxu0 0.0
        %2498 = vmatprep.subr.mxu0 0.0
        %2499 = vmatpush1.msra.mxu0 0.0
        %2500 = vmatprep.subr.mxu0 0.0
        %2501 = vmatpush1.msra.mxu0 0.0
        %2502 = vmatprep.subr.mxu0 0.0
        %2503 = vmatpush1.msra.mxu0 0.0
        %2504 = vmatprep.subr.mxu0 0.0
        %2505 = vmatpush1.msra.mxu0 0.0
        %2506 = vmatprep.subr.mxu0 0.0
        %2507 = vmatpush1.msra.mxu0 0.0
        %2508 = vmatprep.subr.mxu0 0.0
        %2509 = vmatpush1.msra.mxu0 0.0
        %2510 = vmatprep.mubr.f32.mxu0 0.0
        %v2511 = vand.u32 %v1852, 4294901760
        %2512 = vmatmul.mubr.f32.gmra.mrb[0].mxu0 %v2511
        %v2513 = vpop.f32.mrb[0].mxu0
        %v2514 = vadd.f32 %v2427, %v2513
        %v2515 = vpop.f32.mrb[0].mxu0
        %2516 = vdwg.mxu0
        %2517 = vst [vmem:[%s519] sm:$0xff] %v2514
        %p2518 = scmp.lt.s32.totalorder %s30, 1
        %s2519 = scalar_select %p2518, %s30, 1
        %s2520 = smul.addr %s2519, 8
        %s2521 = scalar_lea.vmem %s9, %s2520
        %p2522 = scmp.lt.s32.totalorder %s30, 1
        %s2523 = scalar_select %p2522, %s30, 1
        %s2524 = smul.addr %s2523, 8
        %s2525 = scalar_lea.vmem %s10, %s2524
        %p2526 = scmp.lt.s32.totalorder %s30, 1
        %s2527 = scalar_select %p2526, %s30, 1
        %s2528 = smul.addr %s2527, 8
        %s2529 = scalar_lea.vmem %s11, %s2528
        // Predicated region
        $region77: #{multi_head_attention.3} parent=55 // pred_check
          %p2530 = pneg %p252
        $region78: #{multi_head_attention.3} parent=55 // pred_check_branch
          %2532 = sbr.rel (%p2530) target = $region80
        $region79: #{multi_head_attention.3} parent=55 // pred_region
          _
        $region80: #{multi_head_attention.3} parent=55 // pred_fallthru
          _
        // Predicated region
        $region81: #{multi_head_attention.3} parent=55 // pred_check
          %p2533 = pneg %p278
        $region82: #{multi_head_attention.3} parent=55 // pred_check_branch
          %2535 = sbr.rel (%p2533) target = $region84
        $region83: #{multi_head_attention.3} parent=55 // pred_region
          _
        $region84: #{multi_head_attention.3} parent=55 // pred_fallthru
          _
        // Predicated region
        $region85: #{multi_head_attention.3} parent=55 // pred_check
          %p2536 = pneg %p304
        $region86: #{multi_head_attention.3} parent=55 // pred_check_branch
          %2538 = sbr.rel (%p2536) target = $region88
        $region87: #{multi_head_attention.3} parent=55 // pred_region
          _
        $region88: #{multi_head_attention.3} parent=55 // pred_fallthru
          _
      $region56: #{multi_head_attention.3} parent=5 // pred_fallthru
        _
      %p2539 = scmp.le.s32.totalorder 2, %s25
      // Predicated region
      $region89: #{multi_head_attention.3} parent=5 // pred_check
        %p2540 = pneg %p2539
      $region90: #{multi_head_attention.3} parent=5 // pred_check_branch
        %2542 = sbr.rel (%p2540) target = $region92
      $region91: #{multi_head_attention.3} parent=5 // pred_region
        %s2543 = ssub.s32 %s25, 2
        // Predicated region
        $region93: #{multi_head_attention.3} parent=91 // pred_check
          %p2544 = pneg %p258
        $region94: #{multi_head_attention.3} parent=91 // pred_check_branch
          %2546 = sbr.rel (%p2544) target = $region96
        $region95: #{multi_head_attention.3} parent=91 // pred_region
          %p2547 = scmp.lt.s32.totalorder %s31, 1
          %s2548 = scalar_select %p2547, %s31, 1
          %s2549 = smul.addr %s2548, 8
          %s2550 = scalar_lea.vmem %s9, %s2549
        $region96: #{multi_head_attention.3} parent=91 // pred_fallthru
          _
        // Predicated region
        $region97: #{multi_head_attention.3} parent=91 // pred_check
          %p2551 = pneg %p284
        $region98: #{multi_head_attention.3} parent=91 // pred_check_branch
          %2553 = sbr.rel (%p2551) target = $region100
        $region99: #{multi_head_attention.3} parent=91 // pred_region
          %p2554 = scmp.lt.s32.totalorder %s31, 1
          %s2555 = scalar_select %p2554, %s31, 1
          %s2556 = smul.addr %s2555, 8
          %s2557 = scalar_lea.vmem %s10, %s2556
        $region100: #{multi_head_attention.3} parent=91 // pred_fallthru
          _
        // Predicated region
        $region101: #{multi_head_attention.3} parent=91 // pred_check
          %p2558 = pneg %p310
        $region102: #{multi_head_attention.3} parent=91 // pred_check_branch
          %2560 = sbr.rel (%p2558) target = $region104
        $region103: #{multi_head_attention.3} parent=91 // pred_region
          %p2561 = scmp.lt.s32.totalorder %s31, 1
          %s2562 = scalar_select %p2561, %s31, 1
          %s2563 = smul.addr %s2562, 8
          %s2564 = scalar_lea.vmem %s11, %s2563
        $region104: #{multi_head_attention.3} parent=91 // pred_fallthru
          _
      $region92: #{multi_head_attention.3} parent=5 // pred_fallthru
        _
    $region6: #{multi_head_attention.3} parent=1 // loop_footer
      %s29 = sadd.s32 1, %s25
    $region7: #{multi_head_attention.3} parent=1 // loop_footer_branch
      %24 = sbr.rel target = $region3
    $region8: #{multi_head_attention.3} parent=1 // loop_exit
      _
    %2565 = vsyncpa [#allocation3], 1
    %s2566 = scalar_lea.sflag [#allocation3], 1
    %2567 = vsyncpa %s2566, 1
    %2568 = vsyncpa [#allocation5], 1
    %s2569 = scalar_lea.sflag [#allocation5], 1
    %2570 = vsyncpa %s2569, 1
    %2571 = vsyncpa [#allocation8], 1

</llo_original>
